<compile_context>
chip_gen: v5e
topology: v5e:2x2
jax: 0.10.0
libtpu: 0.0.40
codegen_flags: <defaults>
</compile_context>

<pallas_src>
import math
import functools

import jax
import jax.numpy as jnp
from jax.experimental import pallas as pl
from jax.experimental.pallas import tpu as pltpu

NEG_INF = -1000000000.0  # exact masked_fill value used in the PyTorch reference


# ----------------------------------------------------------------------------
# Fused kernel: top-level scores + argmax + lookup gather + dense MHA
# ----------------------------------------------------------------------------
def _fused_sparse_mha_kernel(x_ref, wq_ref, bq_ref, wk_ref, bk_ref,
                             wv_ref, bv_ref, wo_ref, bo_ref, o_ref,
                             *, num_experts, subseq_len, heads, d_k):
    NB = x_ref.shape[0]          # batch elements handled by this grid step
    T = x_ref.shape[1]
    D = x_ref.shape[2]
    E, L, H = num_experts, subseq_len, heads
    scale = 1.0 / math.sqrt(d_k)
    inv_sqrt_d = 1.0 / math.sqrt(D)

    # ---- hoisted constants (built once per grid step, reused by all loops) ----
    row_e = jax.lax.broadcasted_iota(jnp.int32, (E, E), 0)
    col_e = jax.lax.broadcasted_iota(jnp.int32, (E, E), 1)
    row_l = jax.lax.broadcasted_iota(jnp.int32, (L, L), 0)
    col_l = jax.lax.broadcasted_iota(jnp.int32, (L, L), 1)
    causal = jnp.broadcast_to((col_l > row_l)[None, :, :], (E, L, L))

    # ---- Q / K / V projections batched over every row of the block (NB*T rows) ----
    xf = x_ref[...].reshape(NB * T, D)
    # 1/sqrt(d_k) folded into q once (instead of per-head score scaling).
    qf = (jnp.dot(xf, wq_ref[...], preferred_element_type=jnp.float32)
          + bq_ref[...]) * scale
    knf = jnp.dot(xf, wk_ref[...], preferred_element_type=jnp.float32)   # bias added later
    vnf = jnp.dot(xf, wv_ref[...], preferred_element_type=jnp.float32)   # bias added later

    per_b = []
    for b in range(NB):  # NB is tiny; static unroll
        x3 = xf[b * T:(b + 1) * T, :].reshape(E, L, D)
        q3 = qf[b * T:(b + 1) * T, :].reshape(E, L, D)
        kn3 = knf[b * T:(b + 1) * T, :].reshape(E, L, D)
        vn3 = vnf[b * T:(b + 1) * T, :].reshape(E, L, D)

        # -- top-level expert attention -> lookup index (K == 1 argmax) --
        xs = jnp.sum(x3, axis=1)                                        # (E, D)
        s = jax.lax.dot_general(xs, xs, (((1,), (1,)), ((), ())),
                                preferred_element_type=jnp.float32) * inv_sqrt_d
        s = jnp.where(col_e > row_e, NEG_INF, s)                        # no-peak mask
        # Unnormalized softmax: the per-row normalizer is a positive constant, so the
        # argmax (and its lowest-index tie-break) is identical to top_k on the
        # normalized, diag-zeroed scores of the reference.
        p = jnp.exp(s - jnp.max(s, axis=-1, keepdims=True))
        p = jnp.where(col_e == row_e, 0.0, p)                           # zero diagonal
        pmax = jnp.max(p, axis=-1, keepdims=True)
        idx = jnp.min(jnp.where(p == pmax, col_e, E), axis=-1, keepdims=True)  # (E,1)
        onehot = jnp.where((col_e == idx) & (row_e > 0), 1.0, 0.0)      # row 0 zeroed
        onehot = onehot.astype(jnp.float32)

        # -- gather the already-projected (bias-free) K/V rows for the lookup half --
        lk_kn = jnp.zeros((E, L, D), jnp.float32)
        lk_vn = jnp.zeros((E, L, D), jnp.float32)
        for f in range(E):
            w = onehot[:, f:f + 1].reshape(E, 1, 1)
            lk_kn = lk_kn + w * kn3[f:f + 1, :, :]
            lk_vn = lk_vn + w * vn3[f:f + 1, :, :]

        k_main = kn3 + bk_ref[...]
        v_main = vn3 + bv_ref[...]
        k_lk = lk_kn + bk_ref[...]   # expert 0: zeros @ wk + bk == bk broadcast
        v_lk = lk_vn + bv_ref[...]

        # -- per-head attention, expert-batched dot_generals; heads unrolled --
        head_outs = []
        for h in range(H):
            sl = slice(h * d_k, (h + 1) * d_k)
            qh = q3[:, :, sl]
            sm = jax.lax.dot_general(qh, k_main[:, :, sl],
                                     (((2,), (2,)), ((0,), (0,))),
                                     preferred_element_type=jnp.float32)  # (E,L,L)
            sm = jnp.where(causal, NEG_INF, sm)
            slk = jax.lax.dot_general(qh, k_lk[:, :, sl],
                                      (((2,), (2,)), ((0,), (0,))),
                                      preferred_element_type=jnp.float32)  # (E,L,L)
            m = jnp.maximum(jnp.max(sm, axis=-1, keepdims=True),
                            jnp.max(slk, axis=-1, keepdims=True))
            pm = jnp.exp(sm - m)
            plk = jnp.exp(slk - m)
            denom = (jnp.sum(pm, axis=-1, keepdims=True)
                     + jnp.sum(plk, axis=-1, keepdims=True))
            inv = pl.reciprocal(denom, approx=True)
            # TODO(synk): dropout(p) omitted (eval-mode identity).
            ctx = (jax.lax.dot_general(pm, v_main[:, :, sl],
                                       (((2,), (1,)), ((0,), (0,))),
                                       preferred_element_type=jnp.float32)
                   + jax.lax.dot_general(plk, v_lk[:, :, sl],
                                         (((2,), (1,)), ((0,), (0,))),
                                         preferred_element_type=jnp.float32)) * inv
            head_outs.append(ctx)                                       # (E,L,d_k)

        per_b.append(jnp.concatenate(head_outs, axis=-1).reshape(T, D))

    concat = per_b[0] if NB == 1 else jnp.concatenate(per_b, axis=0)     # (NB*T, D)
    out = jnp.dot(concat, wo_ref[...],
                  preferred_element_type=jnp.float32) + bo_ref[...]
    o_ref[...] = out.reshape(NB, T, D).astype(o_ref.dtype)


# ----------------------------------------------------------------------------
# Wrapper: single pallas_call; grid layout depends on TensorCores per chip
# ----------------------------------------------------------------------------
def _tensorcores_per_chip():
    # v7x exposes 2 TensorCores per chip (batch -> "parallel" grid axis);
    # v5e / v6e expose one (collapse the batch into a single grid step).
    try:
        kind = jax.devices()[0].device_kind.lower()
    except Exception:
        return 1
    if "v7" in kind or "7x" in kind:
        return 2
    return 1


def sparse_multi_head_attention(x, params, *, num_experts,
                                num_lookup_subsequences, heads):
    assert num_lookup_subsequences == 1, "kernel assumes K == 1 (see TODO)"
    B, T, D = x.shape
    L = T // num_experts
    d_k = D // heads

    nb = 1 if (_tensorcores_per_chip() >= 2 and B > 1) else B
    grid = (B // nb,)

    kernel = functools.partial(
        _fused_sparse_mha_kernel, num_experts=num_experts, subseq_len=L,
        heads=heads, d_k=d_k)

    x_spec = pl.BlockSpec((nb, T, D), lambda i: (i, 0, 0))
    # Weight/bias blocks are constant across the grid (index_map always (0,0)),
    # so they are fetched once and reused.  Working set is tens of KB -> no
    # vmem_limit_bytes / tiling needed on any current chip.
    w_spec = pl.BlockSpec((D, D), lambda i: (0, 0))
    b_spec = pl.BlockSpec((1, D), lambda i: (0, 0))

    return pl.pallas_call(
        kernel,
        out_shape=jax.ShapeDtypeStruct((B, T, D), jnp.float32),
        grid=grid,
        in_specs=[x_spec,
                  w_spec, b_spec, w_spec, b_spec,
                  w_spec, b_spec, w_spec, b_spec],
        out_specs=pl.BlockSpec((nb, T, D), lambda i: (i, 0, 0)),
        compiler_params=pltpu.CompilerParams(
            dimension_semantics=(("parallel",) if grid[0] > 1 else ("arbitrary",))),
    )(x,
      params["wq"], params["bq"], params["wk"], params["bk"],
      params["wv"], params["bv"], params["wo"], params["bo"])


# ----------------------------------------------------------------------------
# Deterministic parameter init (synthetic, nn.Linear-style uniform bounds)
# ----------------------------------------------------------------------------
def init_params(key, d_model):
    bound = 1.0 / math.sqrt(d_model)
    ks = jax.random.split(key, 8)

    def u(k, shape):
        return jax.random.uniform(k, shape, jnp.float32, -bound, bound)

    return dict(
        wq=u(ks[0], (d_model, d_model)), bq=u(ks[1], (1, d_model)),
        wk=u(ks[2], (d_model, d_model)), bk=u(ks[3], (1, d_model)),
        wv=u(ks[4], (d_model, d_model)), bv=u(ks[5], (1, d_model)),
        wo=u(ks[6], (d_model, d_model)), bo=u(ks[7], (1, d_model)),
    )


# ----------------------------------------------------------------------------
# Pure-JAX reference (for a correctness sanity check)
# ----------------------------------------------------------------------------
def reference_forward(x, params, *, num_experts, num_lookup_subsequences, heads):
    bsz, total_len, d_model = x.shape
    L = total_len // num_experts
    d_k = d_model // heads
    main = x.reshape(bsz, num_experts, L, d_model)

    xs = jnp.sum(main, axis=2)
    s = jnp.einsum("bed,bfd->bef", xs, xs) / math.sqrt(d_model)
    tri = jnp.triu(jnp.ones((num_experts, num_experts)), 1)
    s = jnp.where(tri == 1, NEG_INF, s)
    s = jax.nn.softmax(s, axis=-1)
    s = jnp.where(jnp.eye(num_experts) == 1, 0.0, s)
    _, idx = jax.lax.top_k(s, num_lookup_subsequences)

    lookup = jnp.take_along_axis(main, idx[:, :, 0][:, :, None, None], axis=1)
    lookup = lookup.at[:, 0].set(0.0)
    kv = jnp.concatenate([main, lookup], axis=2)

    def lin(t, w, b):
        return t @ w + b

    q = lin(main, params["wq"], params["bq"]).reshape(bsz, num_experts, L, heads, d_k)
    k = lin(kv, params["wk"], params["bk"]).reshape(bsz, num_experts, 2 * L, heads, d_k)
    v = lin(kv, params["wv"], params["bv"]).reshape(bsz, num_experts, 2 * L, heads, d_k)
    q, k, v = (jnp.swapaxes(t, 2, 3) for t in (q, k, v))

    sc = jnp.einsum("behld,behsd->behls", q, k) / math.sqrt(d_k)
    row = jnp.arange(L)[:, None]
    col = jnp.arange(2 * L)[None, :]
    sc = jnp.where((col < L) & (col > row), NEG_INF, sc)
    p = jax.nn.softmax(sc, axis=-1)
    o = jnp.einsum("behls,behsd->behld", p, v)
    o = jnp.swapaxes(o, 2, 3).reshape(bsz, num_experts, L, d_model)
    o = lin(o, params["wo"], params["bo"])
    return o.reshape(bsz, num_experts * L, d_model)


if __name__ == "__main__":
    # small config: num_lookup_subsequences=1, num_experts=4, heads=4, d_model=32,
    # subseq_len=8  ->  x: (2, 32, 32)
    bsz, num_experts, subseq_len, d_model, heads, num_lookup = 2, 4, 8, 32, 4, 1

    key = jax.random.PRNGKey(0)
    kx, kp = jax.random.split(key)
    x = jax.random.normal(kx, (bsz, num_experts * subseq_len, d_model), jnp.float32)
    params = init_params(kp, d_model)

    out = sparse_multi_head_attention(
        x, params, num_experts=num_experts,
        num_lookup_subsequences=num_lookup, heads=heads)
    out = jax.block_until_ready(out)

    ref = reference_forward(
        x, params, num_experts=num_experts,
        num_lookup_subsequences=num_lookup, heads=heads)
    ref = jax.block_until_ready(ref)

    assert out.shape == (bsz, num_experts * subseq_len, d_model)
    assert jnp.allclose(out, ref, atol=1e-3, rtol=1e-3), (
        float(jnp.max(jnp.abs(out - ref))))
    print("KERNEL_OK")
</pallas_src>

<mosaic_0001>
module attributes {stable_mosaic.version = 11 : i64} {
  func.func @_fused_sparse_mha_kernel(%arg0: i32, %arg1: memref<2x32x32xf32, #tpu.memory_space<vmem>>, %arg2: memref<32x32xf32, #tpu.memory_space<vmem>>, %arg3: memref<1x32xf32, #tpu.memory_space<vmem>>, %arg4: memref<32x32xf32, #tpu.memory_space<vmem>>, %arg5: memref<1x32xf32, #tpu.memory_space<vmem>>, %arg6: memref<32x32xf32, #tpu.memory_space<vmem>>, %arg7: memref<1x32xf32, #tpu.memory_space<vmem>>, %arg8: memref<32x32xf32, #tpu.memory_space<vmem>>, %arg9: memref<1x32xf32, #tpu.memory_space<vmem>>, %arg10: memref<2x32x32xf32, #tpu.memory_space<vmem>>) attributes {dimension_semantics = [#tpu.dimension_semantics<arbitrary>], iteration_bounds = array<i64: 1>, scalar_prefetch = 0 : i64, scratch_operands = 0 : i64, tpu.core_type = #tpu.core_type<tc>, window_params = [{transform_indices = @transform_0, window_bounds = array<i64: 2, 32, 32>}, {pipeline_mode = #tpu.pipeline_mode<synchronous>, transform_indices = @transform_1, window_bounds = array<i64: 32, 32>}, {pipeline_mode = #tpu.pipeline_mode<synchronous>, transform_indices = @transform_2, window_bounds = array<i64: 1, 32>}, {pipeline_mode = #tpu.pipeline_mode<synchronous>, transform_indices = @transform_3, window_bounds = array<i64: 32, 32>}, {pipeline_mode = #tpu.pipeline_mode<synchronous>, transform_indices = @transform_4, window_bounds = array<i64: 1, 32>}, {pipeline_mode = #tpu.pipeline_mode<synchronous>, transform_indices = @transform_5, window_bounds = array<i64: 32, 32>}, {pipeline_mode = #tpu.pipeline_mode<synchronous>, transform_indices = @transform_6, window_bounds = array<i64: 1, 32>}, {pipeline_mode = #tpu.pipeline_mode<synchronous>, transform_indices = @transform_7, window_bounds = array<i64: 32, 32>}, {pipeline_mode = #tpu.pipeline_mode<synchronous>, transform_indices = @transform_8, window_bounds = array<i64: 1, 32>}, {transform_indices = @transform_9, window_bounds = array<i64: 2, 32, 32>}]} {
    %0 = tpu.iota {dimensions = array<i32: 0>} : vector<4x4xi32>
    %1 = tpu.iota {dimensions = array<i32: 1>} : vector<4x4xi32>
    %2 = tpu.iota {dimensions = array<i32: 0>} : vector<8x8xi32>
    %3 = tpu.iota {dimensions = array<i32: 1>} : vector<8x8xi32>
    %4 = arith.cmpi sgt, %3, %2 : vector<8x8xi32>
    %5 = vector.shape_cast %4 : vector<8x8xi1> to vector<1x8x8xi1>
    %6 = vector.shape_cast %5 : vector<1x8x8xi1> to vector<1x8x8xi1>
    %7 = vector.broadcast %6 : vector<1x8x8xi1> to vector<4x8x8xi1>
    %c0 = arith.constant 0 : index
    %c0_0 = arith.constant 0 : index
    %c0_1 = arith.constant 0 : index
    %8 = vector.load %arg1[%c0, %c0_0, %c0_1] : memref<2x32x32xf32, #tpu.memory_space<vmem>>, vector<2x32x32xf32>
    %9 = vector.shape_cast %8 : vector<2x32x32xf32> to vector<64x32xf32>
    %c0_2 = arith.constant 0 : index
    %c0_3 = arith.constant 0 : index
    %10 = vector.load %arg2[%c0_2, %c0_3] : memref<32x32xf32, #tpu.memory_space<vmem>>, vector<32x32xf32>
    %cst = arith.constant dense<0.000000e+00> : vector<64x32xf32>
    %11 = tpu.matmul %9, %10, %cst {dimension_numbers = #tpu.dot_dimension_numbers<[1], [0], [0], [1], [0, 0, 1, 1], [], []>} : vector<64x32xf32>, vector<32x32xf32>, vector<64x32xf32> -> vector<64x32xf32>
    %c0_4 = arith.constant 0 : index
    %c0_5 = arith.constant 0 : index
    %12 = vector.load %arg3[%c0_4, %c0_5] : memref<1x32xf32, #tpu.memory_space<vmem>>, vector<1x32xf32>
    %13 = vector.broadcast %12 : vector<1x32xf32> to vector<64x32xf32>
    %14 = arith.addf %11, %13 : vector<64x32xf32>
    %cst_6 = arith.constant 0.353553385 : f32
    %15 = vector.broadcast %cst_6 : f32 to vector<64x32xf32>
    %16 = arith.mulf %14, %15 : vector<64x32xf32>
    %c0_7 = arith.constant 0 : index
    %c0_8 = arith.constant 0 : index
    %17 = vector.load %arg4[%c0_7, %c0_8] : memref<32x32xf32, #tpu.memory_space<vmem>>, vector<32x32xf32>
    %cst_9 = arith.constant dense<0.000000e+00> : vector<64x32xf32>
    %18 = tpu.matmul %9, %17, %cst_9 {dimension_numbers = #tpu.dot_dimension_numbers<[1], [0], [0], [1], [0, 0, 1, 1], [], []>} : vector<64x32xf32>, vector<32x32xf32>, vector<64x32xf32> -> vector<64x32xf32>
    %c0_10 = arith.constant 0 : index
    %c0_11 = arith.constant 0 : index
    %19 = vector.load %arg6[%c0_10, %c0_11] : memref<32x32xf32, #tpu.memory_space<vmem>>, vector<32x32xf32>
    %cst_12 = arith.constant dense<0.000000e+00> : vector<64x32xf32>
    %20 = tpu.matmul %9, %19, %cst_12 {dimension_numbers = #tpu.dot_dimension_numbers<[1], [0], [0], [1], [0, 0, 1, 1], [], []>} : vector<64x32xf32>, vector<32x32xf32>, vector<64x32xf32> -> vector<64x32xf32>
    %21 = vector.extract_strided_slice %9 {offsets = [0, 0], sizes = [32, 32], strides = [1, 1]} : vector<64x32xf32> to vector<32x32xf32>
    %22 = vector.shape_cast %21 : vector<32x32xf32> to vector<4x8x32xf32>
    %23 = vector.extract_strided_slice %16 {offsets = [0, 0], sizes = [32, 32], strides = [1, 1]} : vector<64x32xf32> to vector<32x32xf32>
    %24 = vector.shape_cast %23 : vector<32x32xf32> to vector<4x8x32xf32>
    %25 = vector.extract_strided_slice %18 {offsets = [0, 0], sizes = [32, 32], strides = [1, 1]} : vector<64x32xf32> to vector<32x32xf32>
    %26 = vector.shape_cast %25 : vector<32x32xf32> to vector<4x8x32xf32>
    %27 = vector.extract_strided_slice %20 {offsets = [0, 0], sizes = [32, 32], strides = [1, 1]} : vector<64x32xf32> to vector<32x32xf32>
    %28 = vector.shape_cast %27 : vector<32x32xf32> to vector<4x8x32xf32>
    %cst_13 = arith.constant dense<0.000000e+00> : vector<4x32xf32>
    %29 = vector.multi_reduction <add>, %22, %cst_13 [1] : vector<4x8x32xf32> to vector<4x32xf32>
    %cst_14 = arith.constant dense<0.000000e+00> : vector<4x4xf32>
    %30 = tpu.matmul %29, %29, %cst_14 {dimension_numbers = #tpu.dot_dimension_numbers<[1], [1], [0], [0], [0, 0, 1, 0], [], []>} : vector<4x32xf32>, vector<4x32xf32>, vector<4x4xf32> -> vector<4x4xf32>
    %cst_15 = arith.constant 0.176776692 : f32
    %31 = vector.broadcast %cst_15 : f32 to vector<4x4xf32>
    %32 = arith.mulf %30, %31 : vector<4x4xf32>
    %33 = arith.cmpi sgt, %1, %0 : vector<4x4xi32>
    %cst_16 = arith.constant -1.000000e+09 : f32
    %34 = vector.broadcast %cst_16 : f32 to vector<4x4xf32>
    %35 = arith.select %33, %34, %32 : vector<4x4xi1>, vector<4x4xf32>
    %cst_17 = arith.constant dense<0xFF800000> : vector<4xf32>
    %36 = vector.multi_reduction <maximumf>, %35, %cst_17 [1] : vector<4x4xf32> to vector<4xf32>
    %37 = vector.shape_cast %36 : vector<4xf32> to vector<4x1xf32>
    %38 = vector.broadcast %37 : vector<4x1xf32> to vector<4x4xf32>
    %39 = arith.subf %35, %38 : vector<4x4xf32>
    %40 = math.exp %39 : vector<4x4xf32>
    %41 = arith.cmpi eq, %1, %0 : vector<4x4xi32>
    %cst_18 = arith.constant 0.000000e+00 : f32
    %42 = vector.broadcast %cst_18 : f32 to vector<4x4xf32>
    %43 = arith.select %41, %42, %40 : vector<4x4xi1>, vector<4x4xf32>
    %cst_19 = arith.constant dense<0xFF800000> : vector<4xf32>
    %44 = vector.multi_reduction <maximumf>, %43, %cst_19 [1] : vector<4x4xf32> to vector<4xf32>
    %45 = vector.shape_cast %44 : vector<4xf32> to vector<4x1xf32>
    %46 = vector.broadcast %45 : vector<4x1xf32> to vector<4x4xf32>
    %47 = arith.cmpf oeq, %43, %46 : vector<4x4xf32>
    %c4_i32 = arith.constant 4 : i32
    %48 = vector.broadcast %c4_i32 : i32 to vector<4x4xi32>
    %49 = arith.select %47, %1, %48 : vector<4x4xi1>, vector<4x4xi32>
    %cst_20 = arith.constant dense<2147483647> : vector<4xi32>
    %50 = vector.multi_reduction <minsi>, %49, %cst_20 [1] : vector<4x4xi32> to vector<4xi32>
    %51 = vector.shape_cast %50 : vector<4xi32> to vector<4x1xi32>
    %52 = vector.broadcast %51 : vector<4x1xi32> to vector<4x4xi32>
    %53 = arith.cmpi eq, %1, %52 : vector<4x4xi32>
    %c0_i32 = arith.constant 0 : i32
    %54 = vector.broadcast %c0_i32 : i32 to vector<4x4xi32>
    %55 = arith.cmpi sgt, %0, %54 : vector<4x4xi32>
    %56 = arith.andi %53, %55 : vector<4x4xi1>
    %cst_21 = arith.constant 1.000000e+00 : f32
    %cst_22 = arith.constant 0.000000e+00 : f32
    %57 = vector.broadcast %cst_21 : f32 to vector<4x4xf32>
    %58 = vector.broadcast %cst_22 : f32 to vector<4x4xf32>
    %59 = arith.select %56, %57, %58 : vector<4x4xi1>, vector<4x4xf32>
    %cst_23 = arith.constant 0.000000e+00 : f32
    %60 = vector.broadcast %cst_23 : f32 to vector<4x8x32xf32>
    %cst_24 = arith.constant 0.000000e+00 : f32
    %61 = vector.broadcast %cst_24 : f32 to vector<4x8x32xf32>
    %62 = vector.extract_strided_slice %59 {offsets = [0, 0], sizes = [4, 1], strides = [1, 1]} : vector<4x4xf32> to vector<4x1xf32>
    %63 = vector.shape_cast %62 : vector<4x1xf32> to vector<4x1x1xf32>
    %64 = vector.extract_strided_slice %26 {offsets = [0, 0, 0], sizes = [1, 8, 32], strides = [1, 1, 1]} : vector<4x8x32xf32> to vector<1x8x32xf32>
    %65 = vector.broadcast %63 : vector<4x1x1xf32> to vector<4x8x32xf32>
    %66 = vector.broadcast %64 : vector<1x8x32xf32> to vector<4x8x32xf32>
    %67 = arith.mulf %65, %66 : vector<4x8x32xf32>
    %68 = arith.addf %60, %67 : vector<4x8x32xf32>
    %69 = vector.extract_strided_slice %28 {offsets = [0, 0, 0], sizes = [1, 8, 32], strides = [1, 1, 1]} : vector<4x8x32xf32> to vector<1x8x32xf32>
    %70 = vector.broadcast %63 : vector<4x1x1xf32> to vector<4x8x32xf32>
    %71 = vector.broadcast %69 : vector<1x8x32xf32> to vector<4x8x32xf32>
    %72 = arith.mulf %70, %71 : vector<4x8x32xf32>
    %73 = arith.addf %61, %72 : vector<4x8x32xf32>
    %74 = vector.extract_strided_slice %59 {offsets = [0, 1], sizes = [4, 1], strides = [1, 1]} : vector<4x4xf32> to vector<4x1xf32>
    %75 = vector.shape_cast %74 : vector<4x1xf32> to vector<4x1x1xf32>
    %76 = vector.extract_strided_slice %26 {offsets = [1, 0, 0], sizes = [1, 8, 32], strides = [1, 1, 1]} : vector<4x8x32xf32> to vector<1x8x32xf32>
    %77 = vector.broadcast %75 : vector<4x1x1xf32> to vector<4x8x32xf32>
    %78 = vector.broadcast %76 : vector<1x8x32xf32> to vector<4x8x32xf32>
    %79 = arith.mulf %77, %78 : vector<4x8x32xf32>
    %80 = arith.addf %68, %79 : vector<4x8x32xf32>
    %81 = vector.extract_strided_slice %28 {offsets = [1, 0, 0], sizes = [1, 8, 32], strides = [1, 1, 1]} : vector<4x8x32xf32> to vector<1x8x32xf32>
    %82 = vector.broadcast %75 : vector<4x1x1xf32> to vector<4x8x32xf32>
    %83 = vector.broadcast %81 : vector<1x8x32xf32> to vector<4x8x32xf32>
    %84 = arith.mulf %82, %83 : vector<4x8x32xf32>
    %85 = arith.addf %73, %84 : vector<4x8x32xf32>
    %86 = vector.extract_strided_slice %59 {offsets = [0, 2], sizes = [4, 1], strides = [1, 1]} : vector<4x4xf32> to vector<4x1xf32>
    %87 = vector.shape_cast %86 : vector<4x1xf32> to vector<4x1x1xf32>
    %88 = vector.extract_strided_slice %26 {offsets = [2, 0, 0], sizes = [1, 8, 32], strides = [1, 1, 1]} : vector<4x8x32xf32> to vector<1x8x32xf32>
    %89 = vector.broadcast %87 : vector<4x1x1xf32> to vector<4x8x32xf32>
    %90 = vector.broadcast %88 : vector<1x8x32xf32> to vector<4x8x32xf32>
    %91 = arith.mulf %89, %90 : vector<4x8x32xf32>
    %92 = arith.addf %80, %91 : vector<4x8x32xf32>
    %93 = vector.extract_strided_slice %28 {offsets = [2, 0, 0], sizes = [1, 8, 32], strides = [1, 1, 1]} : vector<4x8x32xf32> to vector<1x8x32xf32>
    %94 = vector.broadcast %87 : vector<4x1x1xf32> to vector<4x8x32xf32>
    %95 = vector.broadcast %93 : vector<1x8x32xf32> to vector<4x8x32xf32>
    %96 = arith.mulf %94, %95 : vector<4x8x32xf32>
    %97 = arith.addf %85, %96 : vector<4x8x32xf32>
    %98 = vector.extract_strided_slice %59 {offsets = [0, 3], sizes = [4, 1], strides = [1, 1]} : vector<4x4xf32> to vector<4x1xf32>
    %99 = vector.shape_cast %98 : vector<4x1xf32> to vector<4x1x1xf32>
    %100 = vector.extract_strided_slice %26 {offsets = [3, 0, 0], sizes = [1, 8, 32], strides = [1, 1, 1]} : vector<4x8x32xf32> to vector<1x8x32xf32>
    %101 = vector.broadcast %99 : vector<4x1x1xf32> to vector<4x8x32xf32>
    %102 = vector.broadcast %100 : vector<1x8x32xf32> to vector<4x8x32xf32>
    %103 = arith.mulf %101, %102 : vector<4x8x32xf32>
    %104 = arith.addf %92, %103 : vector<4x8x32xf32>
    %105 = vector.extract_strided_slice %28 {offsets = [3, 0, 0], sizes = [1, 8, 32], strides = [1, 1, 1]} : vector<4x8x32xf32> to vector<1x8x32xf32>
    %106 = vector.broadcast %99 : vector<4x1x1xf32> to vector<4x8x32xf32>
    %107 = vector.broadcast %105 : vector<1x8x32xf32> to vector<4x8x32xf32>
    %108 = arith.mulf %106, %107 : vector<4x8x32xf32>
    %109 = arith.addf %97, %108 : vector<4x8x32xf32>
    %c0_25 = arith.constant 0 : index
    %c0_26 = arith.constant 0 : index
    %110 = vector.load %arg5[%c0_25, %c0_26] : memref<1x32xf32, #tpu.memory_space<vmem>>, vector<1x32xf32>
    %111 = vector.shape_cast %110 : vector<1x32xf32> to vector<1x1x32xf32>
    %112 = vector.broadcast %111 : vector<1x1x32xf32> to vector<4x8x32xf32>
    %113 = arith.addf %26, %112 : vector<4x8x32xf32>
    %c0_27 = arith.constant 0 : index
    %c0_28 = arith.constant 0 : index
    %114 = vector.load %arg7[%c0_27, %c0_28] : memref<1x32xf32, #tpu.memory_space<vmem>>, vector<1x32xf32>
    %115 = vector.shape_cast %114 : vector<1x32xf32> to vector<1x1x32xf32>
    %116 = vector.broadcast %115 : vector<1x1x32xf32> to vector<4x8x32xf32>
    %117 = arith.addf %28, %116 : vector<4x8x32xf32>
    %c0_29 = arith.constant 0 : index
    %c0_30 = arith.constant 0 : index
    %118 = vector.load %arg5[%c0_29, %c0_30] : memref<1x32xf32, #tpu.memory_space<vmem>>, vector<1x32xf32>
    %119 = vector.shape_cast %118 : vector<1x32xf32> to vector<1x1x32xf32>
    %120 = vector.broadcast %119 : vector<1x1x32xf32> to vector<4x8x32xf32>
    %121 = arith.addf %104, %120 : vector<4x8x32xf32>
    %c0_31 = arith.constant 0 : index
    %c0_32 = arith.constant 0 : index
    %122 = vector.load %arg7[%c0_31, %c0_32] : memref<1x32xf32, #tpu.memory_space<vmem>>, vector<1x32xf32>
    %123 = vector.shape_cast %122 : vector<1x32xf32> to vector<1x1x32xf32>
    %124 = vector.broadcast %123 : vector<1x1x32xf32> to vector<4x8x32xf32>
    %125 = arith.addf %109, %124 : vector<4x8x32xf32>
    %126 = vector.extract_strided_slice %24 {offsets = [0, 0, 0], sizes = [4, 8, 8], strides = [1, 1, 1]} : vector<4x8x32xf32> to vector<4x8x8xf32>
    %127 = vector.extract_strided_slice %113 {offsets = [0, 0, 0], sizes = [4, 8, 8], strides = [1, 1, 1]} : vector<4x8x32xf32> to vector<4x8x8xf32>
    %cst_33 = arith.constant dense<0.000000e+00> : vector<4x8x8xf32>
    %128 = tpu.matmul %126, %127, %cst_33 {dimension_numbers = #tpu.dot_dimension_numbers<[2], [2], [1], [1], [0, 0, 0, 1, 1, 1], [0], [0]>} : vector<4x8x8xf32>, vector<4x8x8xf32>, vector<4x8x8xf32> -> vector<4x8x8xf32>
    %cst_34 = arith.constant -1.000000e+09 : f32
    %129 = vector.broadcast %cst_34 : f32 to vector<4x8x8xf32>
    %130 = arith.select %7, %129, %128 : vector<4x8x8xi1>, vector<4x8x8xf32>
    %131 = vector.extract_strided_slice %121 {offsets = [0, 0, 0], sizes = [4, 8, 8], strides = [1, 1, 1]} : vector<4x8x32xf32> to vector<4x8x8xf32>
    %cst_35 = arith.constant dense<0.000000e+00> : vector<4x8x8xf32>
    %132 = tpu.matmul %126, %131, %cst_35 {dimension_numbers = #tpu.dot_dimension_numbers<[2], [2], [1], [1], [0, 0, 0, 1, 1, 1], [0], [0]>} : vector<4x8x8xf32>, vector<4x8x8xf32>, vector<4x8x8xf32> -> vector<4x8x8xf32>
    %cst_36 = arith.constant dense<0xFF800000> : vector<4x8xf32>
    %133 = vector.multi_reduction <maximumf>, %130, %cst_36 [2] : vector<4x8x8xf32> to vector<4x8xf32>
    %134 = vector.shape_cast %133 : vector<4x8xf32> to vector<4x8x1xf32>
    %cst_37 = arith.constant dense<0xFF800000> : vector<4x8xf32>
    %135 = vector.multi_reduction <maximumf>, %132, %cst_37 [2] : vector<4x8x8xf32> to vector<4x8xf32>
    %136 = vector.shape_cast %135 : vector<4x8xf32> to vector<4x8x1xf32>
    %137 = arith.maximumf %134, %136 : vector<4x8x1xf32>
    %138 = vector.broadcast %137 : vector<4x8x1xf32> to vector<4x8x8xf32>
    %139 = arith.subf %130, %138 : vector<4x8x8xf32>
    %140 = math.exp %139 : vector<4x8x8xf32>
    %141 = vector.broadcast %137 : vector<4x8x1xf32> to vector<4x8x8xf32>
    %142 = arith.subf %132, %141 : vector<4x8x8xf32>
    %143 = math.exp %142 : vector<4x8x8xf32>
    %cst_38 = arith.constant dense<0.000000e+00> : vector<4x8xf32>
    %144 = vector.multi_reduction <add>, %140, %cst_38 [2] : vector<4x8x8xf32> to vector<4x8xf32>
    %145 = vector.shape_cast %144 : vector<4x8xf32> to vector<4x8x1xf32>
    %cst_39 = arith.constant dense<0.000000e+00> : vector<4x8xf32>
    %146 = vector.multi_reduction <add>, %143, %cst_39 [2] : vector<4x8x8xf32> to vector<4x8xf32>
    %147 = vector.shape_cast %146 : vector<4x8xf32> to vector<4x8x1xf32>
    %148 = arith.addf %145, %147 : vector<4x8x1xf32>
    %149 = tpu.reciprocal %148 {approx = true} : vector<4x8x1xf32> -> vector<4x8x1xf32>
    %150 = vector.extract_strided_slice %117 {offsets = [0, 0, 0], sizes = [4, 8, 8], strides = [1, 1, 1]} : vector<4x8x32xf32> to vector<4x8x8xf32>
    %cst_40 = arith.constant dense<0.000000e+00> : vector<4x8x8xf32>
    %151 = tpu.matmul %140, %150, %cst_40 {dimension_numbers = #tpu.dot_dimension_numbers<[2], [1], [1], [2], [0, 0, 0, 1, 1, 2], [0], [0]>} : vector<4x8x8xf32>, vector<4x8x8xf32>, vector<4x8x8xf32> -> vector<4x8x8xf32>
    %152 = vector.extract_strided_slice %125 {offsets = [0, 0, 0], sizes = [4, 8, 8], strides = [1, 1, 1]} : vector<4x8x32xf32> to vector<4x8x8xf32>
    %cst_41 = arith.constant dense<0.000000e+00> : vector<4x8x8xf32>
    %153 = tpu.matmul %143, %152, %cst_41 {dimension_numbers = #tpu.dot_dimension_numbers<[2], [1], [1], [2], [0, 0, 0, 1, 1, 2], [0], [0]>} : vector<4x8x8xf32>, vector<4x8x8xf32>, vector<4x8x8xf32> -> vector<4x8x8xf32>
    %154 = arith.addf %151, %153 : vector<4x8x8xf32>
    %155 = vector.broadcast %149 : vector<4x8x1xf32> to vector<4x8x8xf32>
    %156 = arith.mulf %154, %155 : vector<4x8x8xf32>
    %157 = vector.extract_strided_slice %24 {offsets = [0, 0, 8], sizes = [4, 8, 8], strides = [1, 1, 1]} : vector<4x8x32xf32> to vector<4x8x8xf32>
    %158 = vector.extract_strided_slice %113 {offsets = [0, 0, 8], sizes = [4, 8, 8], strides = [1, 1, 1]} : vector<4x8x32xf32> to vector<4x8x8xf32>
    %cst_42 = arith.constant dense<0.000000e+00> : vector<4x8x8xf32>
    %159 = tpu.matmul %157, %158, %cst_42 {dimension_numbers = #tpu.dot_dimension_numbers<[2], [2], [1], [1], [0, 0, 0, 1, 1, 1], [0], [0]>} : vector<4x8x8xf32>, vector<4x8x8xf32>, vector<4x8x8xf32> -> vector<4x8x8xf32>
    %cst_43 = arith.constant -1.000000e+09 : f32
    %160 = vector.broadcast %cst_43 : f32 to vector<4x8x8xf32>
    %161 = arith.select %7, %160, %159 : vector<4x8x8xi1>, vector<4x8x8xf32>
    %162 = vector.extract_strided_slice %121 {offsets = [0, 0, 8], sizes = [4, 8, 8], strides = [1, 1, 1]} : vector<4x8x32xf32> to vector<4x8x8xf32>
    %cst_44 = arith.constant dense<0.000000e+00> : vector<4x8x8xf32>
    %163 = tpu.matmul %157, %162, %cst_44 {dimension_numbers = #tpu.dot_dimension_numbers<[2], [2], [1], [1], [0, 0, 0, 1, 1, 1], [0], [0]>} : vector<4x8x8xf32>, vector<4x8x8xf32>, vector<4x8x8xf32> -> vector<4x8x8xf32>
    %cst_45 = arith.constant dense<0xFF800000> : vector<4x8xf32>
    %164 = vector.multi_reduction <maximumf>, %161, %cst_45 [2] : vector<4x8x8xf32> to vector<4x8xf32>
    %165 = vector.shape_cast %164 : vector<4x8xf32> to vector<4x8x1xf32>
    %cst_46 = arith.constant dense<0xFF800000> : vector<4x8xf32>
    %166 = vector.multi_reduction <maximumf>, %163, %cst_46 [2] : vector<4x8x8xf32> to vector<4x8xf32>
    %167 = vector.shape_cast %166 : vector<4x8xf32> to vector<4x8x1xf32>
    %168 = arith.maximumf %165, %167 : vector<4x8x1xf32>
    %169 = vector.broadcast %168 : vector<4x8x1xf32> to vector<4x8x8xf32>
    %170 = arith.subf %161, %169 : vector<4x8x8xf32>
    %171 = math.exp %170 : vector<4x8x8xf32>
    %172 = vector.broadcast %168 : vector<4x8x1xf32> to vector<4x8x8xf32>
    %173 = arith.subf %163, %172 : vector<4x8x8xf32>
    %174 = math.exp %173 : vector<4x8x8xf32>
    %cst_47 = arith.constant dense<0.000000e+00> : vector<4x8xf32>
    %175 = vector.multi_reduction <add>, %171, %cst_47 [2] : vector<4x8x8xf32> to vector<4x8xf32>
    %176 = vector.shape_cast %175 : vector<4x8xf32> to vector<4x8x1xf32>
    %cst_48 = arith.constant dense<0.000000e+00> : vector<4x8xf32>
    %177 = vector.multi_reduction <add>, %174, %cst_48 [2] : vector<4x8x8xf32> to vector<4x8xf32>
    %178 = vector.shape_cast %177 : vector<4x8xf32> to vector<4x8x1xf32>
    %179 = arith.addf %176, %178 : vector<4x8x1xf32>
    %180 = tpu.reciprocal %179 {approx = true} : vector<4x8x1xf32> -> vector<4x8x1xf32>
    %181 = vector.extract_strided_slice %117 {offsets = [0, 0, 8], sizes = [4, 8, 8], strides = [1, 1, 1]} : vector<4x8x32xf32> to vector<4x8x8xf32>
    %cst_49 = arith.constant dense<0.000000e+00> : vector<4x8x8xf32>
    %182 = tpu.matmul %171, %181, %cst_49 {dimension_numbers = #tpu.dot_dimension_numbers<[2], [1], [1], [2], [0, 0, 0, 1, 1, 2], [0], [0]>} : vector<4x8x8xf32>, vector<4x8x8xf32>, vector<4x8x8xf32> -> vector<4x8x8xf32>
    %183 = vector.extract_strided_slice %125 {offsets = [0, 0, 8], sizes = [4, 8, 8], strides = [1, 1, 1]} : vector<4x8x32xf32> to vector<4x8x8xf32>
    %cst_50 = arith.constant dense<0.000000e+00> : vector<4x8x8xf32>
    %184 = tpu.matmul %174, %183, %cst_50 {dimension_numbers = #tpu.dot_dimension_numbers<[2], [1], [1], [2], [0, 0, 0, 1, 1, 2], [0], [0]>} : vector<4x8x8xf32>, vector<4x8x8xf32>, vector<4x8x8xf32> -> vector<4x8x8xf32>
    %185 = arith.addf %182, %184 : vector<4x8x8xf32>
    %186 = vector.broadcast %180 : vector<4x8x1xf32> to vector<4x8x8xf32>
    %187 = arith.mulf %185, %186 : vector<4x8x8xf32>
    %188 = vector.extract_strided_slice %24 {offsets = [0, 0, 16], sizes = [4, 8, 8], strides = [1, 1, 1]} : vector<4x8x32xf32> to vector<4x8x8xf32>
    %189 = vector.extract_strided_slice %113 {offsets = [0, 0, 16], sizes = [4, 8, 8], strides = [1, 1, 1]} : vector<4x8x32xf32> to vector<4x8x8xf32>
    %cst_51 = arith.constant dense<0.000000e+00> : vector<4x8x8xf32>
    %190 = tpu.matmul %188, %189, %cst_51 {dimension_numbers = #tpu.dot_dimension_numbers<[2], [2], [1], [1], [0, 0, 0, 1, 1, 1], [0], [0]>} : vector<4x8x8xf32>, vector<4x8x8xf32>, vector<4x8x8xf32> -> vector<4x8x8xf32>
    %cst_52 = arith.constant -1.000000e+09 : f32
    %191 = vector.broadcast %cst_52 : f32 to vector<4x8x8xf32>
    %192 = arith.select %7, %191, %190 : vector<4x8x8xi1>, vector<4x8x8xf32>
    %193 = vector.extract_strided_slice %121 {offsets = [0, 0, 16], sizes = [4, 8, 8], strides = [1, 1, 1]} : vector<4x8x32xf32> to vector<4x8x8xf32>
    %cst_53 = arith.constant dense<0.000000e+00> : vector<4x8x8xf32>
    %194 = tpu.matmul %188, %193, %cst_53 {dimension_numbers = #tpu.dot_dimension_numbers<[2], [2], [1], [1], [0, 0, 0, 1, 1, 1], [0], [0]>} : vector<4x8x8xf32>, vector<4x8x8xf32>, vector<4x8x8xf32> -> vector<4x8x8xf32>
    %cst_54 = arith.constant dense<0xFF800000> : vector<4x8xf32>
    %195 = vector.multi_reduction <maximumf>, %192, %cst_54 [2] : vector<4x8x8xf32> to vector<4x8xf32>
    %196 = vector.shape_cast %195 : vector<4x8xf32> to vector<4x8x1xf32>
    %cst_55 = arith.constant dense<0xFF800000> : vector<4x8xf32>
    %197 = vector.multi_reduction <maximumf>, %194, %cst_55 [2] : vector<4x8x8xf32> to vector<4x8xf32>
    %198 = vector.shape_cast %197 : vector<4x8xf32> to vector<4x8x1xf32>
    %199 = arith.maximumf %196, %198 : vector<4x8x1xf32>
    %200 = vector.broadcast %199 : vector<4x8x1xf32> to vector<4x8x8xf32>
    %201 = arith.subf %192, %200 : vector<4x8x8xf32>
    %202 = math.exp %201 : vector<4x8x8xf32>
    %203 = vector.broadcast %199 : vector<4x8x1xf32> to vector<4x8x8xf32>
    %204 = arith.subf %194, %203 : vector<4x8x8xf32>
    %205 = math.exp %204 : vector<4x8x8xf32>
    %cst_56 = arith.constant dense<0.000000e+00> : vector<4x8xf32>
    %206 = vector.multi_reduction <add>, %202, %cst_56 [2] : vector<4x8x8xf32> to vector<4x8xf32>
    %207 = vector.shape_cast %206 : vector<4x8xf32> to vector<4x8x1xf32>
    %cst_57 = arith.constant dense<0.000000e+00> : vector<4x8xf32>
    %208 = vector.multi_reduction <add>, %205, %cst_57 [2] : vector<4x8x8xf32> to vector<4x8xf32>
    %209 = vector.shape_cast %208 : vector<4x8xf32> to vector<4x8x1xf32>
    %210 = arith.addf %207, %209 : vector<4x8x1xf32>
    %211 = tpu.reciprocal %210 {approx = true} : vector<4x8x1xf32> -> vector<4x8x1xf32>
    %212 = vector.extract_strided_slice %117 {offsets = [0, 0, 16], sizes = [4, 8, 8], strides = [1, 1, 1]} : vector<4x8x32xf32> to vector<4x8x8xf32>
    %cst_58 = arith.constant dense<0.000000e+00> : vector<4x8x8xf32>
    %213 = tpu.matmul %202, %212, %cst_58 {dimension_numbers = #tpu.dot_dimension_numbers<[2], [1], [1], [2], [0, 0, 0, 1, 1, 2], [0], [0]>} : vector<4x8x8xf32>, vector<4x8x8xf32>, vector<4x8x8xf32> -> vector<4x8x8xf32>
    %214 = vector.extract_strided_slice %125 {offsets = [0, 0, 16], sizes = [4, 8, 8], strides = [1, 1, 1]} : vector<4x8x32xf32> to vector<4x8x8xf32>
    %cst_59 = arith.constant dense<0.000000e+00> : vector<4x8x8xf32>
    %215 = tpu.matmul %205, %214, %cst_59 {dimension_numbers = #tpu.dot_dimension_numbers<[2], [1], [1], [2], [0, 0, 0, 1, 1, 2], [0], [0]>} : vector<4x8x8xf32>, vector<4x8x8xf32>, vector<4x8x8xf32> -> vector<4x8x8xf32>
    %216 = arith.addf %213, %215 : vector<4x8x8xf32>
    %217 = vector.broadcast %211 : vector<4x8x1xf32> to vector<4x8x8xf32>
    %218 = arith.mulf %216, %217 : vector<4x8x8xf32>
    %219 = vector.extract_strided_slice %24 {offsets = [0, 0, 24], sizes = [4, 8, 8], strides = [1, 1, 1]} : vector<4x8x32xf32> to vector<4x8x8xf32>
    %220 = vector.extract_strided_slice %113 {offsets = [0, 0, 24], sizes = [4, 8, 8], strides = [1, 1, 1]} : vector<4x8x32xf32> to vector<4x8x8xf32>
    %cst_60 = arith.constant dense<0.000000e+00> : vector<4x8x8xf32>
    %221 = tpu.matmul %219, %220, %cst_60 {dimension_numbers = #tpu.dot_dimension_numbers<[2], [2], [1], [1], [0, 0, 0, 1, 1, 1], [0], [0]>} : vector<4x8x8xf32>, vector<4x8x8xf32>, vector<4x8x8xf32> -> vector<4x8x8xf32>
    %cst_61 = arith.constant -1.000000e+09 : f32
    %222 = vector.broadcast %cst_61 : f32 to vector<4x8x8xf32>
    %223 = arith.select %7, %222, %221 : vector<4x8x8xi1>, vector<4x8x8xf32>
    %224 = vector.extract_strided_slice %121 {offsets = [0, 0, 24], sizes = [4, 8, 8], strides = [1, 1, 1]} : vector<4x8x32xf32> to vector<4x8x8xf32>
    %cst_62 = arith.constant dense<0.000000e+00> : vector<4x8x8xf32>
    %225 = tpu.matmul %219, %224, %cst_62 {dimension_numbers = #tpu.dot_dimension_numbers<[2], [2], [1], [1], [0, 0, 0, 1, 1, 1], [0], [0]>} : vector<4x8x8xf32>, vector<4x8x8xf32>, vector<4x8x8xf32> -> vector<4x8x8xf32>
    %cst_63 = arith.constant dense<0xFF800000> : vector<4x8xf32>
    %226 = vector.multi_reduction <maximumf>, %223, %cst_63 [2] : vector<4x8x8xf32> to vector<4x8xf32>
    %227 = vector.shape_cast %226 : vector<4x8xf32> to vector<4x8x1xf32>
    %cst_64 = arith.constant dense<0xFF800000> : vector<4x8xf32>
    %228 = vector.multi_reduction <maximumf>, %225, %cst_64 [2] : vector<4x8x8xf32> to vector<4x8xf32>
    %229 = vector.shape_cast %228 : vector<4x8xf32> to vector<4x8x1xf32>
    %230 = arith.maximumf %227, %229 : vector<4x8x1xf32>
    %231 = vector.broadcast %230 : vector<4x8x1xf32> to vector<4x8x8xf32>
    %232 = arith.subf %223, %231 : vector<4x8x8xf32>
    %233 = math.exp %232 : vector<4x8x8xf32>
    %234 = vector.broadcast %230 : vector<4x8x1xf32> to vector<4x8x8xf32>
    %235 = arith.subf %225, %234 : vector<4x8x8xf32>
    %236 = math.exp %235 : vector<4x8x8xf32>
    %cst_65 = arith.constant dense<0.000000e+00> : vector<4x8xf32>
    %237 = vector.multi_reduction <add>, %233, %cst_65 [2] : vector<4x8x8xf32> to vector<4x8xf32>
    %238 = vector.shape_cast %237 : vector<4x8xf32> to vector<4x8x1xf32>
    %cst_66 = arith.constant dense<0.000000e+00> : vector<4x8xf32>
    %239 = vector.multi_reduction <add>, %236, %cst_66 [2] : vector<4x8x8xf32> to vector<4x8xf32>
    %240 = vector.shape_cast %239 : vector<4x8xf32> to vector<4x8x1xf32>
    %241 = arith.addf %238, %240 : vector<4x8x1xf32>
    %242 = tpu.reciprocal %241 {approx = true} : vector<4x8x1xf32> -> vector<4x8x1xf32>
    %243 = vector.extract_strided_slice %117 {offsets = [0, 0, 24], sizes = [4, 8, 8], strides = [1, 1, 1]} : vector<4x8x32xf32> to vector<4x8x8xf32>
    %cst_67 = arith.constant dense<0.000000e+00> : vector<4x8x8xf32>
    %244 = tpu.matmul %233, %243, %cst_67 {dimension_numbers = #tpu.dot_dimension_numbers<[2], [1], [1], [2], [0, 0, 0, 1, 1, 2], [0], [0]>} : vector<4x8x8xf32>, vector<4x8x8xf32>, vector<4x8x8xf32> -> vector<4x8x8xf32>
    %245 = vector.extract_strided_slice %125 {offsets = [0, 0, 24], sizes = [4, 8, 8], strides = [1, 1, 1]} : vector<4x8x32xf32> to vector<4x8x8xf32>
    %cst_68 = arith.constant dense<0.000000e+00> : vector<4x8x8xf32>
    %246 = tpu.matmul %236, %245, %cst_68 {dimension_numbers = #tpu.dot_dimension_numbers<[2], [1], [1], [2], [0, 0, 0, 1, 1, 2], [0], [0]>} : vector<4x8x8xf32>, vector<4x8x8xf32>, vector<4x8x8xf32> -> vector<4x8x8xf32>
    %247 = arith.addf %244, %246 : vector<4x8x8xf32>
    %248 = vector.broadcast %242 : vector<4x8x1xf32> to vector<4x8x8xf32>
    %249 = arith.mulf %247, %248 : vector<4x8x8xf32>
    %250 = tpu.concatenate %156, %187, %218, %249 in 2 : vector<4x8x8xf32>, vector<4x8x8xf32>, vector<4x8x8xf32>, vector<4x8x8xf32> -> vector<4x8x32xf32>
    %251 = vector.shape_cast %250 : vector<4x8x32xf32> to vector<32x32xf32>
    %252 = vector.extract_strided_slice %9 {offsets = [32, 0], sizes = [32, 32], strides = [1, 1]} : vector<64x32xf32> to vector<32x32xf32>
    %253 = vector.shape_cast %252 : vector<32x32xf32> to vector<4x8x32xf32>
    %254 = vector.extract_strided_slice %16 {offsets = [32, 0], sizes = [32, 32], strides = [1, 1]} : vector<64x32xf32> to vector<32x32xf32>
    %255 = vector.shape_cast %254 : vector<32x32xf32> to vector<4x8x32xf32>
    %256 = vector.extract_strided_slice %18 {offsets = [32, 0], sizes = [32, 32], strides = [1, 1]} : vector<64x32xf32> to vector<32x32xf32>
    %257 = vector.shape_cast %256 : vector<32x32xf32> to vector<4x8x32xf32>
    %258 = vector.extract_strided_slice %20 {offsets = [32, 0], sizes = [32, 32], strides = [1, 1]} : vector<64x32xf32> to vector<32x32xf32>
    %259 = vector.shape_cast %258 : vector<32x32xf32> to vector<4x8x32xf32>
    %cst_69 = arith.constant dense<0.000000e+00> : vector<4x32xf32>
    %260 = vector.multi_reduction <add>, %253, %cst_69 [1] : vector<4x8x32xf32> to vector<4x32xf32>
    %cst_70 = arith.constant dense<0.000000e+00> : vector<4x4xf32>
    %261 = tpu.matmul %260, %260, %cst_70 {dimension_numbers = #tpu.dot_dimension_numbers<[1], [1], [0], [0], [0, 0, 1, 0], [], []>} : vector<4x32xf32>, vector<4x32xf32>, vector<4x4xf32> -> vector<4x4xf32>
    %cst_71 = arith.constant 0.176776692 : f32
    %262 = vector.broadcast %cst_71 : f32 to vector<4x4xf32>
    %263 = arith.mulf %261, %262 : vector<4x4xf32>
    %264 = arith.cmpi sgt, %1, %0 : vector<4x4xi32>
    %cst_72 = arith.constant -1.000000e+09 : f32
    %265 = vector.broadcast %cst_72 : f32 to vector<4x4xf32>
    %266 = arith.select %264, %265, %263 : vector<4x4xi1>, vector<4x4xf32>
    %cst_73 = arith.constant dense<0xFF800000> : vector<4xf32>
    %267 = vector.multi_reduction <maximumf>, %266, %cst_73 [1] : vector<4x4xf32> to vector<4xf32>
    %268 = vector.shape_cast %267 : vector<4xf32> to vector<4x1xf32>
    %269 = vector.broadcast %268 : vector<4x1xf32> to vector<4x4xf32>
    %270 = arith.subf %266, %269 : vector<4x4xf32>
    %271 = math.exp %270 : vector<4x4xf32>
    %272 = arith.cmpi eq, %1, %0 : vector<4x4xi32>
    %cst_74 = arith.constant 0.000000e+00 : f32
    %273 = vector.broadcast %cst_74 : f32 to vector<4x4xf32>
    %274 = arith.select %272, %273, %271 : vector<4x4xi1>, vector<4x4xf32>
    %cst_75 = arith.constant dense<0xFF800000> : vector<4xf32>
    %275 = vector.multi_reduction <maximumf>, %274, %cst_75 [1] : vector<4x4xf32> to vector<4xf32>
    %276 = vector.shape_cast %275 : vector<4xf32> to vector<4x1xf32>
    %277 = vector.broadcast %276 : vector<4x1xf32> to vector<4x4xf32>
    %278 = arith.cmpf oeq, %274, %277 : vector<4x4xf32>
    %c4_i32_76 = arith.constant 4 : i32
    %279 = vector.broadcast %c4_i32_76 : i32 to vector<4x4xi32>
    %280 = arith.select %278, %1, %279 : vector<4x4xi1>, vector<4x4xi32>
    %cst_77 = arith.constant dense<2147483647> : vector<4xi32>
    %281 = vector.multi_reduction <minsi>, %280, %cst_77 [1] : vector<4x4xi32> to vector<4xi32>
    %282 = vector.shape_cast %281 : vector<4xi32> to vector<4x1xi32>
    %283 = vector.broadcast %282 : vector<4x1xi32> to vector<4x4xi32>
    %284 = arith.cmpi eq, %1, %283 : vector<4x4xi32>
    %c0_i32_78 = arith.constant 0 : i32
    %285 = vector.broadcast %c0_i32_78 : i32 to vector<4x4xi32>
    %286 = arith.cmpi sgt, %0, %285 : vector<4x4xi32>
    %287 = arith.andi %284, %286 : vector<4x4xi1>
    %cst_79 = arith.constant 1.000000e+00 : f32
    %cst_80 = arith.constant 0.000000e+00 : f32
    %288 = vector.broadcast %cst_79 : f32 to vector<4x4xf32>
    %289 = vector.broadcast %cst_80 : f32 to vector<4x4xf32>
    %290 = arith.select %287, %288, %289 : vector<4x4xi1>, vector<4x4xf32>
    %cst_81 = arith.constant 0.000000e+00 : f32
    %291 = vector.broadcast %cst_81 : f32 to vector<4x8x32xf32>
    %cst_82 = arith.constant 0.000000e+00 : f32
    %292 = vector.broadcast %cst_82 : f32 to vector<4x8x32xf32>
    %293 = vector.extract_strided_slice %290 {offsets = [0, 0], sizes = [4, 1], strides = [1, 1]} : vector<4x4xf32> to vector<4x1xf32>
    %294 = vector.shape_cast %293 : vector<4x1xf32> to vector<4x1x1xf32>
    %295 = vector.extract_strided_slice %257 {offsets = [0, 0, 0], sizes = [1, 8, 32], strides = [1, 1, 1]} : vector<4x8x32xf32> to vector<1x8x32xf32>
    %296 = vector.broadcast %294 : vector<4x1x1xf32> to vector<4x8x32xf32>
    %297 = vector.broadcast %295 : vector<1x8x32xf32> to vector<4x8x32xf32>
    %298 = arith.mulf %296, %297 : vector<4x8x32xf32>
    %299 = arith.addf %291, %298 : vector<4x8x32xf32>
    %300 = vector.extract_strided_slice %259 {offsets = [0, 0, 0], sizes = [1, 8, 32], strides = [1, 1, 1]} : vector<4x8x32xf32> to vector<1x8x32xf32>
    %301 = vector.broadcast %294 : vector<4x1x1xf32> to vector<4x8x32xf32>
    %302 = vector.broadcast %300 : vector<1x8x32xf32> to vector<4x8x32xf32>
    %303 = arith.mulf %301, %302 : vector<4x8x32xf32>
    %304 = arith.addf %292, %303 : vector<4x8x32xf32>
    %305 = vector.extract_strided_slice %290 {offsets = [0, 1], sizes = [4, 1], strides = [1, 1]} : vector<4x4xf32> to vector<4x1xf32>
    %306 = vector.shape_cast %305 : vector<4x1xf32> to vector<4x1x1xf32>
    %307 = vector.extract_strided_slice %257 {offsets = [1, 0, 0], sizes = [1, 8, 32], strides = [1, 1, 1]} : vector<4x8x32xf32> to vector<1x8x32xf32>
    %308 = vector.broadcast %306 : vector<4x1x1xf32> to vector<4x8x32xf32>
    %309 = vector.broadcast %307 : vector<1x8x32xf32> to vector<4x8x32xf32>
    %310 = arith.mulf %308, %309 : vector<4x8x32xf32>
    %311 = arith.addf %299, %310 : vector<4x8x32xf32>
    %312 = vector.extract_strided_slice %259 {offsets = [1, 0, 0], sizes = [1, 8, 32], strides = [1, 1, 1]} : vector<4x8x32xf32> to vector<1x8x32xf32>
    %313 = vector.broadcast %306 : vector<4x1x1xf32> to vector<4x8x32xf32>
    %314 = vector.broadcast %312 : vector<1x8x32xf32> to vector<4x8x32xf32>
    %315 = arith.mulf %313, %314 : vector<4x8x32xf32>
    %316 = arith.addf %304, %315 : vector<4x8x32xf32>
    %317 = vector.extract_strided_slice %290 {offsets = [0, 2], sizes = [4, 1], strides = [1, 1]} : vector<4x4xf32> to vector<4x1xf32>
    %318 = vector.shape_cast %317 : vector<4x1xf32> to vector<4x1x1xf32>
    %319 = vector.extract_strided_slice %257 {offsets = [2, 0, 0], sizes = [1, 8, 32], strides = [1, 1, 1]} : vector<4x8x32xf32> to vector<1x8x32xf32>
    %320 = vector.broadcast %318 : vector<4x1x1xf32> to vector<4x8x32xf32>
    %321 = vector.broadcast %319 : vector<1x8x32xf32> to vector<4x8x32xf32>
    %322 = arith.mulf %320, %321 : vector<4x8x32xf32>
    %323 = arith.addf %311, %322 : vector<4x8x32xf32>
    %324 = vector.extract_strided_slice %259 {offsets = [2, 0, 0], sizes = [1, 8, 32], strides = [1, 1, 1]} : vector<4x8x32xf32> to vector<1x8x32xf32>
    %325 = vector.broadcast %318 : vector<4x1x1xf32> to vector<4x8x32xf32>
    %326 = vector.broadcast %324 : vector<1x8x32xf32> to vector<4x8x32xf32>
    %327 = arith.mulf %325, %326 : vector<4x8x32xf32>
    %328 = arith.addf %316, %327 : vector<4x8x32xf32>
    %329 = vector.extract_strided_slice %290 {offsets = [0, 3], sizes = [4, 1], strides = [1, 1]} : vector<4x4xf32> to vector<4x1xf32>
    %330 = vector.shape_cast %329 : vector<4x1xf32> to vector<4x1x1xf32>
    %331 = vector.extract_strided_slice %257 {offsets = [3, 0, 0], sizes = [1, 8, 32], strides = [1, 1, 1]} : vector<4x8x32xf32> to vector<1x8x32xf32>
    %332 = vector.broadcast %330 : vector<4x1x1xf32> to vector<4x8x32xf32>
    %333 = vector.broadcast %331 : vector<1x8x32xf32> to vector<4x8x32xf32>
    %334 = arith.mulf %332, %333 : vector<4x8x32xf32>
    %335 = arith.addf %323, %334 : vector<4x8x32xf32>
    %336 = vector.extract_strided_slice %259 {offsets = [3, 0, 0], sizes = [1, 8, 32], strides = [1, 1, 1]} : vector<4x8x32xf32> to vector<1x8x32xf32>
    %337 = vector.broadcast %330 : vector<4x1x1xf32> to vector<4x8x32xf32>
    %338 = vector.broadcast %336 : vector<1x8x32xf32> to vector<4x8x32xf32>
    %339 = arith.mulf %337, %338 : vector<4x8x32xf32>
    %340 = arith.addf %328, %339 : vector<4x8x32xf32>
    %c0_83 = arith.constant 0 : index
    %c0_84 = arith.constant 0 : index
    %341 = vector.load %arg5[%c0_83, %c0_84] : memref<1x32xf32, #tpu.memory_space<vmem>>, vector<1x32xf32>
    %342 = vector.shape_cast %341 : vector<1x32xf32> to vector<1x1x32xf32>
    %343 = vector.broadcast %342 : vector<1x1x32xf32> to vector<4x8x32xf32>
    %344 = arith.addf %257, %343 : vector<4x8x32xf32>
    %c0_85 = arith.constant 0 : index
    %c0_86 = arith.constant 0 : index
    %345 = vector.load %arg7[%c0_85, %c0_86] : memref<1x32xf32, #tpu.memory_space<vmem>>, vector<1x32xf32>
    %346 = vector.shape_cast %345 : vector<1x32xf32> to vector<1x1x32xf32>
    %347 = vector.broadcast %346 : vector<1x1x32xf32> to vector<4x8x32xf32>
    %348 = arith.addf %259, %347 : vector<4x8x32xf32>
    %c0_87 = arith.constant 0 : index
    %c0_88 = arith.constant 0 : index
    %349 = vector.load %arg5[%c0_87, %c0_88] : memref<1x32xf32, #tpu.memory_space<vmem>>, vector<1x32xf32>
    %350 = vector.shape_cast %349 : vector<1x32xf32> to vector<1x1x32xf32>
    %351 = vector.broadcast %350 : vector<1x1x32xf32> to vector<4x8x32xf32>
    %352 = arith.addf %335, %351 : vector<4x8x32xf32>
    %c0_89 = arith.constant 0 : index
    %c0_90 = arith.constant 0 : index
    %353 = vector.load %arg7[%c0_89, %c0_90] : memref<1x32xf32, #tpu.memory_space<vmem>>, vector<1x32xf32>
    %354 = vector.shape_cast %353 : vector<1x32xf32> to vector<1x1x32xf32>
    %355 = vector.broadcast %354 : vector<1x1x32xf32> to vector<4x8x32xf32>
    %356 = arith.addf %340, %355 : vector<4x8x32xf32>
    %357 = vector.extract_strided_slice %255 {offsets = [0, 0, 0], sizes = [4, 8, 8], strides = [1, 1, 1]} : vector<4x8x32xf32> to vector<4x8x8xf32>
    %358 = vector.extract_strided_slice %344 {offsets = [0, 0, 0], sizes = [4, 8, 8], strides = [1, 1, 1]} : vector<4x8x32xf32> to vector<4x8x8xf32>
    %cst_91 = arith.constant dense<0.000000e+00> : vector<4x8x8xf32>
    %359 = tpu.matmul %357, %358, %cst_91 {dimension_numbers = #tpu.dot_dimension_numbers<[2], [2], [1], [1], [0, 0, 0, 1, 1, 1], [0], [0]>} : vector<4x8x8xf32>, vector<4x8x8xf32>, vector<4x8x8xf32> -> vector<4x8x8xf32>
    %cst_92 = arith.constant -1.000000e+09 : f32
    %360 = vector.broadcast %cst_92 : f32 to vector<4x8x8xf32>
    %361 = arith.select %7, %360, %359 : vector<4x8x8xi1>, vector<4x8x8xf32>
    %362 = vector.extract_strided_slice %352 {offsets = [0, 0, 0], sizes = [4, 8, 8], strides = [1, 1, 1]} : vector<4x8x32xf32> to vector<4x8x8xf32>
    %cst_93 = arith.constant dense<0.000000e+00> : vector<4x8x8xf32>
    %363 = tpu.matmul %357, %362, %cst_93 {dimension_numbers = #tpu.dot_dimension_numbers<[2], [2], [1], [1], [0, 0, 0, 1, 1, 1], [0], [0]>} : vector<4x8x8xf32>, vector<4x8x8xf32>, vector<4x8x8xf32> -> vector<4x8x8xf32>
    %cst_94 = arith.constant dense<0xFF800000> : vector<4x8xf32>
    %364 = vector.multi_reduction <maximumf>, %361, %cst_94 [2] : vector<4x8x8xf32> to vector<4x8xf32>
    %365 = vector.shape_cast %364 : vector<4x8xf32> to vector<4x8x1xf32>
    %cst_95 = arith.constant dense<0xFF800000> : vector<4x8xf32>
    %366 = vector.multi_reduction <maximumf>, %363, %cst_95 [2] : vector<4x8x8xf32> to vector<4x8xf32>
    %367 = vector.shape_cast %366 : vector<4x8xf32> to vector<4x8x1xf32>
    %368 = arith.maximumf %365, %367 : vector<4x8x1xf32>
    %369 = vector.broadcast %368 : vector<4x8x1xf32> to vector<4x8x8xf32>
    %370 = arith.subf %361, %369 : vector<4x8x8xf32>
    %371 = math.exp %370 : vector<4x8x8xf32>
    %372 = vector.broadcast %368 : vector<4x8x1xf32> to vector<4x8x8xf32>
    %373 = arith.subf %363, %372 : vector<4x8x8xf32>
    %374 = math.exp %373 : vector<4x8x8xf32>
    %cst_96 = arith.constant dense<0.000000e+00> : vector<4x8xf32>
    %375 = vector.multi_reduction <add>, %371, %cst_96 [2] : vector<4x8x8xf32> to vector<4x8xf32>
    %376 = vector.shape_cast %375 : vector<4x8xf32> to vector<4x8x1xf32>
    %cst_97 = arith.constant dense<0.000000e+00> : vector<4x8xf32>
    %377 = vector.multi_reduction <add>, %374, %cst_97 [2] : vector<4x8x8xf32> to vector<4x8xf32>
    %378 = vector.shape_cast %377 : vector<4x8xf32> to vector<4x8x1xf32>
    %379 = arith.addf %376, %378 : vector<4x8x1xf32>
    %380 = tpu.reciprocal %379 {approx = true} : vector<4x8x1xf32> -> vector<4x8x1xf32>
    %381 = vector.extract_strided_slice %348 {offsets = [0, 0, 0], sizes = [4, 8, 8], strides = [1, 1, 1]} : vector<4x8x32xf32> to vector<4x8x8xf32>
    %cst_98 = arith.constant dense<0.000000e+00> : vector<4x8x8xf32>
    %382 = tpu.matmul %371, %381, %cst_98 {dimension_numbers = #tpu.dot_dimension_numbers<[2], [1], [1], [2], [0, 0, 0, 1, 1, 2], [0], [0]>} : vector<4x8x8xf32>, vector<4x8x8xf32>, vector<4x8x8xf32> -> vector<4x8x8xf32>
    %383 = vector.extract_strided_slice %356 {offsets = [0, 0, 0], sizes = [4, 8, 8], strides = [1, 1, 1]} : vector<4x8x32xf32> to vector<4x8x8xf32>
    %cst_99 = arith.constant dense<0.000000e+00> : vector<4x8x8xf32>
    %384 = tpu.matmul %374, %383, %cst_99 {dimension_numbers = #tpu.dot_dimension_numbers<[2], [1], [1], [2], [0, 0, 0, 1, 1, 2], [0], [0]>} : vector<4x8x8xf32>, vector<4x8x8xf32>, vector<4x8x8xf32> -> vector<4x8x8xf32>
    %385 = arith.addf %382, %384 : vector<4x8x8xf32>
    %386 = vector.broadcast %380 : vector<4x8x1xf32> to vector<4x8x8xf32>
    %387 = arith.mulf %385, %386 : vector<4x8x8xf32>
    %388 = vector.extract_strided_slice %255 {offsets = [0, 0, 8], sizes = [4, 8, 8], strides = [1, 1, 1]} : vector<4x8x32xf32> to vector<4x8x8xf32>
    %389 = vector.extract_strided_slice %344 {offsets = [0, 0, 8], sizes = [4, 8, 8], strides = [1, 1, 1]} : vector<4x8x32xf32> to vector<4x8x8xf32>
    %cst_100 = arith.constant dense<0.000000e+00> : vector<4x8x8xf32>
    %390 = tpu.matmul %388, %389, %cst_100 {dimension_numbers = #tpu.dot_dimension_numbers<[2], [2], [1], [1], [0, 0, 0, 1, 1, 1], [0], [0]>} : vector<4x8x8xf32>, vector<4x8x8xf32>, vector<4x8x8xf32> -> vector<4x8x8xf32>
    %cst_101 = arith.constant -1.000000e+09 : f32
    %391 = vector.broadcast %cst_101 : f32 to vector<4x8x8xf32>
    %392 = arith.select %7, %391, %390 : vector<4x8x8xi1>, vector<4x8x8xf32>
    %393 = vector.extract_strided_slice %352 {offsets = [0, 0, 8], sizes = [4, 8, 8], strides = [1, 1, 1]} : vector<4x8x32xf32> to vector<4x8x8xf32>
    %cst_102 = arith.constant dense<0.000000e+00> : vector<4x8x8xf32>
    %394 = tpu.matmul %388, %393, %cst_102 {dimension_numbers = #tpu.dot_dimension_numbers<[2], [2], [1], [1], [0, 0, 0, 1, 1, 1], [0], [0]>} : vector<4x8x8xf32>, vector<4x8x8xf32>, vector<4x8x8xf32> -> vector<4x8x8xf32>
    %cst_103 = arith.constant dense<0xFF800000> : vector<4x8xf32>
    %395 = vector.multi_reduction <maximumf>, %392, %cst_103 [2] : vector<4x8x8xf32> to vector<4x8xf32>
    %396 = vector.shape_cast %395 : vector<4x8xf32> to vector<4x8x1xf32>
    %cst_104 = arith.constant dense<0xFF800000> : vector<4x8xf32>
    %397 = vector.multi_reduction <maximumf>, %394, %cst_104 [2] : vector<4x8x8xf32> to vector<4x8xf32>
    %398 = vector.shape_cast %397 : vector<4x8xf32> to vector<4x8x1xf32>
    %399 = arith.maximumf %396, %398 : vector<4x8x1xf32>
    %400 = vector.broadcast %399 : vector<4x8x1xf32> to vector<4x8x8xf32>
    %401 = arith.subf %392, %400 : vector<4x8x8xf32>
    %402 = math.exp %401 : vector<4x8x8xf32>
    %403 = vector.broadcast %399 : vector<4x8x1xf32> to vector<4x8x8xf32>
    %404 = arith.subf %394, %403 : vector<4x8x8xf32>
    %405 = math.exp %404 : vector<4x8x8xf32>
    %cst_105 = arith.constant dense<0.000000e+00> : vector<4x8xf32>
    %406 = vector.multi_reduction <add>, %402, %cst_105 [2] : vector<4x8x8xf32> to vector<4x8xf32>
    %407 = vector.shape_cast %406 : vector<4x8xf32> to vector<4x8x1xf32>
    %cst_106 = arith.constant dense<0.000000e+00> : vector<4x8xf32>
    %408 = vector.multi_reduction <add>, %405, %cst_106 [2] : vector<4x8x8xf32> to vector<4x8xf32>
    %409 = vector.shape_cast %408 : vector<4x8xf32> to vector<4x8x1xf32>
    %410 = arith.addf %407, %409 : vector<4x8x1xf32>
    %411 = tpu.reciprocal %410 {approx = true} : vector<4x8x1xf32> -> vector<4x8x1xf32>
    %412 = vector.extract_strided_slice %348 {offsets = [0, 0, 8], sizes = [4, 8, 8], strides = [1, 1, 1]} : vector<4x8x32xf32> to vector<4x8x8xf32>
    %cst_107 = arith.constant dense<0.000000e+00> : vector<4x8x8xf32>
    %413 = tpu.matmul %402, %412, %cst_107 {dimension_numbers = #tpu.dot_dimension_numbers<[2], [1], [1], [2], [0, 0, 0, 1, 1, 2], [0], [0]>} : vector<4x8x8xf32>, vector<4x8x8xf32>, vector<4x8x8xf32> -> vector<4x8x8xf32>
    %414 = vector.extract_strided_slice %356 {offsets = [0, 0, 8], sizes = [4, 8, 8], strides = [1, 1, 1]} : vector<4x8x32xf32> to vector<4x8x8xf32>
    %cst_108 = arith.constant dense<0.000000e+00> : vector<4x8x8xf32>
    %415 = tpu.matmul %405, %414, %cst_108 {dimension_numbers = #tpu.dot_dimension_numbers<[2], [1], [1], [2], [0, 0, 0, 1, 1, 2], [0], [0]>} : vector<4x8x8xf32>, vector<4x8x8xf32>, vector<4x8x8xf32> -> vector<4x8x8xf32>
    %416 = arith.addf %413, %415 : vector<4x8x8xf32>
    %417 = vector.broadcast %411 : vector<4x8x1xf32> to vector<4x8x8xf32>
    %418 = arith.mulf %416, %417 : vector<4x8x8xf32>
    %419 = vector.extract_strided_slice %255 {offsets = [0, 0, 16], sizes = [4, 8, 8], strides = [1, 1, 1]} : vector<4x8x32xf32> to vector<4x8x8xf32>
    %420 = vector.extract_strided_slice %344 {offsets = [0, 0, 16], sizes = [4, 8, 8], strides = [1, 1, 1]} : vector<4x8x32xf32> to vector<4x8x8xf32>
    %cst_109 = arith.constant dense<0.000000e+00> : vector<4x8x8xf32>
    %421 = tpu.matmul %419, %420, %cst_109 {dimension_numbers = #tpu.dot_dimension_numbers<[2], [2], [1], [1], [0, 0, 0, 1, 1, 1], [0], [0]>} : vector<4x8x8xf32>, vector<4x8x8xf32>, vector<4x8x8xf32> -> vector<4x8x8xf32>
    %cst_110 = arith.constant -1.000000e+09 : f32
    %422 = vector.broadcast %cst_110 : f32 to vector<4x8x8xf32>
    %423 = arith.select %7, %422, %421 : vector<4x8x8xi1>, vector<4x8x8xf32>
    %424 = vector.extract_strided_slice %352 {offsets = [0, 0, 16], sizes = [4, 8, 8], strides = [1, 1, 1]} : vector<4x8x32xf32> to vector<4x8x8xf32>
    %cst_111 = arith.constant dense<0.000000e+00> : vector<4x8x8xf32>
    %425 = tpu.matmul %419, %424, %cst_111 {dimension_numbers = #tpu.dot_dimension_numbers<[2], [2], [1], [1], [0, 0, 0, 1, 1, 1], [0], [0]>} : vector<4x8x8xf32>, vector<4x8x8xf32>, vector<4x8x8xf32> -> vector<4x8x8xf32>
    %cst_112 = arith.constant dense<0xFF800000> : vector<4x8xf32>
    %426 = vector.multi_reduction <maximumf>, %423, %cst_112 [2] : vector<4x8x8xf32> to vector<4x8xf32>
    %427 = vector.shape_cast %426 : vector<4x8xf32> to vector<4x8x1xf32>
    %cst_113 = arith.constant dense<0xFF800000> : vector<4x8xf32>
    %428 = vector.multi_reduction <maximumf>, %425, %cst_113 [2] : vector<4x8x8xf32> to vector<4x8xf32>
    %429 = vector.shape_cast %428 : vector<4x8xf32> to vector<4x8x1xf32>
    %430 = arith.maximumf %427, %429 : vector<4x8x1xf32>
    %431 = vector.broadcast %430 : vector<4x8x1xf32> to vector<4x8x8xf32>
    %432 = arith.subf %423, %431 : vector<4x8x8xf32>
    %433 = math.exp %432 : vector<4x8x8xf32>
    %434 = vector.broadcast %430 : vector<4x8x1xf32> to vector<4x8x8xf32>
    %435 = arith.subf %425, %434 : vector<4x8x8xf32>
    %436 = math.exp %435 : vector<4x8x8xf32>
    %cst_114 = arith.constant dense<0.000000e+00> : vector<4x8xf32>
    %437 = vector.multi_reduction <add>, %433, %cst_114 [2] : vector<4x8x8xf32> to vector<4x8xf32>
    %438 = vector.shape_cast %437 : vector<4x8xf32> to vector<4x8x1xf32>
    %cst_115 = arith.constant dense<0.000000e+00> : vector<4x8xf32>
    %439 = vector.multi_reduction <add>, %436, %cst_115 [2] : vector<4x8x8xf32> to vector<4x8xf32>
    %440 = vector.shape_cast %439 : vector<4x8xf32> to vector<4x8x1xf32>
    %441 = arith.addf %438, %440 : vector<4x8x1xf32>
    %442 = tpu.reciprocal %441 {approx = true} : vector<4x8x1xf32> -> vector<4x8x1xf32>
    %443 = vector.extract_strided_slice %348 {offsets = [0, 0, 16], sizes = [4, 8, 8], strides = [1, 1, 1]} : vector<4x8x32xf32> to vector<4x8x8xf32>
    %cst_116 = arith.constant dense<0.000000e+00> : vector<4x8x8xf32>
    %444 = tpu.matmul %433, %443, %cst_116 {dimension_numbers = #tpu.dot_dimension_numbers<[2], [1], [1], [2], [0, 0, 0, 1, 1, 2], [0], [0]>} : vector<4x8x8xf32>, vector<4x8x8xf32>, vector<4x8x8xf32> -> vector<4x8x8xf32>
    %445 = vector.extract_strided_slice %356 {offsets = [0, 0, 16], sizes = [4, 8, 8], strides = [1, 1, 1]} : vector<4x8x32xf32> to vector<4x8x8xf32>
    %cst_117 = arith.constant dense<0.000000e+00> : vector<4x8x8xf32>
    %446 = tpu.matmul %436, %445, %cst_117 {dimension_numbers = #tpu.dot_dimension_numbers<[2], [1], [1], [2], [0, 0, 0, 1, 1, 2], [0], [0]>} : vector<4x8x8xf32>, vector<4x8x8xf32>, vector<4x8x8xf32> -> vector<4x8x8xf32>
    %447 = arith.addf %444, %446 : vector<4x8x8xf32>
    %448 = vector.broadcast %442 : vector<4x8x1xf32> to vector<4x8x8xf32>
    %449 = arith.mulf %447, %448 : vector<4x8x8xf32>
    %450 = vector.extract_strided_slice %255 {offsets = [0, 0, 24], sizes = [4, 8, 8], strides = [1, 1, 1]} : vector<4x8x32xf32> to vector<4x8x8xf32>
    %451 = vector.extract_strided_slice %344 {offsets = [0, 0, 24], sizes = [4, 8, 8], strides = [1, 1, 1]} : vector<4x8x32xf32> to vector<4x8x8xf32>
    %cst_118 = arith.constant dense<0.000000e+00> : vector<4x8x8xf32>
    %452 = tpu.matmul %450, %451, %cst_118 {dimension_numbers = #tpu.dot_dimension_numbers<[2], [2], [1], [1], [0, 0, 0, 1, 1, 1], [0], [0]>} : vector<4x8x8xf32>, vector<4x8x8xf32>, vector<4x8x8xf32> -> vector<4x8x8xf32>
    %cst_119 = arith.constant -1.000000e+09 : f32
    %453 = vector.broadcast %cst_119 : f32 to vector<4x8x8xf32>
    %454 = arith.select %7, %453, %452 : vector<4x8x8xi1>, vector<4x8x8xf32>
    %455 = vector.extract_strided_slice %352 {offsets = [0, 0, 24], sizes = [4, 8, 8], strides = [1, 1, 1]} : vector<4x8x32xf32> to vector<4x8x8xf32>
    %cst_120 = arith.constant dense<0.000000e+00> : vector<4x8x8xf32>
    %456 = tpu.matmul %450, %455, %cst_120 {dimension_numbers = #tpu.dot_dimension_numbers<[2], [2], [1], [1], [0, 0, 0, 1, 1, 1], [0], [0]>} : vector<4x8x8xf32>, vector<4x8x8xf32>, vector<4x8x8xf32> -> vector<4x8x8xf32>
    %cst_121 = arith.constant dense<0xFF800000> : vector<4x8xf32>
    %457 = vector.multi_reduction <maximumf>, %454, %cst_121 [2] : vector<4x8x8xf32> to vector<4x8xf32>
    %458 = vector.shape_cast %457 : vector<4x8xf32> to vector<4x8x1xf32>
    %cst_122 = arith.constant dense<0xFF800000> : vector<4x8xf32>
    %459 = vector.multi_reduction <maximumf>, %456, %cst_122 [2] : vector<4x8x8xf32> to vector<4x8xf32>
    %460 = vector.shape_cast %459 : vector<4x8xf32> to vector<4x8x1xf32>
    %461 = arith.maximumf %458, %460 : vector<4x8x1xf32>
    %462 = vector.broadcast %461 : vector<4x8x1xf32> to vector<4x8x8xf32>
    %463 = arith.subf %454, %462 : vector<4x8x8xf32>
    %464 = math.exp %463 : vector<4x8x8xf32>
    %465 = vector.broadcast %461 : vector<4x8x1xf32> to vector<4x8x8xf32>
    %466 = arith.subf %456, %465 : vector<4x8x8xf32>
    %467 = math.exp %466 : vector<4x8x8xf32>
    %cst_123 = arith.constant dense<0.000000e+00> : vector<4x8xf32>
    %468 = vector.multi_reduction <add>, %464, %cst_123 [2] : vector<4x8x8xf32> to vector<4x8xf32>
    %469 = vector.shape_cast %468 : vector<4x8xf32> to vector<4x8x1xf32>
    %cst_124 = arith.constant dense<0.000000e+00> : vector<4x8xf32>
    %470 = vector.multi_reduction <add>, %467, %cst_124 [2] : vector<4x8x8xf32> to vector<4x8xf32>
    %471 = vector.shape_cast %470 : vector<4x8xf32> to vector<4x8x1xf32>
    %472 = arith.addf %469, %471 : vector<4x8x1xf32>
    %473 = tpu.reciprocal %472 {approx = true} : vector<4x8x1xf32> -> vector<4x8x1xf32>
    %474 = vector.extract_strided_slice %348 {offsets = [0, 0, 24], sizes = [4, 8, 8], strides = [1, 1, 1]} : vector<4x8x32xf32> to vector<4x8x8xf32>
    %cst_125 = arith.constant dense<0.000000e+00> : vector<4x8x8xf32>
    %475 = tpu.matmul %464, %474, %cst_125 {dimension_numbers = #tpu.dot_dimension_numbers<[2], [1], [1], [2], [0, 0, 0, 1, 1, 2], [0], [0]>} : vector<4x8x8xf32>, vector<4x8x8xf32>, vector<4x8x8xf32> -> vector<4x8x8xf32>
    %476 = vector.extract_strided_slice %356 {offsets = [0, 0, 24], sizes = [4, 8, 8], strides = [1, 1, 1]} : vector<4x8x32xf32> to vector<4x8x8xf32>
    %cst_126 = arith.constant dense<0.000000e+00> : vector<4x8x8xf32>
    %477 = tpu.matmul %467, %476, %cst_126 {dimension_numbers = #tpu.dot_dimension_numbers<[2], [1], [1], [2], [0, 0, 0, 1, 1, 2], [0], [0]>} : vector<4x8x8xf32>, vector<4x8x8xf32>, vector<4x8x8xf32> -> vector<4x8x8xf32>
    %478 = arith.addf %475, %477 : vector<4x8x8xf32>
    %479 = vector.broadcast %473 : vector<4x8x1xf32> to vector<4x8x8xf32>
    %480 = arith.mulf %478, %479 : vector<4x8x8xf32>
    %481 = tpu.concatenate %387, %418, %449, %480 in 2 : vector<4x8x8xf32>, vector<4x8x8xf32>, vector<4x8x8xf32>, vector<4x8x8xf32> -> vector<4x8x32xf32>
    %482 = vector.shape_cast %481 : vector<4x8x32xf32> to vector<32x32xf32>
    %483 = tpu.concatenate %251, %482 in 0 : vector<32x32xf32>, vector<32x32xf32> -> vector<64x32xf32>
    %c0_127 = arith.constant 0 : index
    %c0_128 = arith.constant 0 : index
    %484 = vector.load %arg8[%c0_127, %c0_128] : memref<32x32xf32, #tpu.memory_space<vmem>>, vector<32x32xf32>
    %cst_129 = arith.constant dense<0.000000e+00> : vector<64x32xf32>
    %485 = tpu.matmul %483, %484, %cst_129 {dimension_numbers = #tpu.dot_dimension_numbers<[1], [0], [0], [1], [0, 0, 1, 1], [], []>} : vector<64x32xf32>, vector<32x32xf32>, vector<64x32xf32> -> vector<64x32xf32>
    %c0_130 = arith.constant 0 : index
    %c0_131 = arith.constant 0 : index
    %486 = vector.load %arg9[%c0_130, %c0_131] : memref<1x32xf32, #tpu.memory_space<vmem>>, vector<1x32xf32>
    %487 = vector.broadcast %486 : vector<1x32xf32> to vector<64x32xf32>
    %488 = arith.addf %485, %487 : vector<64x32xf32>
    %489 = vector.shape_cast %488 : vector<64x32xf32> to vector<2x32x32xf32>
    %c0_132 = arith.constant 0 : index
    %c0_133 = arith.constant 0 : index
    %c0_134 = arith.constant 0 : index
    %490 = vector.load %arg10[%c0_132, %c0_133, %c0_134] : memref<2x32x32xf32, #tpu.memory_space<vmem>>, vector<2x32x32xf32>
    tpu.vector_store %arg10[%c0_132, %c0_133, %c0_134], %489 {strides = array<i32>} : memref<2x32x32xf32, #tpu.memory_space<vmem>>, vector<2x32x32xf32>,
    return
  }
  func.func @transform_0(%arg0: i32) -> (i32, i32, i32) {
    %c0_i32 = arith.constant 0 : i32
    %c0_i32_0 = arith.constant 0 : i32
    %c0_i32_1 = arith.constant 0 : i32
    return %arg0, %c0_i32, %c0_i32_0 : i32, i32, i32
  }
  func.func @transform_1(%arg0: i32) -> (i32, i32) {
    %c0_i32 = arith.constant 0 : i32
    %c0_i32_0 = arith.constant 0 : i32
    %c0_i32_1 = arith.constant 0 : i32
    return %c0_i32, %c0_i32_0 : i32, i32
  }
  func.func @transform_2(%arg0: i32) -> (i32, i32) {
    %c0_i32 = arith.constant 0 : i32
    %c0_i32_0 = arith.constant 0 : i32
    %c0_i32_1 = arith.constant 0 : i32
    return %c0_i32, %c0_i32_0 : i32, i32
  }
  func.func @transform_3(%arg0: i32) -> (i32, i32) {
    %c0_i32 = arith.constant 0 : i32
    %c0_i32_0 = arith.constant 0 : i32
    %c0_i32_1 = arith.constant 0 : i32
    return %c0_i32, %c0_i32_0 : i32, i32
  }
  func.func @transform_4(%arg0: i32) -> (i32, i32) {
    %c0_i32 = arith.constant 0 : i32
    %c0_i32_0 = arith.constant 0 : i32
    %c0_i32_1 = arith.constant 0 : i32
    return %c0_i32, %c0_i32_0 : i32, i32
  }
  func.func @transform_5(%arg0: i32) -> (i32, i32) {
    %c0_i32 = arith.constant 0 : i32
    %c0_i32_0 = arith.constant 0 : i32
    %c0_i32_1 = arith.constant 0 : i32
    return %c0_i32, %c0_i32_0 : i32, i32
  }
  func.func @transform_6(%arg0: i32) -> (i32, i32) {
    %c0_i32 = arith.constant 0 : i32
    %c0_i32_0 = arith.constant 0 : i32
    %c0_i32_1 = arith.constant 0 : i32
    return %c0_i32, %c0_i32_0 : i32, i32
  }
  func.func @transform_7(%arg0: i32) -> (i32, i32) {
    %c0_i32 = arith.constant 0 : i32
    %c0_i32_0 = arith.constant 0 : i32
    %c0_i32_1 = arith.constant 0 : i32
    return %c0_i32, %c0_i32_0 : i32, i32
  }
  func.func @transform_8(%arg0: i32) -> (i32, i32) {
    %c0_i32 = arith.constant 0 : i32
    %c0_i32_0 = arith.constant 0 : i32
    %c0_i32_1 = arith.constant 0 : i32
    return %c0_i32, %c0_i32_0 : i32, i32
  }
  func.func @transform_9(%arg0: i32) -> (i32, i32, i32) {
    %c0_i32 = arith.constant 0 : i32
    %c0_i32_0 = arith.constant 0 : i32
    %c0_i32_1 = arith.constant 0 : i32
    return %arg0, %c0_i32, %c0_i32_0 : i32, i32, i32
  }
}

</mosaic_0001>

<llo_original>
// kernel: tpu_custom_call.1
$region0: #{tpu_custom_call.1}
  #allocation0 [shape = 'u32[]', space=smem, size = 0x4, offset = 0x4, fixed_abs, tag = 'smem constant byte address 0x4 - core index']
  #allocation1 [shape = 'u32[72,128]{1,0:T(1,128)}', space=vmem, size = 0x9000, scoped, tag = 'internal scratch']
  %s0 = inlined_call_operand.hbm [shape: f32[2,32,32], index: 0, kind: input, shape index: {}]
  %s1 = inlined_call_operand.hbm [shape: f32[32,32], index: 1, kind: input, shape index: {}]
  %s2 = inlined_call_operand.vmem [shape: f32[1,32], index: 2, kind: input, shape index: {}]
  %s3 = inlined_call_operand.hbm [shape: f32[32,32], index: 3, kind: input, shape index: {}]
  %s4 = inlined_call_operand.vmem [shape: f32[1,32], index: 4, kind: input, shape index: {}]
  %s5 = inlined_call_operand.hbm [shape: f32[32,32], index: 5, kind: input, shape index: {}]
  %s6 = inlined_call_operand.vmem [shape: f32[1,32], index: 6, kind: input, shape index: {}]
  %s7 = inlined_call_operand.hbm [shape: f32[32,32], index: 7, kind: input, shape index: {}]
  %s8 = inlined_call_operand.vmem [shape: f32[1,32], index: 8, kind: input, shape index: {}]
  %s9 = inlined_call_operand.hbm [shape: f32[2,32,32], index: 9, kind: output, shape index: {}]
  %s10 = sld [smem:[#allocation0]]
  $region66: #{tpu_custom_call.1} parent=0
    _
  %s12 = ssub.s32 1, %s10
  %s13 = scalar_select 0, %s12, %s10
  $region1: #{tpu_custom_call.1} parent=0
    #allocation2 [shape = 'u8[32768]{0}', space=vmem, size = 0x8000, scoped, tag = 'input window, operand 0, single buffered']
    #allocation3 [shape = 's32[1]{0}', space=sflag, size = 0x4, scoped, tag = 'scoped memory for tpu_custom_call.1']
    #allocation4 [shape = 's32[1]{0}', space=sflag, size = 0x4, scoped, tag = 'scoped memory for tpu_custom_call.1']
    #allocation5 [shape = 'u8[16384]{0}', space=vmem, size = 0x4000, scoped, tag = 'input window, operand 1, single buffered']
    #allocation6 [shape = 's32[1]{0}', space=sflag, size = 0x4, scoped, tag = 'scoped memory for tpu_custom_call.1']
    #allocation7 [shape = 'u8[16384]{0}', space=vmem, size = 0x4000, scoped, tag = 'input window, operand 3, single buffered']
    #allocation8 [shape = 'u8[16384]{0}', space=vmem, size = 0x4000, scoped, tag = 'input window, operand 5, single buffered']
    #allocation9 [shape = 's32[1]{0}', space=sflag, size = 0x4, scoped, tag = 'scoped memory for tpu_custom_call.1']
    #allocation10 [shape = 'u8[16384]{0}', space=vmem, size = 0x4000, scoped, tag = 'input window, operand 7, single buffered']
    #allocation11 [shape = 'u8[32768]{0}', space=vmem, size = 0x8000, scoped, tag = 'output window, operand 0, single buffered']
    %14 = vsyncpa [#allocation3], 0
    %15 = vsyncpa [#allocation6], 0
    %16 = vsyncpa [#allocation9], 0
    %17 = vsyncpa [#allocation4], 0
    // Predicated region
    $region2: #{tpu_custom_call.1} parent=1 // pred_check
      _
    $region3: #{tpu_custom_call.1} parent=1 // pred_check_branch
      %19 = sbr.rel (0) target = $region5
    $region4: #{tpu_custom_call.1} parent=1 // pred_region
      %21 = vsyncadd [#allocation3], 0
      %s22 = sshll.u32 %s0, 4
      %s23 = int_to_ptr.hbm [resolvable:$true] %s22
      %s24 = sshll.u32 [#allocation2], 4
      %s25 = int_to_ptr.vmem [resolvable:$true] %s24
      %30 = dma.hbm_to_vmem [thread:$0]  %s23, 1024, %s25, [#allocation3], 128, 128, 8
    $region5: #{tpu_custom_call.1} parent=1 // pred_fallthru
      _
    // Predicated region
    $region6: #{tpu_custom_call.1} parent=1 // pred_check
      _
    $region7: #{tpu_custom_call.1} parent=1 // pred_check_branch
      %32 = sbr.rel (0) target = $region9
    $region8: #{tpu_custom_call.1} parent=1 // pred_region
      %34 = vsyncadd [#allocation6], 0
      %s35 = sshll.u32 %s1, 4
      %s36 = int_to_ptr.hbm [resolvable:$true] %s35
      %s37 = sshll.u32 [#allocation5], 4
      %s38 = int_to_ptr.vmem [resolvable:$true] %s37
      %43 = dma.hbm_to_vmem [thread:$0]  %s36, 512, %s38, [#allocation6], 128, 128, 8
    $region9: #{tpu_custom_call.1} parent=1 // pred_fallthru
      _
    // Predicated region
    $region10: #{tpu_custom_call.1} parent=1 // pred_check
      _
    $region11: #{tpu_custom_call.1} parent=1 // pred_check_branch
      %45 = sbr.rel (0) target = $region13
    $region12: #{tpu_custom_call.1} parent=1 // pred_region
      _
    $region13: #{tpu_custom_call.1} parent=1 // pred_fallthru
      _
    // Predicated region
    $region14: #{tpu_custom_call.1} parent=1 // pred_check
      _
    $region15: #{tpu_custom_call.1} parent=1 // pred_check_branch
      %47 = sbr.rel (0) target = $region17
    $region16: #{tpu_custom_call.1} parent=1 // pred_region
      %49 = vsyncadd [#allocation6], 0
      %s50 = sshll.u32 %s3, 4
      %s51 = int_to_ptr.hbm [resolvable:$true] %s50
      %s52 = sshll.u32 [#allocation7], 4
      %s53 = int_to_ptr.vmem [resolvable:$true] %s52
      %58 = dma.hbm_to_vmem [thread:$0]  %s51, 512, %s53, [#allocation6], 128, 128, 8
    $region17: #{tpu_custom_call.1} parent=1 // pred_fallthru
      _
    // Predicated region
    $region18: #{tpu_custom_call.1} parent=1 // pred_check
      _
    $region19: #{tpu_custom_call.1} parent=1 // pred_check_branch
      %60 = sbr.rel (0) target = $region21
    $region20: #{tpu_custom_call.1} parent=1 // pred_region
      _
    $region21: #{tpu_custom_call.1} parent=1 // pred_fallthru
      _
    // Predicated region
    $region22: #{tpu_custom_call.1} parent=1 // pred_check
      _
    $region23: #{tpu_custom_call.1} parent=1 // pred_check_branch
      %62 = sbr.rel (0) target = $region25
    $region24: #{tpu_custom_call.1} parent=1 // pred_region
      %64 = vsyncadd [#allocation9], 0
      %s65 = sshll.u32 %s5, 4
      %s66 = int_to_ptr.hbm [resolvable:$true] %s65
      %s67 = sshll.u32 [#allocation8], 4
      %s68 = int_to_ptr.vmem [resolvable:$true] %s67
      %73 = dma.hbm_to_vmem [thread:$0]  %s66, 512, %s68, [#allocation9], 128, 128, 8
    $region25: #{tpu_custom_call.1} parent=1 // pred_fallthru
      _
    // Predicated region
    $region26: #{tpu_custom_call.1} parent=1 // pred_check
      _
    $region27: #{tpu_custom_call.1} parent=1 // pred_check_branch
      %75 = sbr.rel (0) target = $region29
    $region28: #{tpu_custom_call.1} parent=1 // pred_region
      _
    $region29: #{tpu_custom_call.1} parent=1 // pred_fallthru
      _
    // Predicated region
    $region30: #{tpu_custom_call.1} parent=1 // pred_check
      _
    $region31: #{tpu_custom_call.1} parent=1 // pred_check_branch
      %77 = sbr.rel (0) target = $region33
    $region32: #{tpu_custom_call.1} parent=1 // pred_region
      %79 = vsyncadd [#allocation9], 0
      %s80 = sshll.u32 %s7, 4
      %s81 = int_to_ptr.hbm [resolvable:$true] %s80
      %s82 = sshll.u32 [#allocation10], 4
      %s83 = int_to_ptr.vmem [resolvable:$true] %s82
      %88 = dma.hbm_to_vmem [thread:$0]  %s81, 512, %s83, [#allocation9], 128, 128, 8
    $region33: #{tpu_custom_call.1} parent=1 // pred_fallthru
      _
    // Predicated region
    $region34: #{tpu_custom_call.1} parent=1 // pred_check
      _
    $region35: #{tpu_custom_call.1} parent=1 // pred_check_branch
      %90 = sbr.rel (0) target = $region37
    $region36: #{tpu_custom_call.1} parent=1 // pred_region
      _
    $region37: #{tpu_custom_call.1} parent=1 // pred_fallthru
      _
    // Predicated region
    $region38: #{tpu_custom_call.1} parent=1 // pred_check
      _
    $region39: #{tpu_custom_call.1} parent=1 // pred_check_branch
      %92 = sbr.rel (0) target = $region41
    $region40: #{tpu_custom_call.1} parent=1 // pred_region
      %94 = dma.done [#allocation3], 1024
    $region41: #{tpu_custom_call.1} parent=1 // pred_fallthru
      _
    // Predicated region
    $region42: #{tpu_custom_call.1} parent=1 // pred_check
      _
    $region43: #{tpu_custom_call.1} parent=1 // pred_check_branch
      %96 = sbr.rel (0) target = $region45
    $region44: #{tpu_custom_call.1} parent=1 // pred_region
      %98 = dma.done [#allocation6], 512
    $region45: #{tpu_custom_call.1} parent=1 // pred_fallthru
      _
    // Predicated region
    $region46: #{tpu_custom_call.1} parent=1 // pred_check
      _
    $region47: #{tpu_custom_call.1} parent=1 // pred_check_branch
      %100 = sbr.rel (0) target = $region49
    $region48: #{tpu_custom_call.1} parent=1 // pred_region
      %102 = dma.done [#allocation6], 512
    $region49: #{tpu_custom_call.1} parent=1 // pred_fallthru
      _
    // Predicated region
    $region50: #{tpu_custom_call.1} parent=1 // pred_check
      _
    $region51: #{tpu_custom_call.1} parent=1 // pred_check_branch
      %104 = sbr.rel (0) target = $region53
    $region52: #{tpu_custom_call.1} parent=1 // pred_region
      %106 = dma.done [#allocation9], 512
    $region53: #{tpu_custom_call.1} parent=1 // pred_fallthru
      _
    // Predicated region
    $region54: #{tpu_custom_call.1} parent=1 // pred_check
      _
    $region55: #{tpu_custom_call.1} parent=1 // pred_check_branch
      %108 = sbr.rel (0) target = $region57
    $region56: #{tpu_custom_call.1} parent=1 // pred_region
      %110 = dma.done [#allocation9], 512
    $region57: #{tpu_custom_call.1} parent=1 // pred_fallthru
      _
    %v111 = vlaneseq
    %v112 = vshrl.u32 %v111, 7
    %v113 = vlaneseq
    %v114 = vand.u32 %v113, 127
    %vm115 = vcmp.gt.s32.totalorder %v114, %v112
    %v116 = vsel %vm115, 1, 0
    %vm117 = vcmp.eq.s32.totalorder %v116, 1
    %v118 = vld [vmem:[#allocation2] sm:$0xff]
    %v119 = vld [vmem:[#allocation2 + $0x8] sm:$0xff]
    %v120 = vld [vmem:[#allocation2 + $0x10] sm:$0xff]
    %v121 = vld [vmem:[#allocation2 + $0x18] sm:$0xff]
    %v122 = vld [vmem:[#allocation2 + $0x20] sm:$0xff]
    %v123 = vld [vmem:[#allocation2 + $0x28] sm:$0xff]
    %v124 = vld [vmem:[#allocation2 + $0x30] sm:$0xff]
    %v125 = vld [vmem:[#allocation2 + $0x38] sm:$0xff]
    %v126 = vld [vmem:[#allocation5] sm:$0xff]
    %v127 = vld [vmem:[#allocation5 + $0x8] sm:$0xff]
    %v128 = vld [vmem:[#allocation5 + $0x10] sm:$0xff]
    %v129 = vld [vmem:[#allocation5 + $0x18] sm:$0xff]
    %v130 = vld [vmem:[%s2] sm:$0x1]
    %v132 = vperm.slane %v130, 0
    %vm134 = vcmask 261120
    %v136 = vsel %vm134, %v118, 0
    %v139 = vsel %vm134, %v119, 0
    %v142 = vsel %vm134, %v120, 0
    %v145 = vsel %vm134, %v121, 0
    %v148 = vsel %vm134, %v122, 0
    %v151 = vsel %vm134, %v123, 0
    %v154 = vsel %vm134, %v124, 0
    %v157 = vsel %vm134, %v125, 0
    %159 = vmatpush.msra.mxu0 0.0
    %160 = vmatpush.msra.mxu0 0.0
    %161 = vmatpush.msra.mxu0 0.0
    %162 = vmatpush.msra.mxu0 0.0
    %163 = vmatpush.msra.mxu0 0.0
    %164 = vmatpush.msra.mxu0 0.0
    %165 = vmatpush.msra.mxu0 0.0
    %166 = vmatpush.msra.mxu0 0.0
    %167 = vmatpush.msra.mxu0 0.0
    %168 = vmatpush.msra.mxu0 0.0
    %169 = vmatpush.msra.mxu0 0.0
    %170 = vmatpush.msra.mxu0 0.0
    %171 = vmatpush.msra.mxu0 %v129
    %172 = vmatpush.msra.mxu0 %v128
    %173 = vmatpush.msra.mxu0 %v127
    %174 = vmatpush.msra.mxu0 %v126
    %175 = vmatmul.f32.gmra.mxu0 %v136
    %v176 = vpop.f32.mrf.mxu0
    %v177 = vadd.f32 %v132, %v176
    %178 = vmatmul.f32.gmra.mxu0 %v139
    %v179 = vpop.f32.mrf.mxu0
    %v180 = vadd.f32 %v132, %v179
    %181 = vmatmul.f32.gmra.mxu0 %v142
    %v182 = vpop.f32.mrf.mxu0
    %v183 = vadd.f32 %v132, %v182
    %184 = vmatmul.f32.gmra.mxu0 %v145
    %v185 = vpop.f32.mrf.mxu0
    %v186 = vadd.f32 %v132, %v185
    %187 = vmatmul.f32.gmra.mxu0 %v148
    %v188 = vpop.f32.mrf.mxu0
    %v189 = vadd.f32 %v132, %v188
    %190 = vmatmul.f32.gmra.mxu0 %v151
    %v191 = vpop.f32.mrf.mxu0
    %v192 = vadd.f32 %v132, %v191
    %193 = vmatmul.f32.gmra.mxu0 %v154
    %v194 = vpop.f32.mrf.mxu0
    %v195 = vadd.f32 %v132, %v194
    %196 = vmatmul.f32.gmra.mxu0 %v157
    %v197 = vpop.f32.mrf.mxu0
    %v198 = vadd.f32 %v132, %v197
    %199 = vdwg.mxu0
    %v200 = vmul.f32 %v177, 0.35355338
    %v201 = vmul.f32 %v180, 0.35355338
    %v202 = vmul.f32 %v183, 0.35355338
    %v203 = vmul.f32 %v186, 0.35355338
    %v204 = vmul.f32 %v189, 0.35355338
    %v205 = vmul.f32 %v192, 0.35355338
    %v206 = vmul.f32 %v195, 0.35355338
    %v207 = vmul.f32 %v198, 0.35355338
    %v208 = vld [vmem:[#allocation7] sm:$0xff]
    %v209 = vld [vmem:[#allocation7 + $0x8] sm:$0xff]
    %v210 = vld [vmem:[#allocation7 + $0x10] sm:$0xff]
    %v211 = vld [vmem:[#allocation7 + $0x18] sm:$0xff]
    %212 = vmatpush.msra.mxu0 0.0
    %213 = vmatpush.msra.mxu0 0.0
    %214 = vmatpush.msra.mxu0 0.0
    %215 = vmatpush.msra.mxu0 0.0
    %216 = vmatpush.msra.mxu0 0.0
    %217 = vmatpush.msra.mxu0 0.0
    %218 = vmatpush.msra.mxu0 0.0
    %219 = vmatpush.msra.mxu0 0.0
    %220 = vmatpush.msra.mxu0 0.0
    %221 = vmatpush.msra.mxu0 0.0
    %222 = vmatpush.msra.mxu0 0.0
    %223 = vmatpush.msra.mxu0 0.0
    %224 = vmatpush.msra.mxu0 %v211
    %225 = vmatpush.msra.mxu0 %v210
    %226 = vmatpush.msra.mxu0 %v209
    %227 = vmatpush.msra.mxu0 %v208
    %228 = vmatmul.f32.gmra.mxu0 %v136
    %v229 = vpop.f32.mrf.mxu0
    %v230 = vadd.f32 0.0, %v229
    %231 = vmatmul.f32.gmra.mxu0 %v139
    %v232 = vpop.f32.mrf.mxu0
    %v233 = vadd.f32 0.0, %v232
    %234 = vmatmul.f32.gmra.mxu0 %v142
    %v235 = vpop.f32.mrf.mxu0
    %v236 = vadd.f32 0.0, %v235
    %237 = vmatmul.f32.gmra.mxu0 %v145
    %v238 = vpop.f32.mrf.mxu0
    %v239 = vadd.f32 0.0, %v238
    %240 = vmatmul.f32.gmra.mxu0 %v148
    %v241 = vpop.f32.mrf.mxu0
    %v242 = vadd.f32 0.0, %v241
    %243 = vmatmul.f32.gmra.mxu0 %v151
    %v244 = vpop.f32.mrf.mxu0
    %v245 = vadd.f32 0.0, %v244
    %246 = vmatmul.f32.gmra.mxu0 %v154
    %v247 = vpop.f32.mrf.mxu0
    %v248 = vadd.f32 0.0, %v247
    %249 = vmatmul.f32.gmra.mxu0 %v157
    %v250 = vpop.f32.mrf.mxu0
    %v251 = vadd.f32 0.0, %v250
    %252 = vdwg.mxu0
    %v253 = vld [vmem:[#allocation8] sm:$0xff]
    %v254 = vld [vmem:[#allocation8 + $0x8] sm:$0xff]
    %v255 = vld [vmem:[#allocation8 + $0x10] sm:$0xff]
    %v256 = vld [vmem:[#allocation8 + $0x18] sm:$0xff]
    %257 = vmatpush.msra.mxu0 0.0
    %258 = vmatpush.msra.mxu0 0.0
    %259 = vmatpush.msra.mxu0 0.0
    %260 = vmatpush.msra.mxu0 0.0
    %261 = vmatpush.msra.mxu0 0.0
    %262 = vmatpush.msra.mxu0 0.0
    %263 = vmatpush.msra.mxu0 0.0
    %264 = vmatpush.msra.mxu0 0.0
    %265 = vmatpush.msra.mxu0 0.0
    %266 = vmatpush.msra.mxu0 0.0
    %267 = vmatpush.msra.mxu0 0.0
    %268 = vmatpush.msra.mxu0 0.0
    %269 = vmatpush.msra.mxu0 %v256
    %270 = vmatpush.msra.mxu0 %v255
    %271 = vmatpush.msra.mxu0 %v254
    %272 = vmatpush.msra.mxu0 %v253
    %273 = vmatmul.f32.gmra.mxu0 %v136
    %v274 = vpop.f32.mrf.mxu0
    %v275 = vadd.f32 0.0, %v274
    %276 = vmatmul.f32.gmra.mxu0 %v139
    %v277 = vpop.f32.mrf.mxu0
    %v278 = vadd.f32 0.0, %v277
    %279 = vmatmul.f32.gmra.mxu0 %v142
    %v280 = vpop.f32.mrf.mxu0
    %v281 = vadd.f32 0.0, %v280
    %282 = vmatmul.f32.gmra.mxu0 %v145
    %v283 = vpop.f32.mrf.mxu0
    %v284 = vadd.f32 0.0, %v283
    %285 = vmatmul.f32.gmra.mxu0 %v148
    %v286 = vpop.f32.mrf.mxu0
    %v287 = vadd.f32 0.0, %v286
    %288 = vmatmul.f32.gmra.mxu0 %v151
    %v289 = vpop.f32.mrf.mxu0
    %v290 = vadd.f32 0.0, %v289
    %291 = vmatmul.f32.gmra.mxu0 %v154
    %v292 = vpop.f32.mrf.mxu0
    %v293 = vadd.f32 0.0, %v292
    %294 = vmatmul.f32.gmra.mxu0 %v157
    %v295 = vpop.f32.mrf.mxu0
    %v296 = vadd.f32 0.0, %v295
    %297 = vdwg.mxu0
    %v298 = vsel %vm134, %v118, 0.0
    %v299 = vrot.slane %v298, 4
    %v300 = vadd.f32 %v298, %v299
    %v301 = vrot.slane %v300, 2
    %v302 = vadd.f32 %v300, %v301
    %v303 = vrot.slane %v302, 1
    %v304 = vadd.f32 %v302, %v303
    %v305 = vsel %vm134, %v119, 0.0
    %v306 = vrot.slane %v305, 4
    %v307 = vadd.f32 %v305, %v306
    %v308 = vrot.slane %v307, 2
    %v309 = vadd.f32 %v307, %v308
    %v310 = vrot.slane %v309, 1
    %v311 = vadd.f32 %v309, %v310
    %v312 = vsel %vm134, %v120, 0.0
    %v313 = vrot.slane %v312, 4
    %v314 = vadd.f32 %v312, %v313
    %v315 = vrot.slane %v314, 2
    %v316 = vadd.f32 %v314, %v315
    %v317 = vrot.slane %v316, 1
    %v318 = vadd.f32 %v316, %v317
    %v319 = vsel %vm134, %v121, 0.0
    %v320 = vrot.slane %v319, 4
    %v321 = vadd.f32 %v319, %v320
    %v322 = vrot.slane %v321, 2
    %v323 = vadd.f32 %v321, %v322
    %v324 = vrot.slane %v323, 1
    %v325 = vadd.f32 %v323, %v324
    %vm330 = vcmask 1041409
    %v331 = vsel %vm330, %v311, %v304
    %vm332 = vcmask 1042434
    %v333 = vsel %vm332, %v318, %v331
    %vm334 = vcmask 1043459
    %v335 = vsel %vm334, %v325, %v333
    %v336 = vsel %vm134, %v335, 0
    %338 = vmatpush.xpose.msra.mxu0 0.0
    %339 = vmatpush.xpose.msra.mxu0 0.0
    %340 = vmatpush.xpose.msra.mxu0 0.0
    %341 = vmatpush.xpose.msra.mxu0 0.0
    %342 = vmatpush.xpose.msra.mxu0 0.0
    %343 = vmatpush.xpose.msra.mxu0 0.0
    %344 = vmatpush.xpose.msra.mxu0 0.0
    %345 = vmatpush.xpose.msra.mxu0 0.0
    %346 = vmatpush.xpose.msra.mxu0 0.0
    %347 = vmatpush.xpose.msra.mxu0 0.0
    %348 = vmatpush.xpose.msra.mxu0 0.0
    %349 = vmatpush.xpose.msra.mxu0 0.0
    %350 = vmatpush.xpose.msra.mxu0 0.0
    %351 = vmatpush.xpose.msra.mxu0 0.0
    %352 = vmatpush.xpose.msra.mxu0 0.0
    %353 = vmatpush.xpose.msra.mxu0 %v336
    %354 = vmatmul.f32.gmra.mxu0 %v336
    %v355 = vpop.f32.mrf.mxu0
    %v356 = vadd.f32 0.0, %v355
    %357 = vdwg.mxu0
    %v358 = vmul.f32 %v356, 0.17677669
    %v359 = vsel %vm115, -1e+09, %v358
    %vm360 = vcmask 27648
    %v361 = vsel %vm360, %v359, -inf
    %362 = vmax.xlane.f32.xlu0 %v361
    %v363 = vpop.xlane.xlu0 %362
    %v364 = vsub.f32 %v359, %v363
    %v365 = vmul.f32 %v364, 1.442695
    %v366 = vpow.pop %v365
    %vm367 = vcmp.eq.s32.totalorder %v114, %v112
    %v368 = vsel %vm367, 0.0, %v366
    %v369 = vsel %vm360, %v368, -inf
    %370 = vmax.xlane.f32.xlu0 %v369
    %v371 = vpop.xlane.xlu0 %370
    %vm372 = vcmp.eq.f32.partialorder %v368, %v371
    %v373 = vsel %vm372, %v114, 4
    %v374 = vsel %vm360, %v373, 2147483647
    %v375 = vand.u32 %v374, 65535
    %v376 = vshra.s32 %v374, 16
    %v377 = vcvt.s32.f32 %v375
    %v378 = vcvt.s32.f32 %v376
    %379 = vmin.xlane.f32.xlu0 %v378
    %v380 = vpop.xlane.xlu0 %379
    %vm381 = vcmp.eq.f32.partialorder %v378, %v380
    %v382 = vsel %vm381, %v377, inf
    %383 = vmin.xlane.f32.xlu0 %v382
    %v384 = vpop.xlane.xlu0 %383
    %v385 = vcvt.f32.s32 %v384
    %v386 = vcvt.f32.s32 %v380
    %v387 = vshll.u32 %v386, 16
    %v388 = vadd.s32 %v387, %v385
    %vm389 = vcmp.eq.s32.totalorder %v114, %v388
    %vm390 = vcmp.gt.s32.totalorder %v112, 0
    %vm391 = vmand %vm389, %vm390
    %v392 = vsel %vm391, 1.0, 0.0
    %v394 = vrot.slane %v392, 1
    %v395 = vrot.slane %v392, 2
    %v396 = vrot.slane %v392, 3
    %v397 = vperm.slane %v392, 0
    %v398 = vperm.slane %v394, 0
    %v399 = vperm.slane %v395, 0
    %v400 = vperm.slane %v396, 0
    %401 = vset.pattern.permute.xlu0 0
    %402 = vperm.xlu0 %401, %v397
    %v403 = vpop.permute.xlu0 %402
    %405 = vset.pattern.permute.xlu0 0
    %406 = vperm.xlu0 %405, %v398
    %v407 = vpop.permute.xlu0 %406
    %409 = vset.pattern.permute.xlu0 0
    %410 = vperm.xlu0 %409, %v399
    %v411 = vpop.permute.xlu0 %410
    %413 = vset.pattern.permute.xlu0 0
    %414 = vperm.xlu0 %413, %v400
    %v415 = vpop.permute.xlu0 %414
    %v417 = vmul.f32 %v403, %v230
    %v418 = vmul.f32 %v407, %v230
    %v419 = vmul.f32 %v411, %v230
    %v420 = vmul.f32 %v415, %v230
    %v421 = vadd.f32 %v417, 0.0
    %v422 = vadd.f32 %v418, 0.0
    %v423 = vadd.f32 %v419, 0.0
    %v424 = vadd.f32 %v420, 0.0
    %v425 = vmul.f32 %v403, %v275
    %v426 = vmul.f32 %v407, %v275
    %v427 = vmul.f32 %v411, %v275
    %v428 = vmul.f32 %v415, %v275
    %v429 = vadd.f32 %v425, 0.0
    %v430 = vadd.f32 %v426, 0.0
    %v431 = vadd.f32 %v427, 0.0
    %v432 = vadd.f32 %v428, 0.0
    %433 = vset.pattern.permute.xlu0 1
    %434 = vperm.xlu0 %433, %v397
    %v435 = vpop.permute.xlu0 %434
    %437 = vset.pattern.permute.xlu0 1
    %438 = vperm.xlu0 %437, %v398
    %v439 = vpop.permute.xlu0 %438
    %441 = vset.pattern.permute.xlu0 1
    %442 = vperm.xlu0 %441, %v399
    %v443 = vpop.permute.xlu0 %442
    %445 = vset.pattern.permute.xlu0 1
    %446 = vperm.xlu0 %445, %v400
    %v447 = vpop.permute.xlu0 %446
    %v449 = vmul.f32 %v435, %v233
    %v450 = vmul.f32 %v439, %v233
    %v451 = vmul.f32 %v443, %v233
    %v452 = vmul.f32 %v447, %v233
    %v453 = vadd.f32 %v421, %v449
    %v454 = vadd.f32 %v422, %v450
    %v455 = vadd.f32 %v423, %v451
    %v456 = vadd.f32 %v424, %v452
    %v457 = vmul.f32 %v435, %v278
    %v458 = vmul.f32 %v439, %v278
    %v459 = vmul.f32 %v443, %v278
    %v460 = vmul.f32 %v447, %v278
    %v461 = vadd.f32 %v429, %v457
    %v462 = vadd.f32 %v430, %v458
    %v463 = vadd.f32 %v431, %v459
    %v464 = vadd.f32 %v432, %v460
    %465 = vset.pattern.permute.xlu0 2
    %466 = vperm.xlu0 %465, %v397
    %v467 = vpop.permute.xlu0 %466
    %469 = vset.pattern.permute.xlu0 2
    %470 = vperm.xlu0 %469, %v398
    %v471 = vpop.permute.xlu0 %470
    %473 = vset.pattern.permute.xlu0 2
    %474 = vperm.xlu0 %473, %v399
    %v475 = vpop.permute.xlu0 %474
    %477 = vset.pattern.permute.xlu0 2
    %478 = vperm.xlu0 %477, %v400
    %v479 = vpop.permute.xlu0 %478
    %v481 = vmul.f32 %v467, %v236
    %v482 = vmul.f32 %v471, %v236
    %v483 = vmul.f32 %v475, %v236
    %v484 = vmul.f32 %v479, %v236
    %v485 = vadd.f32 %v453, %v481
    %v486 = vadd.f32 %v454, %v482
    %v487 = vadd.f32 %v455, %v483
    %v488 = vadd.f32 %v456, %v484
    %v489 = vmul.f32 %v467, %v281
    %v490 = vmul.f32 %v471, %v281
    %v491 = vmul.f32 %v475, %v281
    %v492 = vmul.f32 %v479, %v281
    %v493 = vadd.f32 %v461, %v489
    %v494 = vadd.f32 %v462, %v490
    %v495 = vadd.f32 %v463, %v491
    %v496 = vadd.f32 %v464, %v492
    %497 = vset.pattern.permute.xlu0 3
    %498 = vperm.xlu0 %497, %v397
    %v499 = vpop.permute.xlu0 %498
    %501 = vset.pattern.permute.xlu0 3
    %502 = vperm.xlu0 %501, %v398
    %v503 = vpop.permute.xlu0 %502
    %505 = vset.pattern.permute.xlu0 3
    %506 = vperm.xlu0 %505, %v399
    %v507 = vpop.permute.xlu0 %506
    %509 = vset.pattern.permute.xlu0 3
    %510 = vperm.xlu0 %509, %v400
    %v511 = vpop.permute.xlu0 %510
    %v513 = vmul.f32 %v499, %v239
    %v514 = vmul.f32 %v503, %v239
    %v515 = vmul.f32 %v507, %v239
    %v516 = vmul.f32 %v511, %v239
    %v517 = vadd.f32 %v485, %v513
    %v518 = vadd.f32 %v486, %v514
    %v519 = vadd.f32 %v487, %v515
    %v520 = vadd.f32 %v488, %v516
    %v521 = vmul.f32 %v499, %v284
    %v522 = vmul.f32 %v503, %v284
    %v523 = vmul.f32 %v507, %v284
    %v524 = vmul.f32 %v511, %v284
    %v525 = vadd.f32 %v493, %v521
    %v526 = vadd.f32 %v494, %v522
    %v527 = vadd.f32 %v495, %v523
    %v528 = vadd.f32 %v496, %v524
    %v529 = vld [vmem:[%s4] sm:$0x1]
    %v531 = vperm.slane %v529, 0
    %v533 = vadd.f32 %v230, %v531
    %v534 = vadd.f32 %v233, %v531
    %v535 = vadd.f32 %v236, %v531
    %v536 = vadd.f32 %v239, %v531
    %v537 = vld [vmem:[%s6] sm:$0x1]
    %v539 = vperm.slane %v537, 0
    %v541 = vadd.f32 %v275, %v539
    %v542 = vadd.f32 %v278, %v539
    %v543 = vadd.f32 %v281, %v539
    %v544 = vadd.f32 %v284, %v539
    %v545 = vadd.f32 %v517, %v531
    %v546 = vadd.f32 %v518, %v531
    %v547 = vadd.f32 %v519, %v531
    %v548 = vadd.f32 %v520, %v531
    %v549 = vadd.f32 %v525, %v539
    %v550 = vadd.f32 %v526, %v539
    %v551 = vadd.f32 %v527, %v539
    %v552 = vadd.f32 %v528, %v539
    %vm553 = vcmask 64512
    %v555 = vsel %vm553, %v200, 0
    %v558 = vsel %vm553, %v533, 0
    %560 = vmatpush.xpose.msra.mxu0 0.0
    %561 = vmatpush.xpose.msra.mxu0 0.0
    %562 = vmatpush.xpose.msra.mxu0 0.0
    %563 = vmatpush.xpose.msra.mxu0 0.0
    %564 = vmatpush.xpose.msra.mxu0 0.0
    %565 = vmatpush.xpose.msra.mxu0 0.0
    %566 = vmatpush.xpose.msra.mxu0 0.0
    %567 = vmatpush.xpose.msra.mxu0 0.0
    %568 = vmatpush.xpose.msra.mxu0 0.0
    %569 = vmatpush.xpose.msra.mxu0 0.0
    %570 = vmatpush.xpose.msra.mxu0 0.0
    %571 = vmatpush.xpose.msra.mxu0 0.0
    %572 = vmatpush.xpose.msra.mxu0 0.0
    %573 = vmatpush.xpose.msra.mxu0 0.0
    %574 = vmatpush.xpose.msra.mxu0 0.0
    %575 = vmatpush.xpose.msra.mxu0 %v558
    %576 = vmatmul.f32.gmra.mxu0 %v555
    %v577 = vpop.f32.mrf.mxu0
    %v578 = vadd.f32 0.0, %v577
    %579 = vdwg.mxu0
    %v581 = vsel %vm553, %v201, 0
    %v584 = vsel %vm553, %v534, 0
    %586 = vmatpush.xpose.msra.mxu0 0.0
    %587 = vmatpush.xpose.msra.mxu0 0.0
    %588 = vmatpush.xpose.msra.mxu0 0.0
    %589 = vmatpush.xpose.msra.mxu0 0.0
    %590 = vmatpush.xpose.msra.mxu0 0.0
    %591 = vmatpush.xpose.msra.mxu0 0.0
    %592 = vmatpush.xpose.msra.mxu0 0.0
    %593 = vmatpush.xpose.msra.mxu0 0.0
    %594 = vmatpush.xpose.msra.mxu0 0.0
    %595 = vmatpush.xpose.msra.mxu0 0.0
    %596 = vmatpush.xpose.msra.mxu0 0.0
    %597 = vmatpush.xpose.msra.mxu0 0.0
    %598 = vmatpush.xpose.msra.mxu0 0.0
    %599 = vmatpush.xpose.msra.mxu0 0.0
    %600 = vmatpush.xpose.msra.mxu0 0.0
    %601 = vmatpush.xpose.msra.mxu0 %v584
    %602 = vmatmul.f32.gmra.mxu0 %v581
    %v603 = vpop.f32.mrf.mxu0
    %v604 = vadd.f32 0.0, %v603
    %605 = vdwg.mxu0
    %v607 = vsel %vm553, %v202, 0
    %v610 = vsel %vm553, %v535, 0
    %612 = vmatpush.xpose.msra.mxu0 0.0
    %613 = vmatpush.xpose.msra.mxu0 0.0
    %614 = vmatpush.xpose.msra.mxu0 0.0
    %615 = vmatpush.xpose.msra.mxu0 0.0
    %616 = vmatpush.xpose.msra.mxu0 0.0
    %617 = vmatpush.xpose.msra.mxu0 0.0
    %618 = vmatpush.xpose.msra.mxu0 0.0
    %619 = vmatpush.xpose.msra.mxu0 0.0
    %620 = vmatpush.xpose.msra.mxu0 0.0
    %621 = vmatpush.xpose.msra.mxu0 0.0
    %622 = vmatpush.xpose.msra.mxu0 0.0
    %623 = vmatpush.xpose.msra.mxu0 0.0
    %624 = vmatpush.xpose.msra.mxu0 0.0
    %625 = vmatpush.xpose.msra.mxu0 0.0
    %626 = vmatpush.xpose.msra.mxu0 0.0
    %627 = vmatpush.xpose.msra.mxu0 %v610
    %628 = vmatmul.f32.gmra.mxu0 %v607
    %v629 = vpop.f32.mrf.mxu0
    %v630 = vadd.f32 0.0, %v629
    %631 = vdwg.mxu0
    %v633 = vsel %vm553, %v203, 0
    %v636 = vsel %vm553, %v536, 0
    %638 = vmatpush.xpose.msra.mxu0 0.0
    %639 = vmatpush.xpose.msra.mxu0 0.0
    %640 = vmatpush.xpose.msra.mxu0 0.0
    %641 = vmatpush.xpose.msra.mxu0 0.0
    %642 = vmatpush.xpose.msra.mxu0 0.0
    %643 = vmatpush.xpose.msra.mxu0 0.0
    %644 = vmatpush.xpose.msra.mxu0 0.0
    %645 = vmatpush.xpose.msra.mxu0 0.0
    %646 = vmatpush.xpose.msra.mxu0 0.0
    %647 = vmatpush.xpose.msra.mxu0 0.0
    %648 = vmatpush.xpose.msra.mxu0 0.0
    %649 = vmatpush.xpose.msra.mxu0 0.0
    %650 = vmatpush.xpose.msra.mxu0 0.0
    %651 = vmatpush.xpose.msra.mxu0 0.0
    %652 = vmatpush.xpose.msra.mxu0 0.0
    %653 = vmatpush.xpose.msra.mxu0 %v636
    %654 = vmatmul.f32.gmra.mxu0 %v633
    %v655 = vpop.f32.mrf.mxu0
    %v656 = vadd.f32 0.0, %v655
    %657 = vdwg.mxu0
    %v658 = vsel %vm117, -1e+09, %v578
    %v659 = vsel %vm117, -1e+09, %v604
    %v660 = vsel %vm117, -1e+09, %v630
    %v661 = vsel %vm117, -1e+09, %v656
    %v663 = vsel %vm553, %v545, 0
    %665 = vmatpush.xpose.msra.mxu0 0.0
    %666 = vmatpush.xpose.msra.mxu0 0.0
    %667 = vmatpush.xpose.msra.mxu0 0.0
    %668 = vmatpush.xpose.msra.mxu0 0.0
    %669 = vmatpush.xpose.msra.mxu0 0.0
    %670 = vmatpush.xpose.msra.mxu0 0.0
    %671 = vmatpush.xpose.msra.mxu0 0.0
    %672 = vmatpush.xpose.msra.mxu0 0.0
    %673 = vmatpush.xpose.msra.mxu0 0.0
    %674 = vmatpush.xpose.msra.mxu0 0.0
    %675 = vmatpush.xpose.msra.mxu0 0.0
    %676 = vmatpush.xpose.msra.mxu0 0.0
    %677 = vmatpush.xpose.msra.mxu0 0.0
    %678 = vmatpush.xpose.msra.mxu0 0.0
    %679 = vmatpush.xpose.msra.mxu0 0.0
    %680 = vmatpush.xpose.msra.mxu0 %v663
    %681 = vmatmul.f32.gmra.mxu0 %v555
    %v682 = vpop.f32.mrf.mxu0
    %v683 = vadd.f32 0.0, %v682
    %684 = vdwg.mxu0
    %v686 = vsel %vm553, %v546, 0
    %688 = vmatpush.xpose.msra.mxu0 0.0
    %689 = vmatpush.xpose.msra.mxu0 0.0
    %690 = vmatpush.xpose.msra.mxu0 0.0
    %691 = vmatpush.xpose.msra.mxu0 0.0
    %692 = vmatpush.xpose.msra.mxu0 0.0
    %693 = vmatpush.xpose.msra.mxu0 0.0
    %694 = vmatpush.xpose.msra.mxu0 0.0
    %695 = vmatpush.xpose.msra.mxu0 0.0
    %696 = vmatpush.xpose.msra.mxu0 0.0
    %697 = vmatpush.xpose.msra.mxu0 0.0
    %698 = vmatpush.xpose.msra.mxu0 0.0
    %699 = vmatpush.xpose.msra.mxu0 0.0
    %700 = vmatpush.xpose.msra.mxu0 0.0
    %701 = vmatpush.xpose.msra.mxu0 0.0
    %702 = vmatpush.xpose.msra.mxu0 0.0
    %703 = vmatpush.xpose.msra.mxu0 %v686
    %704 = vmatmul.f32.gmra.mxu0 %v581
    %v705 = vpop.f32.mrf.mxu0
    %v706 = vadd.f32 0.0, %v705
    %707 = vdwg.mxu0
    %v709 = vsel %vm553, %v547, 0
    %711 = vmatpush.xpose.msra.mxu0 0.0
    %712 = vmatpush.xpose.msra.mxu0 0.0
    %713 = vmatpush.xpose.msra.mxu0 0.0
    %714 = vmatpush.xpose.msra.mxu0 0.0
    %715 = vmatpush.xpose.msra.mxu0 0.0
    %716 = vmatpush.xpose.msra.mxu0 0.0
    %717 = vmatpush.xpose.msra.mxu0 0.0
    %718 = vmatpush.xpose.msra.mxu0 0.0
    %719 = vmatpush.xpose.msra.mxu0 0.0
    %720 = vmatpush.xpose.msra.mxu0 0.0
    %721 = vmatpush.xpose.msra.mxu0 0.0
    %722 = vmatpush.xpose.msra.mxu0 0.0
    %723 = vmatpush.xpose.msra.mxu0 0.0
    %724 = vmatpush.xpose.msra.mxu0 0.0
    %725 = vmatpush.xpose.msra.mxu0 0.0
    %726 = vmatpush.xpose.msra.mxu0 %v709
    %727 = vmatmul.f32.gmra.mxu0 %v607
    %v728 = vpop.f32.mrf.mxu0
    %v729 = vadd.f32 0.0, %v728
    %730 = vdwg.mxu0
    %v732 = vsel %vm553, %v548, 0
    %734 = vmatpush.xpose.msra.mxu0 0.0
    %735 = vmatpush.xpose.msra.mxu0 0.0
    %736 = vmatpush.xpose.msra.mxu0 0.0
    %737 = vmatpush.xpose.msra.mxu0 0.0
    %738 = vmatpush.xpose.msra.mxu0 0.0
    %739 = vmatpush.xpose.msra.mxu0 0.0
    %740 = vmatpush.xpose.msra.mxu0 0.0
    %741 = vmatpush.xpose.msra.mxu0 0.0
    %742 = vmatpush.xpose.msra.mxu0 0.0
    %743 = vmatpush.xpose.msra.mxu0 0.0
    %744 = vmatpush.xpose.msra.mxu0 0.0
    %745 = vmatpush.xpose.msra.mxu0 0.0
    %746 = vmatpush.xpose.msra.mxu0 0.0
    %747 = vmatpush.xpose.msra.mxu0 0.0
    %748 = vmatpush.xpose.msra.mxu0 0.0
    %749 = vmatpush.xpose.msra.mxu0 %v732
    %750 = vmatmul.f32.gmra.mxu0 %v633
    %v751 = vpop.f32.mrf.mxu0
    %v752 = vadd.f32 0.0, %v751
    %753 = vdwg.mxu0
    %v754 = vsel %vm553, %v658, -inf
    %755 = vmax.xlane.f32.xlu0 %v754
    %v756 = vpop.xlane.xlu0 %755
    %v757 = vsel %vm553, %v659, -inf
    %758 = vmax.xlane.f32.xlu0 %v757
    %v759 = vpop.xlane.xlu0 %758
    %v760 = vsel %vm553, %v660, -inf
    %761 = vmax.xlane.f32.xlu0 %v760
    %v762 = vpop.xlane.xlu0 %761
    %v763 = vsel %vm553, %v661, -inf
    %764 = vmax.xlane.f32.xlu0 %v763
    %v765 = vpop.xlane.xlu0 %764
    %v766 = vsel %vm553, %v683, -inf
    %767 = vmax.xlane.f32.xlu0 %v766
    %v768 = vpop.xlane.xlu0 %767
    %v769 = vsel %vm553, %v706, -inf
    %770 = vmax.xlane.f32.xlu0 %v769
    %v771 = vpop.xlane.xlu0 %770
    %v772 = vsel %vm553, %v729, -inf
    %773 = vmax.xlane.f32.xlu0 %v772
    %v774 = vpop.xlane.xlu0 %773
    %v775 = vsel %vm553, %v752, -inf
    %776 = vmax.xlane.f32.xlu0 %v775
    %v777 = vpop.xlane.xlu0 %776
    %v778 = vmax.f32 %v756, %v768
    %v779 = vmax.f32 %v759, %v771
    %v780 = vmax.f32 %v762, %v774
    %v781 = vmax.f32 %v765, %v777
    %v782 = vsub.f32 %v658, %v778
    %v783 = vsub.f32 %v659, %v779
    %v784 = vsub.f32 %v660, %v780
    %v785 = vsub.f32 %v661, %v781
    %v786 = vmul.f32 %v782, 1.442695
    %v787 = vpow.pop %v786
    %v788 = vmul.f32 %v783, 1.442695
    %v789 = vpow.pop %v788
    %v790 = vmul.f32 %v784, 1.442695
    %v791 = vpow.pop %v790
    %v792 = vmul.f32 %v785, 1.442695
    %v793 = vpow.pop %v792
    %v794 = vsub.f32 %v683, %v778
    %v795 = vsub.f32 %v706, %v779
    %v796 = vsub.f32 %v729, %v780
    %v797 = vsub.f32 %v752, %v781
    %v798 = vmul.f32 %v794, 1.442695
    %v799 = vpow.pop %v798
    %v800 = vmul.f32 %v795, 1.442695
    %v801 = vpow.pop %v800
    %v802 = vmul.f32 %v796, 1.442695
    %v803 = vpow.pop %v802
    %v804 = vmul.f32 %v797, 1.442695
    %v805 = vpow.pop %v804
    %v806 = vsel %vm553, %v787, 0.0
    %807 = vadd.xlane.f32.xlu0 %v806
    %v808 = vpop.xlane.xlu0 %807
    %v809 = vsel %vm553, %v789, 0.0
    %810 = vadd.xlane.f32.xlu0 %v809
    %v811 = vpop.xlane.xlu0 %810
    %v812 = vsel %vm553, %v791, 0.0
    %813 = vadd.xlane.f32.xlu0 %v812
    %v814 = vpop.xlane.xlu0 %813
    %v815 = vsel %vm553, %v793, 0.0
    %816 = vadd.xlane.f32.xlu0 %v815
    %v817 = vpop.xlane.xlu0 %816
    %v818 = vsel %vm553, %v799, 0.0
    %819 = vadd.xlane.f32.xlu0 %v818
    %v820 = vpop.xlane.xlu0 %819
    %v821 = vsel %vm553, %v801, 0.0
    %822 = vadd.xlane.f32.xlu0 %v821
    %v823 = vpop.xlane.xlu0 %822
    %v824 = vsel %vm553, %v803, 0.0
    %825 = vadd.xlane.f32.xlu0 %v824
    %v826 = vpop.xlane.xlu0 %825
    %v827 = vsel %vm553, %v805, 0.0
    %828 = vadd.xlane.f32.xlu0 %v827
    %v829 = vpop.xlane.xlu0 %828
    %v830 = vadd.f32 %v808, %v820
    %v831 = vadd.f32 %v811, %v823
    %v832 = vadd.f32 %v814, %v826
    %v833 = vadd.f32 %v817, %v829
    %v834 = vrcp.pop %v830
    %v835 = vrcp.pop %v831
    %v836 = vrcp.pop %v832
    %v837 = vrcp.pop %v833
    %v839 = vsel %vm553, %v799, 0
    %841 = vmatpush.msra.mxu0 0.0
    %842 = vmatpush.msra.mxu0 0.0
    %843 = vmatpush.msra.mxu0 0.0
    %844 = vmatpush.msra.mxu0 0.0
    %845 = vmatpush.msra.mxu0 0.0
    %846 = vmatpush.msra.mxu0 0.0
    %847 = vmatpush.msra.mxu0 0.0
    %848 = vmatpush.msra.mxu0 0.0
    %849 = vmatpush.msra.mxu0 0.0
    %850 = vmatpush.msra.mxu0 0.0
    %851 = vmatpush.msra.mxu0 0.0
    %852 = vmatpush.msra.mxu0 0.0
    %853 = vmatpush.msra.mxu0 0.0
    %854 = vmatpush.msra.mxu0 0.0
    %855 = vmatpush.msra.mxu0 0.0
    %856 = vmatpush.msra.mxu0 %v549
    %857 = vmatmul.f32.gmra.mxu0 %v839
    %v858 = vpop.f32.mrf.mxu0
    %v859 = vadd.f32 0.0, %v858
    %860 = vdwg.mxu0
    %v862 = vsel %vm553, %v801, 0
    %864 = vmatpush.msra.mxu0 0.0
    %865 = vmatpush.msra.mxu0 0.0
    %866 = vmatpush.msra.mxu0 0.0
    %867 = vmatpush.msra.mxu0 0.0
    %868 = vmatpush.msra.mxu0 0.0
    %869 = vmatpush.msra.mxu0 0.0
    %870 = vmatpush.msra.mxu0 0.0
    %871 = vmatpush.msra.mxu0 0.0
    %872 = vmatpush.msra.mxu0 0.0
    %873 = vmatpush.msra.mxu0 0.0
    %874 = vmatpush.msra.mxu0 0.0
    %875 = vmatpush.msra.mxu0 0.0
    %876 = vmatpush.msra.mxu0 0.0
    %877 = vmatpush.msra.mxu0 0.0
    %878 = vmatpush.msra.mxu0 0.0
    %879 = vmatpush.msra.mxu0 %v550
    %880 = vmatmul.f32.gmra.mxu0 %v862
    %v881 = vpop.f32.mrf.mxu0
    %v882 = vadd.f32 0.0, %v881
    %883 = vdwg.mxu0
    %v885 = vsel %vm553, %v803, 0
    %887 = vmatpush.msra.mxu0 0.0
    %888 = vmatpush.msra.mxu0 0.0
    %889 = vmatpush.msra.mxu0 0.0
    %890 = vmatpush.msra.mxu0 0.0
    %891 = vmatpush.msra.mxu0 0.0
    %892 = vmatpush.msra.mxu0 0.0
    %893 = vmatpush.msra.mxu0 0.0
    %894 = vmatpush.msra.mxu0 0.0
    %895 = vmatpush.msra.mxu0 0.0
    %896 = vmatpush.msra.mxu0 0.0
    %897 = vmatpush.msra.mxu0 0.0
    %898 = vmatpush.msra.mxu0 0.0
    %899 = vmatpush.msra.mxu0 0.0
    %900 = vmatpush.msra.mxu0 0.0
    %901 = vmatpush.msra.mxu0 0.0
    %902 = vmatpush.msra.mxu0 %v551
    %903 = vmatmul.f32.gmra.mxu0 %v885
    %v904 = vpop.f32.mrf.mxu0
    %v905 = vadd.f32 0.0, %v904
    %906 = vdwg.mxu0
    %v908 = vsel %vm553, %v805, 0
    %910 = vmatpush.msra.mxu0 0.0
    %911 = vmatpush.msra.mxu0 0.0
    %912 = vmatpush.msra.mxu0 0.0
    %913 = vmatpush.msra.mxu0 0.0
    %914 = vmatpush.msra.mxu0 0.0
    %915 = vmatpush.msra.mxu0 0.0
    %916 = vmatpush.msra.mxu0 0.0
    %917 = vmatpush.msra.mxu0 0.0
    %918 = vmatpush.msra.mxu0 0.0
    %919 = vmatpush.msra.mxu0 0.0
    %920 = vmatpush.msra.mxu0 0.0
    %921 = vmatpush.msra.mxu0 0.0
    %922 = vmatpush.msra.mxu0 0.0
    %923 = vmatpush.msra.mxu0 0.0
    %924 = vmatpush.msra.mxu0 0.0
    %925 = vmatpush.msra.mxu0 %v552
    %926 = vmatmul.f32.gmra.mxu0 %v908
    %v927 = vpop.f32.mrf.mxu0
    %v928 = vadd.f32 0.0, %v927
    %929 = vdwg.mxu0
    %v931 = vsel %vm553, %v787, 0
    %933 = vmatpush.msra.mxu0 0.0
    %934 = vmatpush.msra.mxu0 0.0
    %935 = vmatpush.msra.mxu0 0.0
    %936 = vmatpush.msra.mxu0 0.0
    %937 = vmatpush.msra.mxu0 0.0
    %938 = vmatpush.msra.mxu0 0.0
    %939 = vmatpush.msra.mxu0 0.0
    %940 = vmatpush.msra.mxu0 0.0
    %941 = vmatpush.msra.mxu0 0.0
    %942 = vmatpush.msra.mxu0 0.0
    %943 = vmatpush.msra.mxu0 0.0
    %944 = vmatpush.msra.mxu0 0.0
    %945 = vmatpush.msra.mxu0 0.0
    %946 = vmatpush.msra.mxu0 0.0
    %947 = vmatpush.msra.mxu0 0.0
    %948 = vmatpush.msra.mxu0 %v541
    %949 = vmatmul.f32.gmra.mxu0 %v931
    %v950 = vpop.f32.mrf.mxu0
    %v951 = vadd.f32 %v859, %v950
    %952 = vdwg.mxu0
    %v954 = vsel %vm553, %v789, 0
    %956 = vmatpush.msra.mxu0 0.0
    %957 = vmatpush.msra.mxu0 0.0
    %958 = vmatpush.msra.mxu0 0.0
    %959 = vmatpush.msra.mxu0 0.0
    %960 = vmatpush.msra.mxu0 0.0
    %961 = vmatpush.msra.mxu0 0.0
    %962 = vmatpush.msra.mxu0 0.0
    %963 = vmatpush.msra.mxu0 0.0
    %964 = vmatpush.msra.mxu0 0.0
    %965 = vmatpush.msra.mxu0 0.0
    %966 = vmatpush.msra.mxu0 0.0
    %967 = vmatpush.msra.mxu0 0.0
    %968 = vmatpush.msra.mxu0 0.0
    %969 = vmatpush.msra.mxu0 0.0
    %970 = vmatpush.msra.mxu0 0.0
    %971 = vmatpush.msra.mxu0 %v542
    %972 = vmatmul.f32.gmra.mxu0 %v954
    %v973 = vpop.f32.mrf.mxu0
    %v974 = vadd.f32 %v882, %v973
    %975 = vdwg.mxu0
    %v977 = vsel %vm553, %v791, 0
    %979 = vmatpush.msra.mxu0 0.0
    %980 = vmatpush.msra.mxu0 0.0
    %981 = vmatpush.msra.mxu0 0.0
    %982 = vmatpush.msra.mxu0 0.0
    %983 = vmatpush.msra.mxu0 0.0
    %984 = vmatpush.msra.mxu0 0.0
    %985 = vmatpush.msra.mxu0 0.0
    %986 = vmatpush.msra.mxu0 0.0
    %987 = vmatpush.msra.mxu0 0.0
    %988 = vmatpush.msra.mxu0 0.0
    %989 = vmatpush.msra.mxu0 0.0
    %990 = vmatpush.msra.mxu0 0.0
    %991 = vmatpush.msra.mxu0 0.0
    %992 = vmatpush.msra.mxu0 0.0
    %993 = vmatpush.msra.mxu0 0.0
    %994 = vmatpush.msra.mxu0 %v543
    %995 = vmatmul.f32.gmra.mxu0 %v977
    %v996 = vpop.f32.mrf.mxu0
    %v997 = vadd.f32 %v905, %v996
    %998 = vdwg.mxu0
    %v1000 = vsel %vm553, %v793, 0
    %1002 = vmatpush.msra.mxu0 0.0
    %1003 = vmatpush.msra.mxu0 0.0
    %1004 = vmatpush.msra.mxu0 0.0
    %1005 = vmatpush.msra.mxu0 0.0
    %1006 = vmatpush.msra.mxu0 0.0
    %1007 = vmatpush.msra.mxu0 0.0
    %1008 = vmatpush.msra.mxu0 0.0
    %1009 = vmatpush.msra.mxu0 0.0
    %1010 = vmatpush.msra.mxu0 0.0
    %1011 = vmatpush.msra.mxu0 0.0
    %1012 = vmatpush.msra.mxu0 0.0
    %1013 = vmatpush.msra.mxu0 0.0
    %1014 = vmatpush.msra.mxu0 0.0
    %1015 = vmatpush.msra.mxu0 0.0
    %1016 = vmatpush.msra.mxu0 0.0
    %1017 = vmatpush.msra.mxu0 %v544
    %1018 = vmatmul.f32.gmra.mxu0 %v1000
    %v1019 = vpop.f32.mrf.mxu0
    %v1020 = vadd.f32 %v928, %v1019
    %1021 = vdwg.mxu0
    %v1022 = vmul.f32 %v951, %v834
    %v1023 = vmul.f32 %v974, %v835
    %v1024 = vmul.f32 %v997, %v836
    %v1025 = vmul.f32 %v1020, %v837
    %1026 = vrot.lane.b32.xlu0 %v200, 120
    %v1027 = vpop.permute.xlu0 %1026
    %1028 = vrot.lane.b32.xlu0 %v533, 120
    %v1029 = vpop.permute.xlu0 %1028
    %v1030 = vsel %vm553, %v1027, 0
    %v1032 = vsel %vm553, %v1029, 0
    %1034 = vmatpush.xpose.msra.mxu0 0.0
    %1035 = vmatpush.xpose.msra.mxu0 0.0
    %1036 = vmatpush.xpose.msra.mxu0 0.0
    %1037 = vmatpush.xpose.msra.mxu0 0.0
    %1038 = vmatpush.xpose.msra.mxu0 0.0
    %1039 = vmatpush.xpose.msra.mxu0 0.0
    %1040 = vmatpush.xpose.msra.mxu0 0.0
    %1041 = vmatpush.xpose.msra.mxu0 0.0
    %1042 = vmatpush.xpose.msra.mxu0 0.0
    %1043 = vmatpush.xpose.msra.mxu0 0.0
    %1044 = vmatpush.xpose.msra.mxu0 0.0
    %1045 = vmatpush.xpose.msra.mxu0 0.0
    %1046 = vmatpush.xpose.msra.mxu0 0.0
    %1047 = vmatpush.xpose.msra.mxu0 0.0
    %1048 = vmatpush.xpose.msra.mxu0 0.0
    %1049 = vmatpush.xpose.msra.mxu0 %v1032
    %1050 = vmatmul.f32.gmra.mxu0 %v1030
    %v1051 = vpop.f32.mrf.mxu0
    %v1052 = vadd.f32 0.0, %v1051
    %1053 = vdwg.mxu0
    %1054 = vrot.lane.b32.xlu0 %v201, 120
    %v1055 = vpop.permute.xlu0 %1054
    %1056 = vrot.lane.b32.xlu0 %v534, 120
    %v1057 = vpop.permute.xlu0 %1056
    %v1058 = vsel %vm553, %v1055, 0
    %v1060 = vsel %vm553, %v1057, 0
    %1062 = vmatpush.xpose.msra.mxu0 0.0
    %1063 = vmatpush.xpose.msra.mxu0 0.0
    %1064 = vmatpush.xpose.msra.mxu0 0.0
    %1065 = vmatpush.xpose.msra.mxu0 0.0
    %1066 = vmatpush.xpose.msra.mxu0 0.0
    %1067 = vmatpush.xpose.msra.mxu0 0.0
    %1068 = vmatpush.xpose.msra.mxu0 0.0
    %1069 = vmatpush.xpose.msra.mxu0 0.0
    %1070 = vmatpush.xpose.msra.mxu0 0.0
    %1071 = vmatpush.xpose.msra.mxu0 0.0
    %1072 = vmatpush.xpose.msra.mxu0 0.0
    %1073 = vmatpush.xpose.msra.mxu0 0.0
    %1074 = vmatpush.xpose.msra.mxu0 0.0
    %1075 = vmatpush.xpose.msra.mxu0 0.0
    %1076 = vmatpush.xpose.msra.mxu0 0.0
    %1077 = vmatpush.xpose.msra.mxu0 %v1060
    %1078 = vmatmul.f32.gmra.mxu0 %v1058
    %v1079 = vpop.f32.mrf.mxu0
    %v1080 = vadd.f32 0.0, %v1079
    %1081 = vdwg.mxu0
    %1082 = vrot.lane.b32.xlu0 %v202, 120
    %v1083 = vpop.permute.xlu0 %1082
    %1084 = vrot.lane.b32.xlu0 %v535, 120
    %v1085 = vpop.permute.xlu0 %1084
    %v1086 = vsel %vm553, %v1083, 0
    %v1088 = vsel %vm553, %v1085, 0
    %1090 = vmatpush.xpose.msra.mxu0 0.0
    %1091 = vmatpush.xpose.msra.mxu0 0.0
    %1092 = vmatpush.xpose.msra.mxu0 0.0
    %1093 = vmatpush.xpose.msra.mxu0 0.0
    %1094 = vmatpush.xpose.msra.mxu0 0.0
    %1095 = vmatpush.xpose.msra.mxu0 0.0
    %1096 = vmatpush.xpose.msra.mxu0 0.0
    %1097 = vmatpush.xpose.msra.mxu0 0.0
    %1098 = vmatpush.xpose.msra.mxu0 0.0
    %1099 = vmatpush.xpose.msra.mxu0 0.0
    %1100 = vmatpush.xpose.msra.mxu0 0.0
    %1101 = vmatpush.xpose.msra.mxu0 0.0
    %1102 = vmatpush.xpose.msra.mxu0 0.0
    %1103 = vmatpush.xpose.msra.mxu0 0.0
    %1104 = vmatpush.xpose.msra.mxu0 0.0
    %1105 = vmatpush.xpose.msra.mxu0 %v1088
    %1106 = vmatmul.f32.gmra.mxu0 %v1086
    %v1107 = vpop.f32.mrf.mxu0
    %v1108 = vadd.f32 0.0, %v1107
    %1109 = vdwg.mxu0
    %1110 = vrot.lane.b32.xlu0 %v203, 120
    %v1111 = vpop.permute.xlu0 %1110
    %1112 = vrot.lane.b32.xlu0 %v536, 120
    %v1113 = vpop.permute.xlu0 %1112
    %v1114 = vsel %vm553, %v1111, 0
    %v1116 = vsel %vm553, %v1113, 0
    %1118 = vmatpush.xpose.msra.mxu0 0.0
    %1119 = vmatpush.xpose.msra.mxu0 0.0
    %1120 = vmatpush.xpose.msra.mxu0 0.0
    %1121 = vmatpush.xpose.msra.mxu0 0.0
    %1122 = vmatpush.xpose.msra.mxu0 0.0
    %1123 = vmatpush.xpose.msra.mxu0 0.0
    %1124 = vmatpush.xpose.msra.mxu0 0.0
    %1125 = vmatpush.xpose.msra.mxu0 0.0
    %1126 = vmatpush.xpose.msra.mxu0 0.0
    %1127 = vmatpush.xpose.msra.mxu0 0.0
    %1128 = vmatpush.xpose.msra.mxu0 0.0
    %1129 = vmatpush.xpose.msra.mxu0 0.0
    %1130 = vmatpush.xpose.msra.mxu0 0.0
    %1131 = vmatpush.xpose.msra.mxu0 0.0
    %1132 = vmatpush.xpose.msra.mxu0 0.0
    %1133 = vmatpush.xpose.msra.mxu0 %v1116
    %1134 = vmatmul.f32.gmra.mxu0 %v1114
    %v1135 = vpop.f32.mrf.mxu0
    %v1136 = vadd.f32 0.0, %v1135
    %1137 = vdwg.mxu0
    %v1138 = vsel %vm117, -1e+09, %v1052
    %v1139 = vsel %vm117, -1e+09, %v1080
    %v1140 = vsel %vm117, -1e+09, %v1108
    %v1141 = vsel %vm117, -1e+09, %v1136
    %1142 = vrot.lane.b32.xlu0 %v545, 120
    %v1143 = vpop.permute.xlu0 %1142
    %v1144 = vsel %vm553, %v1143, 0
    %1146 = vmatpush.xpose.msra.mxu0 0.0
    %1147 = vmatpush.xpose.msra.mxu0 0.0
    %1148 = vmatpush.xpose.msra.mxu0 0.0
    %1149 = vmatpush.xpose.msra.mxu0 0.0
    %1150 = vmatpush.xpose.msra.mxu0 0.0
    %1151 = vmatpush.xpose.msra.mxu0 0.0
    %1152 = vmatpush.xpose.msra.mxu0 0.0
    %1153 = vmatpush.xpose.msra.mxu0 0.0
    %1154 = vmatpush.xpose.msra.mxu0 0.0
    %1155 = vmatpush.xpose.msra.mxu0 0.0
    %1156 = vmatpush.xpose.msra.mxu0 0.0
    %1157 = vmatpush.xpose.msra.mxu0 0.0
    %1158 = vmatpush.xpose.msra.mxu0 0.0
    %1159 = vmatpush.xpose.msra.mxu0 0.0
    %1160 = vmatpush.xpose.msra.mxu0 0.0
    %1161 = vmatpush.xpose.msra.mxu0 %v1144
    %1162 = vmatmul.f32.gmra.mxu0 %v1030
    %v1163 = vpop.f32.mrf.mxu0
    %v1164 = vadd.f32 0.0, %v1163
    %1165 = vdwg.mxu0
    %1166 = vrot.lane.b32.xlu0 %v546, 120
    %v1167 = vpop.permute.xlu0 %1166
    %v1168 = vsel %vm553, %v1167, 0
    %1170 = vmatpush.xpose.msra.mxu0 0.0
    %1171 = vmatpush.xpose.msra.mxu0 0.0
    %1172 = vmatpush.xpose.msra.mxu0 0.0
    %1173 = vmatpush.xpose.msra.mxu0 0.0
    %1174 = vmatpush.xpose.msra.mxu0 0.0
    %1175 = vmatpush.xpose.msra.mxu0 0.0
    %1176 = vmatpush.xpose.msra.mxu0 0.0
    %1177 = vmatpush.xpose.msra.mxu0 0.0
    %1178 = vmatpush.xpose.msra.mxu0 0.0
    %1179 = vmatpush.xpose.msra.mxu0 0.0
    %1180 = vmatpush.xpose.msra.mxu0 0.0
    %1181 = vmatpush.xpose.msra.mxu0 0.0
    %1182 = vmatpush.xpose.msra.mxu0 0.0
    %1183 = vmatpush.xpose.msra.mxu0 0.0
    %1184 = vmatpush.xpose.msra.mxu0 0.0
    %1185 = vmatpush.xpose.msra.mxu0 %v1168
    %1186 = vmatmul.f32.gmra.mxu0 %v1058
    %v1187 = vpop.f32.mrf.mxu0
    %v1188 = vadd.f32 0.0, %v1187
    %1189 = vdwg.mxu0
    %1190 = vrot.lane.b32.xlu0 %v547, 120
    %v1191 = vpop.permute.xlu0 %1190
    %v1192 = vsel %vm553, %v1191, 0
    %1194 = vmatpush.xpose.msra.mxu0 0.0
    %1195 = vmatpush.xpose.msra.mxu0 0.0
    %1196 = vmatpush.xpose.msra.mxu0 0.0
    %1197 = vmatpush.xpose.msra.mxu0 0.0
    %1198 = vmatpush.xpose.msra.mxu0 0.0
    %1199 = vmatpush.xpose.msra.mxu0 0.0
    %1200 = vmatpush.xpose.msra.mxu0 0.0
    %1201 = vmatpush.xpose.msra.mxu0 0.0
    %1202 = vmatpush.xpose.msra.mxu0 0.0
    %1203 = vmatpush.xpose.msra.mxu0 0.0
    %1204 = vmatpush.xpose.msra.mxu0 0.0
    %1205 = vmatpush.xpose.msra.mxu0 0.0
    %1206 = vmatpush.xpose.msra.mxu0 0.0
    %1207 = vmatpush.xpose.msra.mxu0 0.0
    %1208 = vmatpush.xpose.msra.mxu0 0.0
    %1209 = vmatpush.xpose.msra.mxu0 %v1192
    %1210 = vmatmul.f32.gmra.mxu0 %v1086
    %v1211 = vpop.f32.mrf.mxu0
    %v1212 = vadd.f32 0.0, %v1211
    %1213 = vdwg.mxu0
    %1214 = vrot.lane.b32.xlu0 %v548, 120
    %v1215 = vpop.permute.xlu0 %1214
    %v1216 = vsel %vm553, %v1215, 0
    %1218 = vmatpush.xpose.msra.mxu0 0.0
    %1219 = vmatpush.xpose.msra.mxu0 0.0
    %1220 = vmatpush.xpose.msra.mxu0 0.0
    %1221 = vmatpush.xpose.msra.mxu0 0.0
    %1222 = vmatpush.xpose.msra.mxu0 0.0
    %1223 = vmatpush.xpose.msra.mxu0 0.0
    %1224 = vmatpush.xpose.msra.mxu0 0.0
    %1225 = vmatpush.xpose.msra.mxu0 0.0
    %1226 = vmatpush.xpose.msra.mxu0 0.0
    %1227 = vmatpush.xpose.msra.mxu0 0.0
    %1228 = vmatpush.xpose.msra.mxu0 0.0
    %1229 = vmatpush.xpose.msra.mxu0 0.0
    %1230 = vmatpush.xpose.msra.mxu0 0.0
    %1231 = vmatpush.xpose.msra.mxu0 0.0
    %1232 = vmatpush.xpose.msra.mxu0 0.0
    %1233 = vmatpush.xpose.msra.mxu0 %v1216
    %1234 = vmatmul.f32.gmra.mxu0 %v1114
    %v1235 = vpop.f32.mrf.mxu0
    %v1236 = vadd.f32 0.0, %v1235
    %1237 = vdwg.mxu0
    %v1238 = vsel %vm553, %v1138, -inf
    %1239 = vmax.xlane.f32.xlu0 %v1238
    %v1240 = vpop.xlane.xlu0 %1239
    %v1241 = vsel %vm553, %v1139, -inf
    %1242 = vmax.xlane.f32.xlu0 %v1241
    %v1243 = vpop.xlane.xlu0 %1242
    %v1244 = vsel %vm553, %v1140, -inf
    %1245 = vmax.xlane.f32.xlu0 %v1244
    %v1246 = vpop.xlane.xlu0 %1245
    %v1247 = vsel %vm553, %v1141, -inf
    %1248 = vmax.xlane.f32.xlu0 %v1247
    %v1249 = vpop.xlane.xlu0 %1248
    %v1250 = vsel %vm553, %v1164, -inf
    %1251 = vmax.xlane.f32.xlu0 %v1250
    %v1252 = vpop.xlane.xlu0 %1251
    %v1253 = vsel %vm553, %v1188, -inf
    %1254 = vmax.xlane.f32.xlu0 %v1253
    %v1255 = vpop.xlane.xlu0 %1254
    %v1256 = vsel %vm553, %v1212, -inf
    %1257 = vmax.xlane.f32.xlu0 %v1256
    %v1258 = vpop.xlane.xlu0 %1257
    %v1259 = vsel %vm553, %v1236, -inf
    %1260 = vmax.xlane.f32.xlu0 %v1259
    %v1261 = vpop.xlane.xlu0 %1260
    %v1262 = vmax.f32 %v1240, %v1252
    %v1263 = vmax.f32 %v1243, %v1255
    %v1264 = vmax.f32 %v1246, %v1258
    %v1265 = vmax.f32 %v1249, %v1261
    %v1266 = vsub.f32 %v1138, %v1262
    %v1267 = vsub.f32 %v1139, %v1263
    %v1268 = vsub.f32 %v1140, %v1264
    %v1269 = vsub.f32 %v1141, %v1265
    %v1270 = vmul.f32 %v1266, 1.442695
    %v1271 = vpow.pop %v1270
    %v1272 = vmul.f32 %v1267, 1.442695
    %v1273 = vpow.pop %v1272
    %v1274 = vmul.f32 %v1268, 1.442695
    %v1275 = vpow.pop %v1274
    %v1276 = vmul.f32 %v1269, 1.442695
    %v1277 = vpow.pop %v1276
    %v1278 = vsub.f32 %v1164, %v1262
    %v1279 = vsub.f32 %v1188, %v1263
    %v1280 = vsub.f32 %v1212, %v1264
    %v1281 = vsub.f32 %v1236, %v1265
    %v1282 = vmul.f32 %v1278, 1.442695
    %v1283 = vpow.pop %v1282
    %v1284 = vmul.f32 %v1279, 1.442695
    %v1285 = vpow.pop %v1284
    %v1286 = vmul.f32 %v1280, 1.442695
    %v1287 = vpow.pop %v1286
    %v1288 = vmul.f32 %v1281, 1.442695
    %v1289 = vpow.pop %v1288
    %v1290 = vsel %vm553, %v1271, 0.0
    %1291 = vadd.xlane.f32.xlu0 %v1290
    %v1292 = vpop.xlane.xlu0 %1291
    %v1293 = vsel %vm553, %v1273, 0.0
    %1294 = vadd.xlane.f32.xlu0 %v1293
    %v1295 = vpop.xlane.xlu0 %1294
    %v1296 = vsel %vm553, %v1275, 0.0
    %1297 = vadd.xlane.f32.xlu0 %v1296
    %v1298 = vpop.xlane.xlu0 %1297
    %v1299 = vsel %vm553, %v1277, 0.0
    %1300 = vadd.xlane.f32.xlu0 %v1299
    %v1301 = vpop.xlane.xlu0 %1300
    %v1302 = vsel %vm553, %v1283, 0.0
    %1303 = vadd.xlane.f32.xlu0 %v1302
    %v1304 = vpop.xlane.xlu0 %1303
    %v1305 = vsel %vm553, %v1285, 0.0
    %1306 = vadd.xlane.f32.xlu0 %v1305
    %v1307 = vpop.xlane.xlu0 %1306
    %v1308 = vsel %vm553, %v1287, 0.0
    %1309 = vadd.xlane.f32.xlu0 %v1308
    %v1310 = vpop.xlane.xlu0 %1309
    %v1311 = vsel %vm553, %v1289, 0.0
    %1312 = vadd.xlane.f32.xlu0 %v1311
    %v1313 = vpop.xlane.xlu0 %1312
    %v1314 = vadd.f32 %v1292, %v1304
    %v1315 = vadd.f32 %v1295, %v1307
    %v1316 = vadd.f32 %v1298, %v1310
    %v1317 = vadd.f32 %v1301, %v1313
    %v1318 = vrcp.pop %v1314
    %v1319 = vrcp.pop %v1315
    %v1320 = vrcp.pop %v1316
    %v1321 = vrcp.pop %v1317
    %1323 = vrot.lane.b32.xlu0 %v549, 120
    %v1324 = vpop.permute.xlu0 %1323
    %v1327 = vsel %vm553, %v1283, 0
    %1329 = vmatpush.msra.mxu0 0.0
    %1330 = vmatpush.msra.mxu0 0.0
    %1331 = vmatpush.msra.mxu0 0.0
    %1332 = vmatpush.msra.mxu0 0.0
    %1333 = vmatpush.msra.mxu0 0.0
    %1334 = vmatpush.msra.mxu0 0.0
    %1335 = vmatpush.msra.mxu0 0.0
    %1336 = vmatpush.msra.mxu0 0.0
    %1337 = vmatpush.msra.mxu0 0.0
    %1338 = vmatpush.msra.mxu0 0.0
    %1339 = vmatpush.msra.mxu0 0.0
    %1340 = vmatpush.msra.mxu0 0.0
    %1341 = vmatpush.msra.mxu0 0.0
    %1342 = vmatpush.msra.mxu0 0.0
    %1343 = vmatpush.msra.mxu0 0.0
    %1344 = vmatpush.msra.mxu0 %v1324
    %1345 = vmatmul.f32.gmra.mxu0 %v1327
    %v1346 = vpop.f32.mrf.mxu0
    %v1347 = vadd.f32 0.0, %v1346
    %1348 = vdwg.mxu0
    %1350 = vrot.lane.b32.xlu0 %v550, 120
    %v1351 = vpop.permute.xlu0 %1350
    %v1354 = vsel %vm553, %v1285, 0
    %1356 = vmatpush.msra.mxu0 0.0
    %1357 = vmatpush.msra.mxu0 0.0
    %1358 = vmatpush.msra.mxu0 0.0
    %1359 = vmatpush.msra.mxu0 0.0
    %1360 = vmatpush.msra.mxu0 0.0
    %1361 = vmatpush.msra.mxu0 0.0
    %1362 = vmatpush.msra.mxu0 0.0
    %1363 = vmatpush.msra.mxu0 0.0
    %1364 = vmatpush.msra.mxu0 0.0
    %1365 = vmatpush.msra.mxu0 0.0
    %1366 = vmatpush.msra.mxu0 0.0
    %1367 = vmatpush.msra.mxu0 0.0
    %1368 = vmatpush.msra.mxu0 0.0
    %1369 = vmatpush.msra.mxu0 0.0
    %1370 = vmatpush.msra.mxu0 0.0
    %1371 = vmatpush.msra.mxu0 %v1351
    %1372 = vmatmul.f32.gmra.mxu0 %v1354
    %v1373 = vpop.f32.mrf.mxu0
    %v1374 = vadd.f32 0.0, %v1373
    %1375 = vdwg.mxu0
    %1377 = vrot.lane.b32.xlu0 %v551, 120
    %v1378 = vpop.permute.xlu0 %1377
    %v1381 = vsel %vm553, %v1287, 0
    %1383 = vmatpush.msra.mxu0 0.0
    %1384 = vmatpush.msra.mxu0 0.0
    %1385 = vmatpush.msra.mxu0 0.0
    %1386 = vmatpush.msra.mxu0 0.0
    %1387 = vmatpush.msra.mxu0 0.0
    %1388 = vmatpush.msra.mxu0 0.0
    %1389 = vmatpush.msra.mxu0 0.0
    %1390 = vmatpush.msra.mxu0 0.0
    %1391 = vmatpush.msra.mxu0 0.0
    %1392 = vmatpush.msra.mxu0 0.0
    %1393 = vmatpush.msra.mxu0 0.0
    %1394 = vmatpush.msra.mxu0 0.0
    %1395 = vmatpush.msra.mxu0 0.0
    %1396 = vmatpush.msra.mxu0 0.0
    %1397 = vmatpush.msra.mxu0 0.0
    %1398 = vmatpush.msra.mxu0 %v1378
    %1399 = vmatmul.f32.gmra.mxu0 %v1381
    %v1400 = vpop.f32.mrf.mxu0
    %v1401 = vadd.f32 0.0, %v1400
    %1402 = vdwg.mxu0
    %1404 = vrot.lane.b32.xlu0 %v552, 120
    %v1405 = vpop.permute.xlu0 %1404
    %v1408 = vsel %vm553, %v1289, 0
    %1410 = vmatpush.msra.mxu0 0.0
    %1411 = vmatpush.msra.mxu0 0.0
    %1412 = vmatpush.msra.mxu0 0.0
    %1413 = vmatpush.msra.mxu0 0.0
    %1414 = vmatpush.msra.mxu0 0.0
    %1415 = vmatpush.msra.mxu0 0.0
    %1416 = vmatpush.msra.mxu0 0.0
    %1417 = vmatpush.msra.mxu0 0.0
    %1418 = vmatpush.msra.mxu0 0.0
    %1419 = vmatpush.msra.mxu0 0.0
    %1420 = vmatpush.msra.mxu0 0.0
    %1421 = vmatpush.msra.mxu0 0.0
    %1422 = vmatpush.msra.mxu0 0.0
    %1423 = vmatpush.msra.mxu0 0.0
    %1424 = vmatpush.msra.mxu0 0.0
    %1425 = vmatpush.msra.mxu0 %v1405
    %1426 = vmatmul.f32.gmra.mxu0 %v1408
    %v1427 = vpop.f32.mrf.mxu0
    %v1428 = vadd.f32 0.0, %v1427
    %1429 = vdwg.mxu0
    %1431 = vrot.lane.b32.xlu0 %v541, 120
    %v1432 = vpop.permute.xlu0 %1431
    %v1435 = vsel %vm553, %v1271, 0
    %1437 = vmatpush.msra.mxu0 0.0
    %1438 = vmatpush.msra.mxu0 0.0
    %1439 = vmatpush.msra.mxu0 0.0
    %1440 = vmatpush.msra.mxu0 0.0
    %1441 = vmatpush.msra.mxu0 0.0
    %1442 = vmatpush.msra.mxu0 0.0
    %1443 = vmatpush.msra.mxu0 0.0
    %1444 = vmatpush.msra.mxu0 0.0
    %1445 = vmatpush.msra.mxu0 0.0
    %1446 = vmatpush.msra.mxu0 0.0
    %1447 = vmatpush.msra.mxu0 0.0
    %1448 = vmatpush.msra.mxu0 0.0
    %1449 = vmatpush.msra.mxu0 0.0
    %1450 = vmatpush.msra.mxu0 0.0
    %1451 = vmatpush.msra.mxu0 0.0
    %1452 = vmatpush.msra.mxu0 %v1432
    %1453 = vmatmul.f32.gmra.mxu0 %v1435
    %v1454 = vpop.f32.mrf.mxu0
    %v1455 = vadd.f32 %v1347, %v1454
    %1456 = vdwg.mxu0
    %1458 = vrot.lane.b32.xlu0 %v542, 120
    %v1459 = vpop.permute.xlu0 %1458
    %v1462 = vsel %vm553, %v1273, 0
    %1464 = vmatpush.msra.mxu0 0.0
    %1465 = vmatpush.msra.mxu0 0.0
    %1466 = vmatpush.msra.mxu0 0.0
    %1467 = vmatpush.msra.mxu0 0.0
    %1468 = vmatpush.msra.mxu0 0.0
    %1469 = vmatpush.msra.mxu0 0.0
    %1470 = vmatpush.msra.mxu0 0.0
    %1471 = vmatpush.msra.mxu0 0.0
    %1472 = vmatpush.msra.mxu0 0.0
    %1473 = vmatpush.msra.mxu0 0.0
    %1474 = vmatpush.msra.mxu0 0.0
    %1475 = vmatpush.msra.mxu0 0.0
    %1476 = vmatpush.msra.mxu0 0.0
    %1477 = vmatpush.msra.mxu0 0.0
    %1478 = vmatpush.msra.mxu0 0.0
    %1479 = vmatpush.msra.mxu0 %v1459
    %1480 = vmatmul.f32.gmra.mxu0 %v1462
    %v1481 = vpop.f32.mrf.mxu0
    %v1482 = vadd.f32 %v1374, %v1481
    %1483 = vdwg.mxu0
    %1485 = vrot.lane.b32.xlu0 %v543, 120
    %v1486 = vpop.permute.xlu0 %1485
    %v1489 = vsel %vm553, %v1275, 0
    %1491 = vmatpush.msra.mxu0 0.0
    %1492 = vmatpush.msra.mxu0 0.0
    %1493 = vmatpush.msra.mxu0 0.0
    %1494 = vmatpush.msra.mxu0 0.0
    %1495 = vmatpush.msra.mxu0 0.0
    %1496 = vmatpush.msra.mxu0 0.0
    %1497 = vmatpush.msra.mxu0 0.0
    %1498 = vmatpush.msra.mxu0 0.0
    %1499 = vmatpush.msra.mxu0 0.0
    %1500 = vmatpush.msra.mxu0 0.0
    %1501 = vmatpush.msra.mxu0 0.0
    %1502 = vmatpush.msra.mxu0 0.0
    %1503 = vmatpush.msra.mxu0 0.0
    %1504 = vmatpush.msra.mxu0 0.0
    %1505 = vmatpush.msra.mxu0 0.0
    %1506 = vmatpush.msra.mxu0 %v1486
    %1507 = vmatmul.f32.gmra.mxu0 %v1489
    %v1508 = vpop.f32.mrf.mxu0
    %v1509 = vadd.f32 %v1401, %v1508
    %1510 = vdwg.mxu0
    %1512 = vrot.lane.b32.xlu0 %v544, 120
    %v1513 = vpop.permute.xlu0 %1512
    %v1516 = vsel %vm553, %v1277, 0
    %1518 = vmatpush.msra.mxu0 0.0
    %1519 = vmatpush.msra.mxu0 0.0
    %1520 = vmatpush.msra.mxu0 0.0
    %1521 = vmatpush.msra.mxu0 0.0
    %1522 = vmatpush.msra.mxu0 0.0
    %1523 = vmatpush.msra.mxu0 0.0
    %1524 = vmatpush.msra.mxu0 0.0
    %1525 = vmatpush.msra.mxu0 0.0
    %1526 = vmatpush.msra.mxu0 0.0
    %1527 = vmatpush.msra.mxu0 0.0
    %1528 = vmatpush.msra.mxu0 0.0
    %1529 = vmatpush.msra.mxu0 0.0
    %1530 = vmatpush.msra.mxu0 0.0
    %1531 = vmatpush.msra.mxu0 0.0
    %1532 = vmatpush.msra.mxu0 0.0
    %1533 = vmatpush.msra.mxu0 %v1513
    %1534 = vmatmul.f32.gmra.mxu0 %v1516
    %v1535 = vpop.f32.mrf.mxu0
    %v1536 = vadd.f32 %v1428, %v1535
    %1537 = vdwg.mxu0
    %v1538 = vmul.f32 %v1455, %v1318
    %v1539 = vmul.f32 %v1482, %v1319
    %v1540 = vmul.f32 %v1509, %v1320
    %v1541 = vmul.f32 %v1536, %v1321
    %1542 = vrot.lane.b32.xlu0 %v200, 112
    %v1543 = vpop.permute.xlu0 %1542
    %1544 = vrot.lane.b32.xlu0 %v533, 112
    %v1545 = vpop.permute.xlu0 %1544
    %v1546 = vsel %vm553, %v1543, 0
    %v1548 = vsel %vm553, %v1545, 0
    %1550 = vmatpush.xpose.msra.mxu0 0.0
    %1551 = vmatpush.xpose.msra.mxu0 0.0
    %1552 = vmatpush.xpose.msra.mxu0 0.0
    %1553 = vmatpush.xpose.msra.mxu0 0.0
    %1554 = vmatpush.xpose.msra.mxu0 0.0
    %1555 = vmatpush.xpose.msra.mxu0 0.0
    %1556 = vmatpush.xpose.msra.mxu0 0.0
    %1557 = vmatpush.xpose.msra.mxu0 0.0
    %1558 = vmatpush.xpose.msra.mxu0 0.0
    %1559 = vmatpush.xpose.msra.mxu0 0.0
    %1560 = vmatpush.xpose.msra.mxu0 0.0
    %1561 = vmatpush.xpose.msra.mxu0 0.0
    %1562 = vmatpush.xpose.msra.mxu0 0.0
    %1563 = vmatpush.xpose.msra.mxu0 0.0
    %1564 = vmatpush.xpose.msra.mxu0 0.0
    %1565 = vmatpush.xpose.msra.mxu0 %v1548
    %1566 = vmatmul.f32.gmra.mxu0 %v1546
    %v1567 = vpop.f32.mrf.mxu0
    %v1568 = vadd.f32 0.0, %v1567
    %1569 = vdwg.mxu0
    %1570 = vrot.lane.b32.xlu0 %v201, 112
    %v1571 = vpop.permute.xlu0 %1570
    %1572 = vrot.lane.b32.xlu0 %v534, 112
    %v1573 = vpop.permute.xlu0 %1572
    %v1574 = vsel %vm553, %v1571, 0
    %v1576 = vsel %vm553, %v1573, 0
    %1578 = vmatpush.xpose.msra.mxu0 0.0
    %1579 = vmatpush.xpose.msra.mxu0 0.0
    %1580 = vmatpush.xpose.msra.mxu0 0.0
    %1581 = vmatpush.xpose.msra.mxu0 0.0
    %1582 = vmatpush.xpose.msra.mxu0 0.0
    %1583 = vmatpush.xpose.msra.mxu0 0.0
    %1584 = vmatpush.xpose.msra.mxu0 0.0
    %1585 = vmatpush.xpose.msra.mxu0 0.0
    %1586 = vmatpush.xpose.msra.mxu0 0.0
    %1587 = vmatpush.xpose.msra.mxu0 0.0
    %1588 = vmatpush.xpose.msra.mxu0 0.0
    %1589 = vmatpush.xpose.msra.mxu0 0.0
    %1590 = vmatpush.xpose.msra.mxu0 0.0
    %1591 = vmatpush.xpose.msra.mxu0 0.0
    %1592 = vmatpush.xpose.msra.mxu0 0.0
    %1593 = vmatpush.xpose.msra.mxu0 %v1576
    %1594 = vmatmul.f32.gmra.mxu0 %v1574
    %v1595 = vpop.f32.mrf.mxu0
    %v1596 = vadd.f32 0.0, %v1595
    %1597 = vdwg.mxu0
    %1598 = vrot.lane.b32.xlu0 %v202, 112
    %v1599 = vpop.permute.xlu0 %1598
    %1600 = vrot.lane.b32.xlu0 %v535, 112
    %v1601 = vpop.permute.xlu0 %1600
    %v1602 = vsel %vm553, %v1599, 0
    %v1604 = vsel %vm553, %v1601, 0
    %1606 = vmatpush.xpose.msra.mxu0 0.0
    %1607 = vmatpush.xpose.msra.mxu0 0.0
    %1608 = vmatpush.xpose.msra.mxu0 0.0
    %1609 = vmatpush.xpose.msra.mxu0 0.0
    %1610 = vmatpush.xpose.msra.mxu0 0.0
    %1611 = vmatpush.xpose.msra.mxu0 0.0
    %1612 = vmatpush.xpose.msra.mxu0 0.0
    %1613 = vmatpush.xpose.msra.mxu0 0.0
    %1614 = vmatpush.xpose.msra.mxu0 0.0
    %1615 = vmatpush.xpose.msra.mxu0 0.0
    %1616 = vmatpush.xpose.msra.mxu0 0.0
    %1617 = vmatpush.xpose.msra.mxu0 0.0
    %1618 = vmatpush.xpose.msra.mxu0 0.0
    %1619 = vmatpush.xpose.msra.mxu0 0.0
    %1620 = vmatpush.xpose.msra.mxu0 0.0
    %1621 = vmatpush.xpose.msra.mxu0 %v1604
    %1622 = vmatmul.f32.gmra.mxu0 %v1602
    %v1623 = vpop.f32.mrf.mxu0
    %v1624 = vadd.f32 0.0, %v1623
    %1625 = vdwg.mxu0
    %1626 = vrot.lane.b32.xlu0 %v203, 112
    %v1627 = vpop.permute.xlu0 %1626
    %1628 = vrot.lane.b32.xlu0 %v536, 112
    %v1629 = vpop.permute.xlu0 %1628
    %v1630 = vsel %vm553, %v1627, 0
    %v1632 = vsel %vm553, %v1629, 0
    %1634 = vmatpush.xpose.msra.mxu0 0.0
    %1635 = vmatpush.xpose.msra.mxu0 0.0
    %1636 = vmatpush.xpose.msra.mxu0 0.0
    %1637 = vmatpush.xpose.msra.mxu0 0.0
    %1638 = vmatpush.xpose.msra.mxu0 0.0
    %1639 = vmatpush.xpose.msra.mxu0 0.0
    %1640 = vmatpush.xpose.msra.mxu0 0.0
    %1641 = vmatpush.xpose.msra.mxu0 0.0
    %1642 = vmatpush.xpose.msra.mxu0 0.0
    %1643 = vmatpush.xpose.msra.mxu0 0.0
    %1644 = vmatpush.xpose.msra.mxu0 0.0
    %1645 = vmatpush.xpose.msra.mxu0 0.0
    %1646 = vmatpush.xpose.msra.mxu0 0.0
    %1647 = vmatpush.xpose.msra.mxu0 0.0
    %1648 = vmatpush.xpose.msra.mxu0 0.0
    %1649 = vmatpush.xpose.msra.mxu0 %v1632
    %1650 = vmatmul.f32.gmra.mxu0 %v1630
    %v1651 = vpop.f32.mrf.mxu0
    %v1652 = vadd.f32 0.0, %v1651
    %1653 = vdwg.mxu0
    %v1654 = vsel %vm117, -1e+09, %v1568
    %v1655 = vsel %vm117, -1e+09, %v1596
    %v1656 = vsel %vm117, -1e+09, %v1624
    %v1657 = vsel %vm117, -1e+09, %v1652
    %1658 = vrot.lane.b32.xlu0 %v545, 112
    %v1659 = vpop.permute.xlu0 %1658
    %v1660 = vsel %vm553, %v1659, 0
    %1662 = vmatpush.xpose.msra.mxu0 0.0
    %1663 = vmatpush.xpose.msra.mxu0 0.0
    %1664 = vmatpush.xpose.msra.mxu0 0.0
    %1665 = vmatpush.xpose.msra.mxu0 0.0
    %1666 = vmatpush.xpose.msra.mxu0 0.0
    %1667 = vmatpush.xpose.msra.mxu0 0.0
    %1668 = vmatpush.xpose.msra.mxu0 0.0
    %1669 = vmatpush.xpose.msra.mxu0 0.0
    %1670 = vmatpush.xpose.msra.mxu0 0.0
    %1671 = vmatpush.xpose.msra.mxu0 0.0
    %1672 = vmatpush.xpose.msra.mxu0 0.0
    %1673 = vmatpush.xpose.msra.mxu0 0.0
    %1674 = vmatpush.xpose.msra.mxu0 0.0
    %1675 = vmatpush.xpose.msra.mxu0 0.0
    %1676 = vmatpush.xpose.msra.mxu0 0.0
    %1677 = vmatpush.xpose.msra.mxu0 %v1660
    %1678 = vmatmul.f32.gmra.mxu0 %v1546
    %v1679 = vpop.f32.mrf.mxu0
    %v1680 = vadd.f32 0.0, %v1679
    %1681 = vdwg.mxu0
    %1682 = vrot.lane.b32.xlu0 %v546, 112
    %v1683 = vpop.permute.xlu0 %1682
    %v1684 = vsel %vm553, %v1683, 0
    %1686 = vmatpush.xpose.msra.mxu0 0.0
    %1687 = vmatpush.xpose.msra.mxu0 0.0
    %1688 = vmatpush.xpose.msra.mxu0 0.0
    %1689 = vmatpush.xpose.msra.mxu0 0.0
    %1690 = vmatpush.xpose.msra.mxu0 0.0
    %1691 = vmatpush.xpose.msra.mxu0 0.0
    %1692 = vmatpush.xpose.msra.mxu0 0.0
    %1693 = vmatpush.xpose.msra.mxu0 0.0
    %1694 = vmatpush.xpose.msra.mxu0 0.0
    %1695 = vmatpush.xpose.msra.mxu0 0.0
    %1696 = vmatpush.xpose.msra.mxu0 0.0
    %1697 = vmatpush.xpose.msra.mxu0 0.0
    %1698 = vmatpush.xpose.msra.mxu0 0.0
    %1699 = vmatpush.xpose.msra.mxu0 0.0
    %1700 = vmatpush.xpose.msra.mxu0 0.0
    %1701 = vmatpush.xpose.msra.mxu0 %v1684
    %1702 = vmatmul.f32.gmra.mxu0 %v1574
    %v1703 = vpop.f32.mrf.mxu0
    %v1704 = vadd.f32 0.0, %v1703
    %1705 = vdwg.mxu0
    %1706 = vrot.lane.b32.xlu0 %v547, 112
    %v1707 = vpop.permute.xlu0 %1706
    %v1708 = vsel %vm553, %v1707, 0
    %1710 = vmatpush.xpose.msra.mxu0 0.0
    %1711 = vmatpush.xpose.msra.mxu0 0.0
    %1712 = vmatpush.xpose.msra.mxu0 0.0
    %1713 = vmatpush.xpose.msra.mxu0 0.0
    %1714 = vmatpush.xpose.msra.mxu0 0.0
    %1715 = vmatpush.xpose.msra.mxu0 0.0
    %1716 = vmatpush.xpose.msra.mxu0 0.0
    %1717 = vmatpush.xpose.msra.mxu0 0.0
    %1718 = vmatpush.xpose.msra.mxu0 0.0
    %1719 = vmatpush.xpose.msra.mxu0 0.0
    %1720 = vmatpush.xpose.msra.mxu0 0.0
    %1721 = vmatpush.xpose.msra.mxu0 0.0
    %1722 = vmatpush.xpose.msra.mxu0 0.0
    %1723 = vmatpush.xpose.msra.mxu0 0.0
    %1724 = vmatpush.xpose.msra.mxu0 0.0
    %1725 = vmatpush.xpose.msra.mxu0 %v1708
    %1726 = vmatmul.f32.gmra.mxu0 %v1602
    %v1727 = vpop.f32.mrf.mxu0
    %v1728 = vadd.f32 0.0, %v1727
    %1729 = vdwg.mxu0
    %1730 = vrot.lane.b32.xlu0 %v548, 112
    %v1731 = vpop.permute.xlu0 %1730
    %v1732 = vsel %vm553, %v1731, 0
    %1734 = vmatpush.xpose.msra.mxu0 0.0
    %1735 = vmatpush.xpose.msra.mxu0 0.0
    %1736 = vmatpush.xpose.msra.mxu0 0.0
    %1737 = vmatpush.xpose.msra.mxu0 0.0
    %1738 = vmatpush.xpose.msra.mxu0 0.0
    %1739 = vmatpush.xpose.msra.mxu0 0.0
    %1740 = vmatpush.xpose.msra.mxu0 0.0
    %1741 = vmatpush.xpose.msra.mxu0 0.0
    %1742 = vmatpush.xpose.msra.mxu0 0.0
    %1743 = vmatpush.xpose.msra.mxu0 0.0
    %1744 = vmatpush.xpose.msra.mxu0 0.0
    %1745 = vmatpush.xpose.msra.mxu0 0.0
    %1746 = vmatpush.xpose.msra.mxu0 0.0
    %1747 = vmatpush.xpose.msra.mxu0 0.0
    %1748 = vmatpush.xpose.msra.mxu0 0.0
    %1749 = vmatpush.xpose.msra.mxu0 %v1732
    %1750 = vmatmul.f32.gmra.mxu0 %v1630
    %v1751 = vpop.f32.mrf.mxu0
    %v1752 = vadd.f32 0.0, %v1751
    %1753 = vdwg.mxu0
    %v1754 = vsel %vm553, %v1654, -inf
    %1755 = vmax.xlane.f32.xlu0 %v1754
    %v1756 = vpop.xlane.xlu0 %1755
    %v1757 = vsel %vm553, %v1655, -inf
    %1758 = vmax.xlane.f32.xlu0 %v1757
    %v1759 = vpop.xlane.xlu0 %1758
    %v1760 = vsel %vm553, %v1656, -inf
    %1761 = vmax.xlane.f32.xlu0 %v1760
    %v1762 = vpop.xlane.xlu0 %1761
    %v1763 = vsel %vm553, %v1657, -inf
    %1764 = vmax.xlane.f32.xlu0 %v1763
    %v1765 = vpop.xlane.xlu0 %1764
    %v1766 = vsel %vm553, %v1680, -inf
    %1767 = vmax.xlane.f32.xlu0 %v1766
    %v1768 = vpop.xlane.xlu0 %1767
    %v1769 = vsel %vm553, %v1704, -inf
    %1770 = vmax.xlane.f32.xlu0 %v1769
    %v1771 = vpop.xlane.xlu0 %1770
    %v1772 = vsel %vm553, %v1728, -inf
    %1773 = vmax.xlane.f32.xlu0 %v1772
    %v1774 = vpop.xlane.xlu0 %1773
    %v1775 = vsel %vm553, %v1752, -inf
    %1776 = vmax.xlane.f32.xlu0 %v1775
    %v1777 = vpop.xlane.xlu0 %1776
    %v1778 = vmax.f32 %v1756, %v1768
    %v1779 = vmax.f32 %v1759, %v1771
    %v1780 = vmax.f32 %v1762, %v1774
    %v1781 = vmax.f32 %v1765, %v1777
    %v1782 = vsub.f32 %v1654, %v1778
    %v1783 = vsub.f32 %v1655, %v1779
    %v1784 = vsub.f32 %v1656, %v1780
    %v1785 = vsub.f32 %v1657, %v1781
    %v1786 = vmul.f32 %v1782, 1.442695
    %v1787 = vpow.pop %v1786
    %v1788 = vmul.f32 %v1783, 1.442695
    %v1789 = vpow.pop %v1788
    %v1790 = vmul.f32 %v1784, 1.442695
    %v1791 = vpow.pop %v1790
    %v1792 = vmul.f32 %v1785, 1.442695
    %v1793 = vpow.pop %v1792
    %v1794 = vsub.f32 %v1680, %v1778
    %v1795 = vsub.f32 %v1704, %v1779
    %v1796 = vsub.f32 %v1728, %v1780
    %v1797 = vsub.f32 %v1752, %v1781
    %v1798 = vmul.f32 %v1794, 1.442695
    %v1799 = vpow.pop %v1798
    %v1800 = vmul.f32 %v1795, 1.442695
    %v1801 = vpow.pop %v1800
    %v1802 = vmul.f32 %v1796, 1.442695
    %v1803 = vpow.pop %v1802
    %v1804 = vmul.f32 %v1797, 1.442695
    %v1805 = vpow.pop %v1804
    %v1806 = vsel %vm553, %v1787, 0.0
    %1807 = vadd.xlane.f32.xlu0 %v1806
    %v1808 = vpop.xlane.xlu0 %1807
    %v1809 = vsel %vm553, %v1789, 0.0
    %1810 = vadd.xlane.f32.xlu0 %v1809
    %v1811 = vpop.xlane.xlu0 %1810
    %v1812 = vsel %vm553, %v1791, 0.0
    %1813 = vadd.xlane.f32.xlu0 %v1812
    %v1814 = vpop.xlane.xlu0 %1813
    %v1815 = vsel %vm553, %v1793, 0.0
    %1816 = vadd.xlane.f32.xlu0 %v1815
    %v1817 = vpop.xlane.xlu0 %1816
    %v1818 = vsel %vm553, %v1799, 0.0
    %1819 = vadd.xlane.f32.xlu0 %v1818
    %v1820 = vpop.xlane.xlu0 %1819
    %v1821 = vsel %vm553, %v1801, 0.0
    %1822 = vadd.xlane.f32.xlu0 %v1821
    %v1823 = vpop.xlane.xlu0 %1822
    %v1824 = vsel %vm553, %v1803, 0.0
    %1825 = vadd.xlane.f32.xlu0 %v1824
    %v1826 = vpop.xlane.xlu0 %1825
    %v1827 = vsel %vm553, %v1805, 0.0
    %1828 = vadd.xlane.f32.xlu0 %v1827
    %v1829 = vpop.xlane.xlu0 %1828
    %v1830 = vadd.f32 %v1808, %v1820
    %v1831 = vadd.f32 %v1811, %v1823
    %v1832 = vadd.f32 %v1814, %v1826
    %v1833 = vadd.f32 %v1817, %v1829
    %v1834 = vrcp.pop %v1830
    %v1835 = vrcp.pop %v1831
    %v1836 = vrcp.pop %v1832
    %v1837 = vrcp.pop %v1833
    %1838 = vrot.lane.b32.xlu0 %v549, 112
    %v1839 = vpop.permute.xlu0 %1838
    %v1842 = vsel %vm553, %v1799, 0
    %1844 = vmatpush.msra.mxu0 0.0
    %1845 = vmatpush.msra.mxu0 0.0
    %1846 = vmatpush.msra.mxu0 0.0
    %1847 = vmatpush.msra.mxu0 0.0
    %1848 = vmatpush.msra.mxu0 0.0
    %1849 = vmatpush.msra.mxu0 0.0
    %1850 = vmatpush.msra.mxu0 0.0
    %1851 = vmatpush.msra.mxu0 0.0
    %1852 = vmatpush.msra.mxu0 0.0
    %1853 = vmatpush.msra.mxu0 0.0
    %1854 = vmatpush.msra.mxu0 0.0
    %1855 = vmatpush.msra.mxu0 0.0
    %1856 = vmatpush.msra.mxu0 0.0
    %1857 = vmatpush.msra.mxu0 0.0
    %1858 = vmatpush.msra.mxu0 0.0
    %1859 = vmatpush.msra.mxu0 %v1839
    %1860 = vmatmul.f32.gmra.mxu0 %v1842
    %v1861 = vpop.f32.mrf.mxu0
    %v1862 = vadd.f32 0.0, %v1861
    %1863 = vdwg.mxu0
    %1864 = vrot.lane.b32.xlu0 %v550, 112
    %v1865 = vpop.permute.xlu0 %1864
    %v1868 = vsel %vm553, %v1801, 0
    %1870 = vmatpush.msra.mxu0 0.0
    %1871 = vmatpush.msra.mxu0 0.0
    %1872 = vmatpush.msra.mxu0 0.0
    %1873 = vmatpush.msra.mxu0 0.0
    %1874 = vmatpush.msra.mxu0 0.0
    %1875 = vmatpush.msra.mxu0 0.0
    %1876 = vmatpush.msra.mxu0 0.0
    %1877 = vmatpush.msra.mxu0 0.0
    %1878 = vmatpush.msra.mxu0 0.0
    %1879 = vmatpush.msra.mxu0 0.0
    %1880 = vmatpush.msra.mxu0 0.0
    %1881 = vmatpush.msra.mxu0 0.0
    %1882 = vmatpush.msra.mxu0 0.0
    %1883 = vmatpush.msra.mxu0 0.0
    %1884 = vmatpush.msra.mxu0 0.0
    %1885 = vmatpush.msra.mxu0 %v1865
    %1886 = vmatmul.f32.gmra.mxu0 %v1868
    %v1887 = vpop.f32.mrf.mxu0
    %v1888 = vadd.f32 0.0, %v1887
    %1889 = vdwg.mxu0
    %1890 = vrot.lane.b32.xlu0 %v551, 112
    %v1891 = vpop.permute.xlu0 %1890
    %v1894 = vsel %vm553, %v1803, 0
    %1896 = vmatpush.msra.mxu0 0.0
    %1897 = vmatpush.msra.mxu0 0.0
    %1898 = vmatpush.msra.mxu0 0.0
    %1899 = vmatpush.msra.mxu0 0.0
    %1900 = vmatpush.msra.mxu0 0.0
    %1901 = vmatpush.msra.mxu0 0.0
    %1902 = vmatpush.msra.mxu0 0.0
    %1903 = vmatpush.msra.mxu0 0.0
    %1904 = vmatpush.msra.mxu0 0.0
    %1905 = vmatpush.msra.mxu0 0.0
    %1906 = vmatpush.msra.mxu0 0.0
    %1907 = vmatpush.msra.mxu0 0.0
    %1908 = vmatpush.msra.mxu0 0.0
    %1909 = vmatpush.msra.mxu0 0.0
    %1910 = vmatpush.msra.mxu0 0.0
    %1911 = vmatpush.msra.mxu0 %v1891
    %1912 = vmatmul.f32.gmra.mxu0 %v1894
    %v1913 = vpop.f32.mrf.mxu0
    %v1914 = vadd.f32 0.0, %v1913
    %1915 = vdwg.mxu0
    %1916 = vrot.lane.b32.xlu0 %v552, 112
    %v1917 = vpop.permute.xlu0 %1916
    %v1920 = vsel %vm553, %v1805, 0
    %1922 = vmatpush.msra.mxu0 0.0
    %1923 = vmatpush.msra.mxu0 0.0
    %1924 = vmatpush.msra.mxu0 0.0
    %1925 = vmatpush.msra.mxu0 0.0
    %1926 = vmatpush.msra.mxu0 0.0
    %1927 = vmatpush.msra.mxu0 0.0
    %1928 = vmatpush.msra.mxu0 0.0
    %1929 = vmatpush.msra.mxu0 0.0
    %1930 = vmatpush.msra.mxu0 0.0
    %1931 = vmatpush.msra.mxu0 0.0
    %1932 = vmatpush.msra.mxu0 0.0
    %1933 = vmatpush.msra.mxu0 0.0
    %1934 = vmatpush.msra.mxu0 0.0
    %1935 = vmatpush.msra.mxu0 0.0
    %1936 = vmatpush.msra.mxu0 0.0
    %1937 = vmatpush.msra.mxu0 %v1917
    %1938 = vmatmul.f32.gmra.mxu0 %v1920
    %v1939 = vpop.f32.mrf.mxu0
    %v1940 = vadd.f32 0.0, %v1939
    %1941 = vdwg.mxu0
    %1942 = vrot.lane.b32.xlu0 %v541, 112
    %v1943 = vpop.permute.xlu0 %1942
    %v1946 = vsel %vm553, %v1787, 0
    %1948 = vmatpush.msra.mxu0 0.0
    %1949 = vmatpush.msra.mxu0 0.0
    %1950 = vmatpush.msra.mxu0 0.0
    %1951 = vmatpush.msra.mxu0 0.0
    %1952 = vmatpush.msra.mxu0 0.0
    %1953 = vmatpush.msra.mxu0 0.0
    %1954 = vmatpush.msra.mxu0 0.0
    %1955 = vmatpush.msra.mxu0 0.0
    %1956 = vmatpush.msra.mxu0 0.0
    %1957 = vmatpush.msra.mxu0 0.0
    %1958 = vmatpush.msra.mxu0 0.0
    %1959 = vmatpush.msra.mxu0 0.0
    %1960 = vmatpush.msra.mxu0 0.0
    %1961 = vmatpush.msra.mxu0 0.0
    %1962 = vmatpush.msra.mxu0 0.0
    %1963 = vmatpush.msra.mxu0 %v1943
    %1964 = vmatmul.f32.gmra.mxu0 %v1946
    %v1965 = vpop.f32.mrf.mxu0
    %v1966 = vadd.f32 %v1862, %v1965
    %1967 = vdwg.mxu0
    %1968 = vrot.lane.b32.xlu0 %v542, 112
    %v1969 = vpop.permute.xlu0 %1968
    %v1972 = vsel %vm553, %v1789, 0
    %1974 = vmatpush.msra.mxu0 0.0
    %1975 = vmatpush.msra.mxu0 0.0
    %1976 = vmatpush.msra.mxu0 0.0
    %1977 = vmatpush.msra.mxu0 0.0
    %1978 = vmatpush.msra.mxu0 0.0
    %1979 = vmatpush.msra.mxu0 0.0
    %1980 = vmatpush.msra.mxu0 0.0
    %1981 = vmatpush.msra.mxu0 0.0
    %1982 = vmatpush.msra.mxu0 0.0
    %1983 = vmatpush.msra.mxu0 0.0
    %1984 = vmatpush.msra.mxu0 0.0
    %1985 = vmatpush.msra.mxu0 0.0
    %1986 = vmatpush.msra.mxu0 0.0
    %1987 = vmatpush.msra.mxu0 0.0
    %1988 = vmatpush.msra.mxu0 0.0
    %1989 = vmatpush.msra.mxu0 %v1969
    %1990 = vmatmul.f32.gmra.mxu0 %v1972
    %v1991 = vpop.f32.mrf.mxu0
    %v1992 = vadd.f32 %v1888, %v1991
    %1993 = vdwg.mxu0
    %1994 = vrot.lane.b32.xlu0 %v543, 112
    %v1995 = vpop.permute.xlu0 %1994
    %v1998 = vsel %vm553, %v1791, 0
    %2000 = vmatpush.msra.mxu0 0.0
    %2001 = vmatpush.msra.mxu0 0.0
    %2002 = vmatpush.msra.mxu0 0.0
    %2003 = vmatpush.msra.mxu0 0.0
    %2004 = vmatpush.msra.mxu0 0.0
    %2005 = vmatpush.msra.mxu0 0.0
    %2006 = vmatpush.msra.mxu0 0.0
    %2007 = vmatpush.msra.mxu0 0.0
    %2008 = vmatpush.msra.mxu0 0.0
    %2009 = vmatpush.msra.mxu0 0.0
    %2010 = vmatpush.msra.mxu0 0.0
    %2011 = vmatpush.msra.mxu0 0.0
    %2012 = vmatpush.msra.mxu0 0.0
    %2013 = vmatpush.msra.mxu0 0.0
    %2014 = vmatpush.msra.mxu0 0.0
    %2015 = vmatpush.msra.mxu0 %v1995
    %2016 = vmatmul.f32.gmra.mxu0 %v1998
    %v2017 = vpop.f32.mrf.mxu0
    %v2018 = vadd.f32 %v1914, %v2017
    %2019 = vdwg.mxu0
    %2020 = vrot.lane.b32.xlu0 %v544, 112
    %v2021 = vpop.permute.xlu0 %2020
    %v2024 = vsel %vm553, %v1793, 0
    %2026 = vmatpush.msra.mxu0 0.0
    %2027 = vmatpush.msra.mxu0 0.0
    %2028 = vmatpush.msra.mxu0 0.0
    %2029 = vmatpush.msra.mxu0 0.0
    %2030 = vmatpush.msra.mxu0 0.0
    %2031 = vmatpush.msra.mxu0 0.0
    %2032 = vmatpush.msra.mxu0 0.0
    %2033 = vmatpush.msra.mxu0 0.0
    %2034 = vmatpush.msra.mxu0 0.0
    %2035 = vmatpush.msra.mxu0 0.0
    %2036 = vmatpush.msra.mxu0 0.0
    %2037 = vmatpush.msra.mxu0 0.0
    %2038 = vmatpush.msra.mxu0 0.0
    %2039 = vmatpush.msra.mxu0 0.0
    %2040 = vmatpush.msra.mxu0 0.0
    %2041 = vmatpush.msra.mxu0 %v2021
    %2042 = vmatmul.f32.gmra.mxu0 %v2024
    %v2043 = vpop.f32.mrf.mxu0
    %v2044 = vadd.f32 %v1940, %v2043
    %2045 = vdwg.mxu0
    %v2046 = vmul.f32 %v1966, %v1834
    %v2047 = vmul.f32 %v1992, %v1835
    %v2048 = vmul.f32 %v2018, %v1836
    %v2049 = vmul.f32 %v2044, %v1837
    %2050 = vrot.lane.b32.xlu0 %v200, 104
    %v2051 = vpop.permute.xlu0 %2050
    %2052 = vrot.lane.b32.xlu0 %v533, 104
    %v2053 = vpop.permute.xlu0 %2052
    %v2054 = vsel %vm553, %v2051, 0
    %v2056 = vsel %vm553, %v2053, 0
    %2058 = vmatpush.xpose.msra.mxu0 0.0
    %2059 = vmatpush.xpose.msra.mxu0 0.0
    %2060 = vmatpush.xpose.msra.mxu0 0.0
    %2061 = vmatpush.xpose.msra.mxu0 0.0
    %2062 = vmatpush.xpose.msra.mxu0 0.0
    %2063 = vmatpush.xpose.msra.mxu0 0.0
    %2064 = vmatpush.xpose.msra.mxu0 0.0
    %2065 = vmatpush.xpose.msra.mxu0 0.0
    %2066 = vmatpush.xpose.msra.mxu0 0.0
    %2067 = vmatpush.xpose.msra.mxu0 0.0
    %2068 = vmatpush.xpose.msra.mxu0 0.0
    %2069 = vmatpush.xpose.msra.mxu0 0.0
    %2070 = vmatpush.xpose.msra.mxu0 0.0
    %2071 = vmatpush.xpose.msra.mxu0 0.0
    %2072 = vmatpush.xpose.msra.mxu0 0.0
    %2073 = vmatpush.xpose.msra.mxu0 %v2056
    %2074 = vmatmul.f32.gmra.mxu0 %v2054
    %v2075 = vpop.f32.mrf.mxu0
    %v2076 = vadd.f32 0.0, %v2075
    %2077 = vdwg.mxu0
    %2078 = vrot.lane.b32.xlu0 %v201, 104
    %v2079 = vpop.permute.xlu0 %2078
    %2080 = vrot.lane.b32.xlu0 %v534, 104
    %v2081 = vpop.permute.xlu0 %2080
    %v2082 = vsel %vm553, %v2079, 0
    %v2084 = vsel %vm553, %v2081, 0
    %2086 = vmatpush.xpose.msra.mxu0 0.0
    %2087 = vmatpush.xpose.msra.mxu0 0.0
    %2088 = vmatpush.xpose.msra.mxu0 0.0
    %2089 = vmatpush.xpose.msra.mxu0 0.0
    %2090 = vmatpush.xpose.msra.mxu0 0.0
    %2091 = vmatpush.xpose.msra.mxu0 0.0
    %2092 = vmatpush.xpose.msra.mxu0 0.0
    %2093 = vmatpush.xpose.msra.mxu0 0.0
    %2094 = vmatpush.xpose.msra.mxu0 0.0
    %2095 = vmatpush.xpose.msra.mxu0 0.0
    %2096 = vmatpush.xpose.msra.mxu0 0.0
    %2097 = vmatpush.xpose.msra.mxu0 0.0
    %2098 = vmatpush.xpose.msra.mxu0 0.0
    %2099 = vmatpush.xpose.msra.mxu0 0.0
    %2100 = vmatpush.xpose.msra.mxu0 0.0
    %2101 = vmatpush.xpose.msra.mxu0 %v2084
    %2102 = vmatmul.f32.gmra.mxu0 %v2082
    %v2103 = vpop.f32.mrf.mxu0
    %v2104 = vadd.f32 0.0, %v2103
    %2105 = vdwg.mxu0
    %2106 = vrot.lane.b32.xlu0 %v202, 104
    %v2107 = vpop.permute.xlu0 %2106
    %2108 = vrot.lane.b32.xlu0 %v535, 104
    %v2109 = vpop.permute.xlu0 %2108
    %v2110 = vsel %vm553, %v2107, 0
    %v2112 = vsel %vm553, %v2109, 0
    %2114 = vmatpush.xpose.msra.mxu0 0.0
    %2115 = vmatpush.xpose.msra.mxu0 0.0
    %2116 = vmatpush.xpose.msra.mxu0 0.0
    %2117 = vmatpush.xpose.msra.mxu0 0.0
    %2118 = vmatpush.xpose.msra.mxu0 0.0
    %2119 = vmatpush.xpose.msra.mxu0 0.0
    %2120 = vmatpush.xpose.msra.mxu0 0.0
    %2121 = vmatpush.xpose.msra.mxu0 0.0
    %2122 = vmatpush.xpose.msra.mxu0 0.0
    %2123 = vmatpush.xpose.msra.mxu0 0.0
    %2124 = vmatpush.xpose.msra.mxu0 0.0
    %2125 = vmatpush.xpose.msra.mxu0 0.0
    %2126 = vmatpush.xpose.msra.mxu0 0.0
    %2127 = vmatpush.xpose.msra.mxu0 0.0
    %2128 = vmatpush.xpose.msra.mxu0 0.0
    %2129 = vmatpush.xpose.msra.mxu0 %v2112
    %2130 = vmatmul.f32.gmra.mxu0 %v2110
    %v2131 = vpop.f32.mrf.mxu0
    %v2132 = vadd.f32 0.0, %v2131
    %2133 = vdwg.mxu0
    %2134 = vrot.lane.b32.xlu0 %v203, 104
    %v2135 = vpop.permute.xlu0 %2134
    %2136 = vrot.lane.b32.xlu0 %v536, 104
    %v2137 = vpop.permute.xlu0 %2136
    %v2138 = vsel %vm553, %v2135, 0
    %v2140 = vsel %vm553, %v2137, 0
    %2142 = vmatpush.xpose.msra.mxu0 0.0
    %2143 = vmatpush.xpose.msra.mxu0 0.0
    %2144 = vmatpush.xpose.msra.mxu0 0.0
    %2145 = vmatpush.xpose.msra.mxu0 0.0
    %2146 = vmatpush.xpose.msra.mxu0 0.0
    %2147 = vmatpush.xpose.msra.mxu0 0.0
    %2148 = vmatpush.xpose.msra.mxu0 0.0
    %2149 = vmatpush.xpose.msra.mxu0 0.0
    %2150 = vmatpush.xpose.msra.mxu0 0.0
    %2151 = vmatpush.xpose.msra.mxu0 0.0
    %2152 = vmatpush.xpose.msra.mxu0 0.0
    %2153 = vmatpush.xpose.msra.mxu0 0.0
    %2154 = vmatpush.xpose.msra.mxu0 0.0
    %2155 = vmatpush.xpose.msra.mxu0 0.0
    %2156 = vmatpush.xpose.msra.mxu0 0.0
    %2157 = vmatpush.xpose.msra.mxu0 %v2140
    %2158 = vmatmul.f32.gmra.mxu0 %v2138
    %v2159 = vpop.f32.mrf.mxu0
    %v2160 = vadd.f32 0.0, %v2159
    %2161 = vdwg.mxu0
    %v2162 = vsel %vm117, -1e+09, %v2076
    %v2163 = vsel %vm117, -1e+09, %v2104
    %v2164 = vsel %vm117, -1e+09, %v2132
    %v2165 = vsel %vm117, -1e+09, %v2160
    %2166 = vrot.lane.b32.xlu0 %v545, 104
    %v2167 = vpop.permute.xlu0 %2166
    %v2168 = vsel %vm553, %v2167, 0
    %2170 = vmatpush.xpose.msra.mxu0 0.0
    %2171 = vmatpush.xpose.msra.mxu0 0.0
    %2172 = vmatpush.xpose.msra.mxu0 0.0
    %2173 = vmatpush.xpose.msra.mxu0 0.0
    %2174 = vmatpush.xpose.msra.mxu0 0.0
    %2175 = vmatpush.xpose.msra.mxu0 0.0
    %2176 = vmatpush.xpose.msra.mxu0 0.0
    %2177 = vmatpush.xpose.msra.mxu0 0.0
    %2178 = vmatpush.xpose.msra.mxu0 0.0
    %2179 = vmatpush.xpose.msra.mxu0 0.0
    %2180 = vmatpush.xpose.msra.mxu0 0.0
    %2181 = vmatpush.xpose.msra.mxu0 0.0
    %2182 = vmatpush.xpose.msra.mxu0 0.0
    %2183 = vmatpush.xpose.msra.mxu0 0.0
    %2184 = vmatpush.xpose.msra.mxu0 0.0
    %2185 = vmatpush.xpose.msra.mxu0 %v2168
    %2186 = vmatmul.f32.gmra.mxu0 %v2054
    %v2187 = vpop.f32.mrf.mxu0
    %v2188 = vadd.f32 0.0, %v2187
    %2189 = vdwg.mxu0
    %2190 = vrot.lane.b32.xlu0 %v546, 104
    %v2191 = vpop.permute.xlu0 %2190
    %v2192 = vsel %vm553, %v2191, 0
    %2194 = vmatpush.xpose.msra.mxu0 0.0
    %2195 = vmatpush.xpose.msra.mxu0 0.0
    %2196 = vmatpush.xpose.msra.mxu0 0.0
    %2197 = vmatpush.xpose.msra.mxu0 0.0
    %2198 = vmatpush.xpose.msra.mxu0 0.0
    %2199 = vmatpush.xpose.msra.mxu0 0.0
    %2200 = vmatpush.xpose.msra.mxu0 0.0
    %2201 = vmatpush.xpose.msra.mxu0 0.0
    %2202 = vmatpush.xpose.msra.mxu0 0.0
    %2203 = vmatpush.xpose.msra.mxu0 0.0
    %2204 = vmatpush.xpose.msra.mxu0 0.0
    %2205 = vmatpush.xpose.msra.mxu0 0.0
    %2206 = vmatpush.xpose.msra.mxu0 0.0
    %2207 = vmatpush.xpose.msra.mxu0 0.0
    %2208 = vmatpush.xpose.msra.mxu0 0.0
    %2209 = vmatpush.xpose.msra.mxu0 %v2192
    %2210 = vmatmul.f32.gmra.mxu0 %v2082
    %v2211 = vpop.f32.mrf.mxu0
    %v2212 = vadd.f32 0.0, %v2211
    %2213 = vdwg.mxu0
    %2214 = vrot.lane.b32.xlu0 %v547, 104
    %v2215 = vpop.permute.xlu0 %2214
    %v2216 = vsel %vm553, %v2215, 0
    %2218 = vmatpush.xpose.msra.mxu0 0.0
    %2219 = vmatpush.xpose.msra.mxu0 0.0
    %2220 = vmatpush.xpose.msra.mxu0 0.0
    %2221 = vmatpush.xpose.msra.mxu0 0.0
    %2222 = vmatpush.xpose.msra.mxu0 0.0
    %2223 = vmatpush.xpose.msra.mxu0 0.0
    %2224 = vmatpush.xpose.msra.mxu0 0.0
    %2225 = vmatpush.xpose.msra.mxu0 0.0
    %2226 = vmatpush.xpose.msra.mxu0 0.0
    %2227 = vmatpush.xpose.msra.mxu0 0.0
    %2228 = vmatpush.xpose.msra.mxu0 0.0
    %2229 = vmatpush.xpose.msra.mxu0 0.0
    %2230 = vmatpush.xpose.msra.mxu0 0.0
    %2231 = vmatpush.xpose.msra.mxu0 0.0
    %2232 = vmatpush.xpose.msra.mxu0 0.0
    %2233 = vmatpush.xpose.msra.mxu0 %v2216
    %2234 = vmatmul.f32.gmra.mxu0 %v2110
    %v2235 = vpop.f32.mrf.mxu0
    %v2236 = vadd.f32 0.0, %v2235
    %2237 = vdwg.mxu0
    %2238 = vrot.lane.b32.xlu0 %v548, 104
    %v2239 = vpop.permute.xlu0 %2238
    %v2240 = vsel %vm553, %v2239, 0
    %2242 = vmatpush.xpose.msra.mxu0 0.0
    %2243 = vmatpush.xpose.msra.mxu0 0.0
    %2244 = vmatpush.xpose.msra.mxu0 0.0
    %2245 = vmatpush.xpose.msra.mxu0 0.0
    %2246 = vmatpush.xpose.msra.mxu0 0.0
    %2247 = vmatpush.xpose.msra.mxu0 0.0
    %2248 = vmatpush.xpose.msra.mxu0 0.0
    %2249 = vmatpush.xpose.msra.mxu0 0.0
    %2250 = vmatpush.xpose.msra.mxu0 0.0
    %2251 = vmatpush.xpose.msra.mxu0 0.0
    %2252 = vmatpush.xpose.msra.mxu0 0.0
    %2253 = vmatpush.xpose.msra.mxu0 0.0
    %2254 = vmatpush.xpose.msra.mxu0 0.0
    %2255 = vmatpush.xpose.msra.mxu0 0.0
    %2256 = vmatpush.xpose.msra.mxu0 0.0
    %2257 = vmatpush.xpose.msra.mxu0 %v2240
    %2258 = vmatmul.f32.gmra.mxu0 %v2138
    %v2259 = vpop.f32.mrf.mxu0
    %v2260 = vadd.f32 0.0, %v2259
    %2261 = vdwg.mxu0
    %v2262 = vsel %vm553, %v2162, -inf
    %2263 = vmax.xlane.f32.xlu0 %v2262
    %v2264 = vpop.xlane.xlu0 %2263
    %v2265 = vsel %vm553, %v2163, -inf
    %2266 = vmax.xlane.f32.xlu0 %v2265
    %v2267 = vpop.xlane.xlu0 %2266
    %v2268 = vsel %vm553, %v2164, -inf
    %2269 = vmax.xlane.f32.xlu0 %v2268
    %v2270 = vpop.xlane.xlu0 %2269
    %v2271 = vsel %vm553, %v2165, -inf
    %2272 = vmax.xlane.f32.xlu0 %v2271
    %v2273 = vpop.xlane.xlu0 %2272
    %v2274 = vsel %vm553, %v2188, -inf
    %2275 = vmax.xlane.f32.xlu0 %v2274
    %v2276 = vpop.xlane.xlu0 %2275
    %v2277 = vsel %vm553, %v2212, -inf
    %2278 = vmax.xlane.f32.xlu0 %v2277
    %v2279 = vpop.xlane.xlu0 %2278
    %v2280 = vsel %vm553, %v2236, -inf
    %2281 = vmax.xlane.f32.xlu0 %v2280
    %v2282 = vpop.xlane.xlu0 %2281
    %v2283 = vsel %vm553, %v2260, -inf
    %2284 = vmax.xlane.f32.xlu0 %v2283
    %v2285 = vpop.xlane.xlu0 %2284
    %v2286 = vmax.f32 %v2264, %v2276
    %v2287 = vmax.f32 %v2267, %v2279
    %v2288 = vmax.f32 %v2270, %v2282
    %v2289 = vmax.f32 %v2273, %v2285
    %v2290 = vsub.f32 %v2162, %v2286
    %v2291 = vsub.f32 %v2163, %v2287
    %v2292 = vsub.f32 %v2164, %v2288
    %v2293 = vsub.f32 %v2165, %v2289
    %v2294 = vmul.f32 %v2290, 1.442695
    %v2295 = vpow.pop %v2294
    %v2296 = vmul.f32 %v2291, 1.442695
    %v2297 = vpow.pop %v2296
    %v2298 = vmul.f32 %v2292, 1.442695
    %v2299 = vpow.pop %v2298
    %v2300 = vmul.f32 %v2293, 1.442695
    %v2301 = vpow.pop %v2300
    %v2302 = vsub.f32 %v2188, %v2286
    %v2303 = vsub.f32 %v2212, %v2287
    %v2304 = vsub.f32 %v2236, %v2288
    %v2305 = vsub.f32 %v2260, %v2289
    %v2306 = vmul.f32 %v2302, 1.442695
    %v2307 = vpow.pop %v2306
    %v2308 = vmul.f32 %v2303, 1.442695
    %v2309 = vpow.pop %v2308
    %v2310 = vmul.f32 %v2304, 1.442695
    %v2311 = vpow.pop %v2310
    %v2312 = vmul.f32 %v2305, 1.442695
    %v2313 = vpow.pop %v2312
    %v2314 = vsel %vm553, %v2295, 0.0
    %2315 = vadd.xlane.f32.xlu0 %v2314
    %v2316 = vpop.xlane.xlu0 %2315
    %v2317 = vsel %vm553, %v2297, 0.0
    %2318 = vadd.xlane.f32.xlu0 %v2317
    %v2319 = vpop.xlane.xlu0 %2318
    %v2320 = vsel %vm553, %v2299, 0.0
    %2321 = vadd.xlane.f32.xlu0 %v2320
    %v2322 = vpop.xlane.xlu0 %2321
    %v2323 = vsel %vm553, %v2301, 0.0
    %2324 = vadd.xlane.f32.xlu0 %v2323
    %v2325 = vpop.xlane.xlu0 %2324
    %v2326 = vsel %vm553, %v2307, 0.0
    %2327 = vadd.xlane.f32.xlu0 %v2326
    %v2328 = vpop.xlane.xlu0 %2327
    %v2329 = vsel %vm553, %v2309, 0.0
    %2330 = vadd.xlane.f32.xlu0 %v2329
    %v2331 = vpop.xlane.xlu0 %2330
    %v2332 = vsel %vm553, %v2311, 0.0
    %2333 = vadd.xlane.f32.xlu0 %v2332
    %v2334 = vpop.xlane.xlu0 %2333
    %v2335 = vsel %vm553, %v2313, 0.0
    %2336 = vadd.xlane.f32.xlu0 %v2335
    %v2337 = vpop.xlane.xlu0 %2336
    %v2338 = vadd.f32 %v2316, %v2328
    %v2339 = vadd.f32 %v2319, %v2331
    %v2340 = vadd.f32 %v2322, %v2334
    %v2341 = vadd.f32 %v2325, %v2337
    %v2342 = vrcp.pop %v2338
    %v2343 = vrcp.pop %v2339
    %v2344 = vrcp.pop %v2340
    %v2345 = vrcp.pop %v2341
    %2346 = vrot.lane.b32.xlu0 %v549, 104
    %v2347 = vpop.permute.xlu0 %2346
    %v2350 = vsel %vm553, %v2307, 0
    %2352 = vmatpush.msra.mxu0 0.0
    %2353 = vmatpush.msra.mxu0 0.0
    %2354 = vmatpush.msra.mxu0 0.0
    %2355 = vmatpush.msra.mxu0 0.0
    %2356 = vmatpush.msra.mxu0 0.0
    %2357 = vmatpush.msra.mxu0 0.0
    %2358 = vmatpush.msra.mxu0 0.0
    %2359 = vmatpush.msra.mxu0 0.0
    %2360 = vmatpush.msra.mxu0 0.0
    %2361 = vmatpush.msra.mxu0 0.0
    %2362 = vmatpush.msra.mxu0 0.0
    %2363 = vmatpush.msra.mxu0 0.0
    %2364 = vmatpush.msra.mxu0 0.0
    %2365 = vmatpush.msra.mxu0 0.0
    %2366 = vmatpush.msra.mxu0 0.0
    %2367 = vmatpush.msra.mxu0 %v2347
    %2368 = vmatmul.f32.gmra.mxu0 %v2350
    %v2369 = vpop.f32.mrf.mxu0
    %v2370 = vadd.f32 0.0, %v2369
    %2371 = vdwg.mxu0
    %2372 = vrot.lane.b32.xlu0 %v550, 104
    %v2373 = vpop.permute.xlu0 %2372
    %v2376 = vsel %vm553, %v2309, 0
    %2378 = vmatpush.msra.mxu0 0.0
    %2379 = vmatpush.msra.mxu0 0.0
    %2380 = vmatpush.msra.mxu0 0.0
    %2381 = vmatpush.msra.mxu0 0.0
    %2382 = vmatpush.msra.mxu0 0.0
    %2383 = vmatpush.msra.mxu0 0.0
    %2384 = vmatpush.msra.mxu0 0.0
    %2385 = vmatpush.msra.mxu0 0.0
    %2386 = vmatpush.msra.mxu0 0.0
    %2387 = vmatpush.msra.mxu0 0.0
    %2388 = vmatpush.msra.mxu0 0.0
    %2389 = vmatpush.msra.mxu0 0.0
    %2390 = vmatpush.msra.mxu0 0.0
    %2391 = vmatpush.msra.mxu0 0.0
    %2392 = vmatpush.msra.mxu0 0.0
    %2393 = vmatpush.msra.mxu0 %v2373
    %2394 = vmatmul.f32.gmra.mxu0 %v2376
    %v2395 = vpop.f32.mrf.mxu0
    %v2396 = vadd.f32 0.0, %v2395
    %2397 = vdwg.mxu0
    %2398 = vrot.lane.b32.xlu0 %v551, 104
    %v2399 = vpop.permute.xlu0 %2398
    %v2402 = vsel %vm553, %v2311, 0
    %2404 = vmatpush.msra.mxu0 0.0
    %2405 = vmatpush.msra.mxu0 0.0
    %2406 = vmatpush.msra.mxu0 0.0
    %2407 = vmatpush.msra.mxu0 0.0
    %2408 = vmatpush.msra.mxu0 0.0
    %2409 = vmatpush.msra.mxu0 0.0
    %2410 = vmatpush.msra.mxu0 0.0
    %2411 = vmatpush.msra.mxu0 0.0
    %2412 = vmatpush.msra.mxu0 0.0
    %2413 = vmatpush.msra.mxu0 0.0
    %2414 = vmatpush.msra.mxu0 0.0
    %2415 = vmatpush.msra.mxu0 0.0
    %2416 = vmatpush.msra.mxu0 0.0
    %2417 = vmatpush.msra.mxu0 0.0
    %2418 = vmatpush.msra.mxu0 0.0
    %2419 = vmatpush.msra.mxu0 %v2399
    %2420 = vmatmul.f32.gmra.mxu0 %v2402
    %v2421 = vpop.f32.mrf.mxu0
    %v2422 = vadd.f32 0.0, %v2421
    %2423 = vdwg.mxu0
    %2424 = vrot.lane.b32.xlu0 %v552, 104
    %v2425 = vpop.permute.xlu0 %2424
    %v2428 = vsel %vm553, %v2313, 0
    %2430 = vmatpush.msra.mxu0 0.0
    %2431 = vmatpush.msra.mxu0 0.0
    %2432 = vmatpush.msra.mxu0 0.0
    %2433 = vmatpush.msra.mxu0 0.0
    %2434 = vmatpush.msra.mxu0 0.0
    %2435 = vmatpush.msra.mxu0 0.0
    %2436 = vmatpush.msra.mxu0 0.0
    %2437 = vmatpush.msra.mxu0 0.0
    %2438 = vmatpush.msra.mxu0 0.0
    %2439 = vmatpush.msra.mxu0 0.0
    %2440 = vmatpush.msra.mxu0 0.0
    %2441 = vmatpush.msra.mxu0 0.0
    %2442 = vmatpush.msra.mxu0 0.0
    %2443 = vmatpush.msra.mxu0 0.0
    %2444 = vmatpush.msra.mxu0 0.0
    %2445 = vmatpush.msra.mxu0 %v2425
    %2446 = vmatmul.f32.gmra.mxu0 %v2428
    %v2447 = vpop.f32.mrf.mxu0
    %v2448 = vadd.f32 0.0, %v2447
    %2449 = vdwg.mxu0
    %2450 = vrot.lane.b32.xlu0 %v541, 104
    %v2451 = vpop.permute.xlu0 %2450
    %v2454 = vsel %vm553, %v2295, 0
    %2456 = vmatpush.msra.mxu0 0.0
    %2457 = vmatpush.msra.mxu0 0.0
    %2458 = vmatpush.msra.mxu0 0.0
    %2459 = vmatpush.msra.mxu0 0.0
    %2460 = vmatpush.msra.mxu0 0.0
    %2461 = vmatpush.msra.mxu0 0.0
    %2462 = vmatpush.msra.mxu0 0.0
    %2463 = vmatpush.msra.mxu0 0.0
    %2464 = vmatpush.msra.mxu0 0.0
    %2465 = vmatpush.msra.mxu0 0.0
    %2466 = vmatpush.msra.mxu0 0.0
    %2467 = vmatpush.msra.mxu0 0.0
    %2468 = vmatpush.msra.mxu0 0.0
    %2469 = vmatpush.msra.mxu0 0.0
    %2470 = vmatpush.msra.mxu0 0.0
    %2471 = vmatpush.msra.mxu0 %v2451
    %2472 = vmatmul.f32.gmra.mxu0 %v2454
    %v2473 = vpop.f32.mrf.mxu0
    %v2474 = vadd.f32 %v2370, %v2473
    %2475 = vdwg.mxu0
    %2476 = vrot.lane.b32.xlu0 %v542, 104
    %v2477 = vpop.permute.xlu0 %2476
    %v2480 = vsel %vm553, %v2297, 0
    %2482 = vmatpush.msra.mxu0 0.0
    %2483 = vmatpush.msra.mxu0 0.0
    %2484 = vmatpush.msra.mxu0 0.0
    %2485 = vmatpush.msra.mxu0 0.0
    %2486 = vmatpush.msra.mxu0 0.0
    %2487 = vmatpush.msra.mxu0 0.0
    %2488 = vmatpush.msra.mxu0 0.0
    %2489 = vmatpush.msra.mxu0 0.0
    %2490 = vmatpush.msra.mxu0 0.0
    %2491 = vmatpush.msra.mxu0 0.0
    %2492 = vmatpush.msra.mxu0 0.0
    %2493 = vmatpush.msra.mxu0 0.0
    %2494 = vmatpush.msra.mxu0 0.0
    %2495 = vmatpush.msra.mxu0 0.0
    %2496 = vmatpush.msra.mxu0 0.0
    %2497 = vmatpush.msra.mxu0 %v2477
    %2498 = vmatmul.f32.gmra.mxu0 %v2480
    %v2499 = vpop.f32.mrf.mxu0
    %v2500 = vadd.f32 %v2396, %v2499
    %2501 = vdwg.mxu0
    %2502 = vrot.lane.b32.xlu0 %v543, 104
    %v2503 = vpop.permute.xlu0 %2502
    %v2506 = vsel %vm553, %v2299, 0
    %2508 = vmatpush.msra.mxu0 0.0
    %2509 = vmatpush.msra.mxu0 0.0
    %2510 = vmatpush.msra.mxu0 0.0
    %2511 = vmatpush.msra.mxu0 0.0
    %2512 = vmatpush.msra.mxu0 0.0
    %2513 = vmatpush.msra.mxu0 0.0
    %2514 = vmatpush.msra.mxu0 0.0
    %2515 = vmatpush.msra.mxu0 0.0
    %2516 = vmatpush.msra.mxu0 0.0
    %2517 = vmatpush.msra.mxu0 0.0
    %2518 = vmatpush.msra.mxu0 0.0
    %2519 = vmatpush.msra.mxu0 0.0
    %2520 = vmatpush.msra.mxu0 0.0
    %2521 = vmatpush.msra.mxu0 0.0
    %2522 = vmatpush.msra.mxu0 0.0
    %2523 = vmatpush.msra.mxu0 %v2503
    %2524 = vmatmul.f32.gmra.mxu0 %v2506
    %v2525 = vpop.f32.mrf.mxu0
    %v2526 = vadd.f32 %v2422, %v2525
    %2527 = vdwg.mxu0
    %2528 = vrot.lane.b32.xlu0 %v544, 104
    %v2529 = vpop.permute.xlu0 %2528
    %v2532 = vsel %vm553, %v2301, 0
    %2534 = vmatpush.msra.mxu0 0.0
    %2535 = vmatpush.msra.mxu0 0.0
    %2536 = vmatpush.msra.mxu0 0.0
    %2537 = vmatpush.msra.mxu0 0.0
    %2538 = vmatpush.msra.mxu0 0.0
    %2539 = vmatpush.msra.mxu0 0.0
    %2540 = vmatpush.msra.mxu0 0.0
    %2541 = vmatpush.msra.mxu0 0.0
    %2542 = vmatpush.msra.mxu0 0.0
    %2543 = vmatpush.msra.mxu0 0.0
    %2544 = vmatpush.msra.mxu0 0.0
    %2545 = vmatpush.msra.mxu0 0.0
    %2546 = vmatpush.msra.mxu0 0.0
    %2547 = vmatpush.msra.mxu0 0.0
    %2548 = vmatpush.msra.mxu0 0.0
    %2549 = vmatpush.msra.mxu0 %v2529
    %2550 = vmatmul.f32.gmra.mxu0 %v2532
    %v2551 = vpop.f32.mrf.mxu0
    %v2552 = vadd.f32 %v2448, %v2551
    %2553 = vdwg.mxu0
    %v2554 = vmul.f32 %v2474, %v2342
    %v2555 = vmul.f32 %v2500, %v2343
    %v2556 = vmul.f32 %v2526, %v2344
    %v2557 = vmul.f32 %v2552, %v2345
    %2562 = vrot.lane.b32.xlu0 %v1538, 8
    %v2563 = vpop.permute.xlu0 %2562
    %2564 = vrot.lane.b32.xlu0 %v1539, 8
    %v2565 = vpop.permute.xlu0 %2564
    %2566 = vrot.lane.b32.xlu0 %v1540, 8
    %v2567 = vpop.permute.xlu0 %2566
    %2568 = vrot.lane.b32.xlu0 %v1541, 8
    %v2569 = vpop.permute.xlu0 %2568
    %2578 = vrot.lane.b32.xlu0 %v2046, 16
    %v2579 = vpop.permute.xlu0 %2578
    %2580 = vrot.lane.b32.xlu0 %v2047, 16
    %v2581 = vpop.permute.xlu0 %2580
    %2582 = vrot.lane.b32.xlu0 %v2048, 16
    %v2583 = vpop.permute.xlu0 %2582
    %2584 = vrot.lane.b32.xlu0 %v2049, 16
    %v2585 = vpop.permute.xlu0 %2584
    %2594 = vrot.lane.b32.xlu0 %v2554, 24
    %v2595 = vpop.permute.xlu0 %2594
    %2596 = vrot.lane.b32.xlu0 %v2555, 24
    %v2597 = vpop.permute.xlu0 %2596
    %2598 = vrot.lane.b32.xlu0 %v2556, 24
    %v2599 = vpop.permute.xlu0 %2598
    %2600 = vrot.lane.b32.xlu0 %v2557, 24
    %v2601 = vpop.permute.xlu0 %2600
    %v2606 = vsel %vm553, %v1022, %v2563
    %v2607 = vsel %vm553, %v1023, %v2565
    %v2608 = vsel %vm553, %v1024, %v2567
    %v2609 = vsel %vm553, %v1025, %v2569
    %vm2610 = vcmask 130048
    %v2611 = vsel %vm2610, %v2606, %v2579
    %v2612 = vsel %vm2610, %v2607, %v2581
    %v2613 = vsel %vm2610, %v2608, %v2583
    %v2614 = vsel %vm2610, %v2609, %v2585
    %vm2615 = vcmask 195584
    %v2616 = vsel %vm2615, %v2611, %v2595
    %v2617 = vsel %vm2615, %v2612, %v2597
    %v2618 = vsel %vm2615, %v2613, %v2599
    %v2619 = vsel %vm2615, %v2614, %v2601
    %v2620 = vsel %vm134, %v122, 0.0
    %v2621 = vrot.slane %v2620, 4
    %v2622 = vadd.f32 %v2620, %v2621
    %v2623 = vrot.slane %v2622, 2
    %v2624 = vadd.f32 %v2622, %v2623
    %v2625 = vrot.slane %v2624, 1
    %v2626 = vadd.f32 %v2624, %v2625
    %v2627 = vsel %vm134, %v123, 0.0
    %v2628 = vrot.slane %v2627, 4
    %v2629 = vadd.f32 %v2627, %v2628
    %v2630 = vrot.slane %v2629, 2
    %v2631 = vadd.f32 %v2629, %v2630
    %v2632 = vrot.slane %v2631, 1
    %v2633 = vadd.f32 %v2631, %v2632
    %v2634 = vsel %vm134, %v124, 0.0
    %v2635 = vrot.slane %v2634, 4
    %v2636 = vadd.f32 %v2634, %v2635
    %v2637 = vrot.slane %v2636, 2
    %v2638 = vadd.f32 %v2636, %v2637
    %v2639 = vrot.slane %v2638, 1
    %v2640 = vadd.f32 %v2638, %v2639
    %v2641 = vsel %vm134, %v125, 0.0
    %v2642 = vrot.slane %v2641, 4
    %v2643 = vadd.f32 %v2641, %v2642
    %v2644 = vrot.slane %v2643, 2
    %v2645 = vadd.f32 %v2643, %v2644
    %v2646 = vrot.slane %v2645, 1
    %v2647 = vadd.f32 %v2645, %v2646
    %v2652 = vsel %vm330, %v2633, %v2626
    %v2653 = vsel %vm332, %v2640, %v2652
    %v2654 = vsel %vm334, %v2647, %v2653
    %v2655 = vsel %vm134, %v2654, 0
    %2657 = vmatpush.xpose.msra.mxu0 0.0
    %2658 = vmatpush.xpose.msra.mxu0 0.0
    %2659 = vmatpush.xpose.msra.mxu0 0.0
    %2660 = vmatpush.xpose.msra.mxu0 0.0
    %2661 = vmatpush.xpose.msra.mxu0 0.0
    %2662 = vmatpush.xpose.msra.mxu0 0.0
    %2663 = vmatpush.xpose.msra.mxu0 0.0
    %2664 = vmatpush.xpose.msra.mxu0 0.0
    %2665 = vmatpush.xpose.msra.mxu0 0.0
    %2666 = vmatpush.xpose.msra.mxu0 0.0
    %2667 = vmatpush.xpose.msra.mxu0 0.0
    %2668 = vmatpush.xpose.msra.mxu0 0.0
    %2669 = vmatpush.xpose.msra.mxu0 0.0
    %2670 = vmatpush.xpose.msra.mxu0 0.0
    %2671 = vmatpush.xpose.msra.mxu0 0.0
    %2672 = vmatpush.xpose.msra.mxu0 %v2655
    %2673 = vmatmul.f32.gmra.mxu0 %v2655
    %v2674 = vpop.f32.mrf.mxu0
    %v2675 = vadd.f32 0.0, %v2674
    %2676 = vdwg.mxu0
    %v2677 = vmul.f32 %v2675, 0.17677669
    %v2678 = vsel %vm115, -1e+09, %v2677
    %v2679 = vsel %vm360, %v2678, -inf
    %2680 = vmax.xlane.f32.xlu0 %v2679
    %v2681 = vpop.xlane.xlu0 %2680
    %v2682 = vsub.f32 %v2678, %v2681
    %v2683 = vmul.f32 %v2682, 1.442695
    %v2684 = vpow.pop %v2683
    %v2685 = vsel %vm367, 0.0, %v2684
    %v2686 = vsel %vm360, %v2685, -inf
    %2687 = vmax.xlane.f32.xlu0 %v2686
    %v2688 = vpop.xlane.xlu0 %2687
    %vm2689 = vcmp.eq.f32.partialorder %v2685, %v2688
    %v2690 = vsel %vm2689, %v114, 4
    %v2691 = vsel %vm360, %v2690, 2147483647
    %v2692 = vand.u32 %v2691, 65535
    %v2693 = vshra.s32 %v2691, 16
    %v2694 = vcvt.s32.f32 %v2692
    %v2695 = vcvt.s32.f32 %v2693
    %2696 = vmin.xlane.f32.xlu0 %v2695
    %v2697 = vpop.xlane.xlu0 %2696
    %vm2698 = vcmp.eq.f32.partialorder %v2695, %v2697
    %v2699 = vsel %vm2698, %v2694, inf
    %2700 = vmin.xlane.f32.xlu0 %v2699
    %v2701 = vpop.xlane.xlu0 %2700
    %v2702 = vcvt.f32.s32 %v2701
    %v2703 = vcvt.f32.s32 %v2697
    %v2704 = vshll.u32 %v2703, 16
    %v2705 = vadd.s32 %v2704, %v2702
    %vm2706 = vcmp.eq.s32.totalorder %v114, %v2705
    %vm2707 = vmand %vm2706, %vm390
    %v2708 = vsel %vm2707, 1.0, 0.0
    %v2710 = vrot.slane %v2708, 1
    %v2711 = vrot.slane %v2708, 2
    %v2712 = vrot.slane %v2708, 3
    %v2713 = vperm.slane %v2708, 0
    %v2714 = vperm.slane %v2710, 0
    %v2715 = vperm.slane %v2711, 0
    %v2716 = vperm.slane %v2712, 0
    %2717 = vset.pattern.permute.xlu0 0
    %2718 = vperm.xlu0 %2717, %v2713
    %v2719 = vpop.permute.xlu0 %2718
    %2721 = vset.pattern.permute.xlu0 0
    %2722 = vperm.xlu0 %2721, %v2714
    %v2723 = vpop.permute.xlu0 %2722
    %2725 = vset.pattern.permute.xlu0 0
    %2726 = vperm.xlu0 %2725, %v2715
    %v2727 = vpop.permute.xlu0 %2726
    %2729 = vset.pattern.permute.xlu0 0
    %2730 = vperm.xlu0 %2729, %v2716
    %v2731 = vpop.permute.xlu0 %2730
    %v2733 = vmul.f32 %v2719, %v242
    %v2734 = vmul.f32 %v2723, %v242
    %v2735 = vmul.f32 %v2727, %v242
    %v2736 = vmul.f32 %v2731, %v242
    %v2737 = vadd.f32 %v2733, 0.0
    %v2738 = vadd.f32 %v2734, 0.0
    %v2739 = vadd.f32 %v2735, 0.0
    %v2740 = vadd.f32 %v2736, 0.0
    %v2741 = vmul.f32 %v2719, %v287
    %v2742 = vmul.f32 %v2723, %v287
    %v2743 = vmul.f32 %v2727, %v287
    %v2744 = vmul.f32 %v2731, %v287
    %v2745 = vadd.f32 %v2741, 0.0
    %v2746 = vadd.f32 %v2742, 0.0
    %v2747 = vadd.f32 %v2743, 0.0
    %v2748 = vadd.f32 %v2744, 0.0
    %2749 = vset.pattern.permute.xlu0 1
    %2750 = vperm.xlu0 %2749, %v2713
    %v2751 = vpop.permute.xlu0 %2750
    %2753 = vset.pattern.permute.xlu0 1
    %2754 = vperm.xlu0 %2753, %v2714
    %v2755 = vpop.permute.xlu0 %2754
    %2757 = vset.pattern.permute.xlu0 1
    %2758 = vperm.xlu0 %2757, %v2715
    %v2759 = vpop.permute.xlu0 %2758
    %2761 = vset.pattern.permute.xlu0 1
    %2762 = vperm.xlu0 %2761, %v2716
    %v2763 = vpop.permute.xlu0 %2762
    %v2765 = vmul.f32 %v2751, %v245
    %v2766 = vmul.f32 %v2755, %v245
    %v2767 = vmul.f32 %v2759, %v245
    %v2768 = vmul.f32 %v2763, %v245
    %v2769 = vadd.f32 %v2737, %v2765
    %v2770 = vadd.f32 %v2738, %v2766
    %v2771 = vadd.f32 %v2739, %v2767
    %v2772 = vadd.f32 %v2740, %v2768
    %v2773 = vmul.f32 %v2751, %v290
    %v2774 = vmul.f32 %v2755, %v290
    %v2775 = vmul.f32 %v2759, %v290
    %v2776 = vmul.f32 %v2763, %v290
    %v2777 = vadd.f32 %v2745, %v2773
    %v2778 = vadd.f32 %v2746, %v2774
    %v2779 = vadd.f32 %v2747, %v2775
    %v2780 = vadd.f32 %v2748, %v2776
    %2781 = vset.pattern.permute.xlu0 2
    %2782 = vperm.xlu0 %2781, %v2713
    %v2783 = vpop.permute.xlu0 %2782
    %2785 = vset.pattern.permute.xlu0 2
    %2786 = vperm.xlu0 %2785, %v2714
    %v2787 = vpop.permute.xlu0 %2786
    %2789 = vset.pattern.permute.xlu0 2
    %2790 = vperm.xlu0 %2789, %v2715
    %v2791 = vpop.permute.xlu0 %2790
    %2793 = vset.pattern.permute.xlu0 2
    %2794 = vperm.xlu0 %2793, %v2716
    %v2795 = vpop.permute.xlu0 %2794
    %v2797 = vmul.f32 %v2783, %v248
    %v2798 = vmul.f32 %v2787, %v248
    %v2799 = vmul.f32 %v2791, %v248
    %v2800 = vmul.f32 %v2795, %v248
    %v2801 = vadd.f32 %v2769, %v2797
    %v2802 = vadd.f32 %v2770, %v2798
    %v2803 = vadd.f32 %v2771, %v2799
    %v2804 = vadd.f32 %v2772, %v2800
    %v2805 = vmul.f32 %v2783, %v293
    %v2806 = vmul.f32 %v2787, %v293
    %v2807 = vmul.f32 %v2791, %v293
    %v2808 = vmul.f32 %v2795, %v293
    %v2809 = vadd.f32 %v2777, %v2805
    %v2810 = vadd.f32 %v2778, %v2806
    %v2811 = vadd.f32 %v2779, %v2807
    %v2812 = vadd.f32 %v2780, %v2808
    %2813 = vset.pattern.permute.xlu0 3
    %2814 = vperm.xlu0 %2813, %v2713
    %v2815 = vpop.permute.xlu0 %2814
    %2817 = vset.pattern.permute.xlu0 3
    %2818 = vperm.xlu0 %2817, %v2714
    %v2819 = vpop.permute.xlu0 %2818
    %2821 = vset.pattern.permute.xlu0 3
    %2822 = vperm.xlu0 %2821, %v2715
    %v2823 = vpop.permute.xlu0 %2822
    %2825 = vset.pattern.permute.xlu0 3
    %2826 = vperm.xlu0 %2825, %v2716
    %v2827 = vpop.permute.xlu0 %2826
    %v2829 = vmul.f32 %v2815, %v251
    %v2830 = vmul.f32 %v2819, %v251
    %v2831 = vmul.f32 %v2823, %v251
    %v2832 = vmul.f32 %v2827, %v251
    %v2833 = vadd.f32 %v2801, %v2829
    %v2834 = vadd.f32 %v2802, %v2830
    %v2835 = vadd.f32 %v2803, %v2831
    %v2836 = vadd.f32 %v2804, %v2832
    %v2837 = vmul.f32 %v2815, %v296
    %v2838 = vmul.f32 %v2819, %v296
    %v2839 = vmul.f32 %v2823, %v296
    %v2840 = vmul.f32 %v2827, %v296
    %v2841 = vadd.f32 %v2809, %v2837
    %v2842 = vadd.f32 %v2810, %v2838
    %v2843 = vadd.f32 %v2811, %v2839
    %v2844 = vadd.f32 %v2812, %v2840
    %v2845 = vadd.f32 %v242, %v531
    %v2846 = vadd.f32 %v245, %v531
    %v2847 = vadd.f32 %v248, %v531
    %v2848 = vadd.f32 %v251, %v531
    %v2849 = vadd.f32 %v287, %v539
    %v2850 = vadd.f32 %v290, %v539
    %v2851 = vadd.f32 %v293, %v539
    %v2852 = vadd.f32 %v296, %v539
    %v2853 = vadd.f32 %v2833, %v531
    %v2854 = vadd.f32 %v2834, %v531
    %v2855 = vadd.f32 %v2835, %v531
    %v2856 = vadd.f32 %v2836, %v531
    %v2857 = vadd.f32 %v2841, %v539
    %v2858 = vadd.f32 %v2842, %v539
    %v2859 = vadd.f32 %v2843, %v539
    %v2860 = vadd.f32 %v2844, %v539
    %v2862 = vsel %vm553, %v204, 0
    %v2865 = vsel %vm553, %v2845, 0
    %2867 = vmatpush.xpose.msra.mxu0 0.0
    %2868 = vmatpush.xpose.msra.mxu0 0.0
    %2869 = vmatpush.xpose.msra.mxu0 0.0
    %2870 = vmatpush.xpose.msra.mxu0 0.0
    %2871 = vmatpush.xpose.msra.mxu0 0.0
    %2872 = vmatpush.xpose.msra.mxu0 0.0
    %2873 = vmatpush.xpose.msra.mxu0 0.0
    %2874 = vmatpush.xpose.msra.mxu0 0.0
    %2875 = vmatpush.xpose.msra.mxu0 0.0
    %2876 = vmatpush.xpose.msra.mxu0 0.0
    %2877 = vmatpush.xpose.msra.mxu0 0.0
    %2878 = vmatpush.xpose.msra.mxu0 0.0
    %2879 = vmatpush.xpose.msra.mxu0 0.0
    %2880 = vmatpush.xpose.msra.mxu0 0.0
    %2881 = vmatpush.xpose.msra.mxu0 0.0
    %2882 = vmatpush.xpose.msra.mxu0 %v2865
    %2883 = vmatmul.f32.gmra.mxu0 %v2862
    %v2884 = vpop.f32.mrf.mxu0
    %v2885 = vadd.f32 0.0, %v2884
    %2886 = vdwg.mxu0
    %v2888 = vsel %vm553, %v205, 0
    %v2891 = vsel %vm553, %v2846, 0
    %2893 = vmatpush.xpose.msra.mxu0 0.0
    %2894 = vmatpush.xpose.msra.mxu0 0.0
    %2895 = vmatpush.xpose.msra.mxu0 0.0
    %2896 = vmatpush.xpose.msra.mxu0 0.0
    %2897 = vmatpush.xpose.msra.mxu0 0.0
    %2898 = vmatpush.xpose.msra.mxu0 0.0
    %2899 = vmatpush.xpose.msra.mxu0 0.0
    %2900 = vmatpush.xpose.msra.mxu0 0.0
    %2901 = vmatpush.xpose.msra.mxu0 0.0
    %2902 = vmatpush.xpose.msra.mxu0 0.0
    %2903 = vmatpush.xpose.msra.mxu0 0.0
    %2904 = vmatpush.xpose.msra.mxu0 0.0
    %2905 = vmatpush.xpose.msra.mxu0 0.0
    %2906 = vmatpush.xpose.msra.mxu0 0.0
    %2907 = vmatpush.xpose.msra.mxu0 0.0
    %2908 = vmatpush.xpose.msra.mxu0 %v2891
    %2909 = vmatmul.f32.gmra.mxu0 %v2888
    %v2910 = vpop.f32.mrf.mxu0
    %v2911 = vadd.f32 0.0, %v2910
    %2912 = vdwg.mxu0
    %v2914 = vsel %vm553, %v206, 0
    %v2917 = vsel %vm553, %v2847, 0
    %2919 = vmatpush.xpose.msra.mxu0 0.0
    %2920 = vmatpush.xpose.msra.mxu0 0.0
    %2921 = vmatpush.xpose.msra.mxu0 0.0
    %2922 = vmatpush.xpose.msra.mxu0 0.0
    %2923 = vmatpush.xpose.msra.mxu0 0.0
    %2924 = vmatpush.xpose.msra.mxu0 0.0
    %2925 = vmatpush.xpose.msra.mxu0 0.0
    %2926 = vmatpush.xpose.msra.mxu0 0.0
    %2927 = vmatpush.xpose.msra.mxu0 0.0
    %2928 = vmatpush.xpose.msra.mxu0 0.0
    %2929 = vmatpush.xpose.msra.mxu0 0.0
    %2930 = vmatpush.xpose.msra.mxu0 0.0
    %2931 = vmatpush.xpose.msra.mxu0 0.0
    %2932 = vmatpush.xpose.msra.mxu0 0.0
    %2933 = vmatpush.xpose.msra.mxu0 0.0
    %2934 = vmatpush.xpose.msra.mxu0 %v2917
    %2935 = vmatmul.f32.gmra.mxu0 %v2914
    %v2936 = vpop.f32.mrf.mxu0
    %v2937 = vadd.f32 0.0, %v2936
    %2938 = vdwg.mxu0
    %v2940 = vsel %vm553, %v207, 0
    %v2943 = vsel %vm553, %v2848, 0
    %2945 = vmatpush.xpose.msra.mxu0 0.0
    %2946 = vmatpush.xpose.msra.mxu0 0.0
    %2947 = vmatpush.xpose.msra.mxu0 0.0
    %2948 = vmatpush.xpose.msra.mxu0 0.0
    %2949 = vmatpush.xpose.msra.mxu0 0.0
    %2950 = vmatpush.xpose.msra.mxu0 0.0
    %2951 = vmatpush.xpose.msra.mxu0 0.0
    %2952 = vmatpush.xpose.msra.mxu0 0.0
    %2953 = vmatpush.xpose.msra.mxu0 0.0
    %2954 = vmatpush.xpose.msra.mxu0 0.0
    %2955 = vmatpush.xpose.msra.mxu0 0.0
    %2956 = vmatpush.xpose.msra.mxu0 0.0
    %2957 = vmatpush.xpose.msra.mxu0 0.0
    %2958 = vmatpush.xpose.msra.mxu0 0.0
    %2959 = vmatpush.xpose.msra.mxu0 0.0
    %2960 = vmatpush.xpose.msra.mxu0 %v2943
    %2961 = vmatmul.f32.gmra.mxu0 %v2940
    %v2962 = vpop.f32.mrf.mxu0
    %v2963 = vadd.f32 0.0, %v2962
    %2964 = vdwg.mxu0
    %v2965 = vsel %vm117, -1e+09, %v2885
    %v2966 = vsel %vm117, -1e+09, %v2911
    %v2967 = vsel %vm117, -1e+09, %v2937
    %v2968 = vsel %vm117, -1e+09, %v2963
    %v2970 = vsel %vm553, %v2853, 0
    %2972 = vmatpush.xpose.msra.mxu0 0.0
    %2973 = vmatpush.xpose.msra.mxu0 0.0
    %2974 = vmatpush.xpose.msra.mxu0 0.0
    %2975 = vmatpush.xpose.msra.mxu0 0.0
    %2976 = vmatpush.xpose.msra.mxu0 0.0
    %2977 = vmatpush.xpose.msra.mxu0 0.0
    %2978 = vmatpush.xpose.msra.mxu0 0.0
    %2979 = vmatpush.xpose.msra.mxu0 0.0
    %2980 = vmatpush.xpose.msra.mxu0 0.0
    %2981 = vmatpush.xpose.msra.mxu0 0.0
    %2982 = vmatpush.xpose.msra.mxu0 0.0
    %2983 = vmatpush.xpose.msra.mxu0 0.0
    %2984 = vmatpush.xpose.msra.mxu0 0.0
    %2985 = vmatpush.xpose.msra.mxu0 0.0
    %2986 = vmatpush.xpose.msra.mxu0 0.0
    %2987 = vmatpush.xpose.msra.mxu0 %v2970
    %2988 = vmatmul.f32.gmra.mxu0 %v2862
    %v2989 = vpop.f32.mrf.mxu0
    %v2990 = vadd.f32 0.0, %v2989
    %2991 = vdwg.mxu0
    %v2993 = vsel %vm553, %v2854, 0
    %2995 = vmatpush.xpose.msra.mxu0 0.0
    %2996 = vmatpush.xpose.msra.mxu0 0.0
    %2997 = vmatpush.xpose.msra.mxu0 0.0
    %2998 = vmatpush.xpose.msra.mxu0 0.0
    %2999 = vmatpush.xpose.msra.mxu0 0.0
    %3000 = vmatpush.xpose.msra.mxu0 0.0
    %3001 = vmatpush.xpose.msra.mxu0 0.0
    %3002 = vmatpush.xpose.msra.mxu0 0.0
    %3003 = vmatpush.xpose.msra.mxu0 0.0
    %3004 = vmatpush.xpose.msra.mxu0 0.0
    %3005 = vmatpush.xpose.msra.mxu0 0.0
    %3006 = vmatpush.xpose.msra.mxu0 0.0
    %3007 = vmatpush.xpose.msra.mxu0 0.0
    %3008 = vmatpush.xpose.msra.mxu0 0.0
    %3009 = vmatpush.xpose.msra.mxu0 0.0
    %3010 = vmatpush.xpose.msra.mxu0 %v2993
    %3011 = vmatmul.f32.gmra.mxu0 %v2888
    %v3012 = vpop.f32.mrf.mxu0
    %v3013 = vadd.f32 0.0, %v3012
    %3014 = vdwg.mxu0
    %v3016 = vsel %vm553, %v2855, 0
    %3018 = vmatpush.xpose.msra.mxu0 0.0
    %3019 = vmatpush.xpose.msra.mxu0 0.0
    %3020 = vmatpush.xpose.msra.mxu0 0.0
    %3021 = vmatpush.xpose.msra.mxu0 0.0
    %3022 = vmatpush.xpose.msra.mxu0 0.0
    %3023 = vmatpush.xpose.msra.mxu0 0.0
    %3024 = vmatpush.xpose.msra.mxu0 0.0
    %3025 = vmatpush.xpose.msra.mxu0 0.0
    %3026 = vmatpush.xpose.msra.mxu0 0.0
    %3027 = vmatpush.xpose.msra.mxu0 0.0
    %3028 = vmatpush.xpose.msra.mxu0 0.0
    %3029 = vmatpush.xpose.msra.mxu0 0.0
    %3030 = vmatpush.xpose.msra.mxu0 0.0
    %3031 = vmatpush.xpose.msra.mxu0 0.0
    %3032 = vmatpush.xpose.msra.mxu0 0.0
    %3033 = vmatpush.xpose.msra.mxu0 %v3016
    %3034 = vmatmul.f32.gmra.mxu0 %v2914
    %v3035 = vpop.f32.mrf.mxu0
    %v3036 = vadd.f32 0.0, %v3035
    %3037 = vdwg.mxu0
    %v3039 = vsel %vm553, %v2856, 0
    %3041 = vmatpush.xpose.msra.mxu0 0.0
    %3042 = vmatpush.xpose.msra.mxu0 0.0
    %3043 = vmatpush.xpose.msra.mxu0 0.0
    %3044 = vmatpush.xpose.msra.mxu0 0.0
    %3045 = vmatpush.xpose.msra.mxu0 0.0
    %3046 = vmatpush.xpose.msra.mxu0 0.0
    %3047 = vmatpush.xpose.msra.mxu0 0.0
    %3048 = vmatpush.xpose.msra.mxu0 0.0
    %3049 = vmatpush.xpose.msra.mxu0 0.0
    %3050 = vmatpush.xpose.msra.mxu0 0.0
    %3051 = vmatpush.xpose.msra.mxu0 0.0
    %3052 = vmatpush.xpose.msra.mxu0 0.0
    %3053 = vmatpush.xpose.msra.mxu0 0.0
    %3054 = vmatpush.xpose.msra.mxu0 0.0
    %3055 = vmatpush.xpose.msra.mxu0 0.0
    %3056 = vmatpush.xpose.msra.mxu0 %v3039
    %3057 = vmatmul.f32.gmra.mxu0 %v2940
    %v3058 = vpop.f32.mrf.mxu0
    %v3059 = vadd.f32 0.0, %v3058
    %3060 = vdwg.mxu0
    %v3061 = vsel %vm553, %v2965, -inf
    %3062 = vmax.xlane.f32.xlu0 %v3061
    %v3063 = vpop.xlane.xlu0 %3062
    %v3064 = vsel %vm553, %v2966, -inf
    %3065 = vmax.xlane.f32.xlu0 %v3064
    %v3066 = vpop.xlane.xlu0 %3065
    %v3067 = vsel %vm553, %v2967, -inf
    %3068 = vmax.xlane.f32.xlu0 %v3067
    %v3069 = vpop.xlane.xlu0 %3068
    %v3070 = vsel %vm553, %v2968, -inf
    %3071 = vmax.xlane.f32.xlu0 %v3070
    %v3072 = vpop.xlane.xlu0 %3071
    %v3073 = vsel %vm553, %v2990, -inf
    %3074 = vmax.xlane.f32.xlu0 %v3073
    %v3075 = vpop.xlane.xlu0 %3074
    %v3076 = vsel %vm553, %v3013, -inf
    %3077 = vmax.xlane.f32.xlu0 %v3076
    %v3078 = vpop.xlane.xlu0 %3077
    %v3079 = vsel %vm553, %v3036, -inf
    %3080 = vmax.xlane.f32.xlu0 %v3079
    %v3081 = vpop.xlane.xlu0 %3080
    %v3082 = vsel %vm553, %v3059, -inf
    %3083 = vmax.xlane.f32.xlu0 %v3082
    %v3084 = vpop.xlane.xlu0 %3083
    %v3085 = vmax.f32 %v3063, %v3075
    %v3086 = vmax.f32 %v3066, %v3078
    %v3087 = vmax.f32 %v3069, %v3081
    %v3088 = vmax.f32 %v3072, %v3084
    %v3089 = vsub.f32 %v2965, %v3085
    %v3090 = vsub.f32 %v2966, %v3086
    %v3091 = vsub.f32 %v2967, %v3087
    %v3092 = vsub.f32 %v2968, %v3088
    %v3093 = vmul.f32 %v3089, 1.442695
    %v3094 = vpow.pop %v3093
    %v3095 = vmul.f32 %v3090, 1.442695
    %v3096 = vpow.pop %v3095
    %v3097 = vmul.f32 %v3091, 1.442695
    %v3098 = vpow.pop %v3097
    %v3099 = vmul.f32 %v3092, 1.442695
    %v3100 = vpow.pop %v3099
    %v3101 = vsub.f32 %v2990, %v3085
    %v3102 = vsub.f32 %v3013, %v3086
    %v3103 = vsub.f32 %v3036, %v3087
    %v3104 = vsub.f32 %v3059, %v3088
    %v3105 = vmul.f32 %v3101, 1.442695
    %v3106 = vpow.pop %v3105
    %v3107 = vmul.f32 %v3102, 1.442695
    %v3108 = vpow.pop %v3107
    %v3109 = vmul.f32 %v3103, 1.442695
    %v3110 = vpow.pop %v3109
    %v3111 = vmul.f32 %v3104, 1.442695
    %v3112 = vpow.pop %v3111
    %v3113 = vsel %vm553, %v3094, 0.0
    %3114 = vadd.xlane.f32.xlu0 %v3113
    %v3115 = vpop.xlane.xlu0 %3114
    %v3116 = vsel %vm553, %v3096, 0.0
    %3117 = vadd.xlane.f32.xlu0 %v3116
    %v3118 = vpop.xlane.xlu0 %3117
    %v3119 = vsel %vm553, %v3098, 0.0
    %3120 = vadd.xlane.f32.xlu0 %v3119
    %v3121 = vpop.xlane.xlu0 %3120
    %v3122 = vsel %vm553, %v3100, 0.0
    %3123 = vadd.xlane.f32.xlu0 %v3122
    %v3124 = vpop.xlane.xlu0 %3123
    %v3125 = vsel %vm553, %v3106, 0.0
    %3126 = vadd.xlane.f32.xlu0 %v3125
    %v3127 = vpop.xlane.xlu0 %3126
    %v3128 = vsel %vm553, %v3108, 0.0
    %3129 = vadd.xlane.f32.xlu0 %v3128
    %v3130 = vpop.xlane.xlu0 %3129
    %v3131 = vsel %vm553, %v3110, 0.0
    %3132 = vadd.xlane.f32.xlu0 %v3131
    %v3133 = vpop.xlane.xlu0 %3132
    %v3134 = vsel %vm553, %v3112, 0.0
    %3135 = vadd.xlane.f32.xlu0 %v3134
    %v3136 = vpop.xlane.xlu0 %3135
    %v3137 = vadd.f32 %v3115, %v3127
    %v3138 = vadd.f32 %v3118, %v3130
    %v3139 = vadd.f32 %v3121, %v3133
    %v3140 = vadd.f32 %v3124, %v3136
    %v3141 = vrcp.pop %v3137
    %v3142 = vrcp.pop %v3138
    %v3143 = vrcp.pop %v3139
    %v3144 = vrcp.pop %v3140
    %v3146 = vsel %vm553, %v3106, 0
    %3148 = vmatpush.msra.mxu0 0.0
    %3149 = vmatpush.msra.mxu0 0.0
    %3150 = vmatpush.msra.mxu0 0.0
    %3151 = vmatpush.msra.mxu0 0.0
    %3152 = vmatpush.msra.mxu0 0.0
    %3153 = vmatpush.msra.mxu0 0.0
    %3154 = vmatpush.msra.mxu0 0.0
    %3155 = vmatpush.msra.mxu0 0.0
    %3156 = vmatpush.msra.mxu0 0.0
    %3157 = vmatpush.msra.mxu0 0.0
    %3158 = vmatpush.msra.mxu0 0.0
    %3159 = vmatpush.msra.mxu0 0.0
    %3160 = vmatpush.msra.mxu0 0.0
    %3161 = vmatpush.msra.mxu0 0.0
    %3162 = vmatpush.msra.mxu0 0.0
    %3163 = vmatpush.msra.mxu0 %v2857
    %3164 = vmatmul.f32.gmra.mxu0 %v3146
    %v3165 = vpop.f32.mrf.mxu0
    %v3166 = vadd.f32 0.0, %v3165
    %3167 = vdwg.mxu0
    %v3169 = vsel %vm553, %v3108, 0
    %3171 = vmatpush.msra.mxu0 0.0
    %3172 = vmatpush.msra.mxu0 0.0
    %3173 = vmatpush.msra.mxu0 0.0
    %3174 = vmatpush.msra.mxu0 0.0
    %3175 = vmatpush.msra.mxu0 0.0
    %3176 = vmatpush.msra.mxu0 0.0
    %3177 = vmatpush.msra.mxu0 0.0
    %3178 = vmatpush.msra.mxu0 0.0
    %3179 = vmatpush.msra.mxu0 0.0
    %3180 = vmatpush.msra.mxu0 0.0
    %3181 = vmatpush.msra.mxu0 0.0
    %3182 = vmatpush.msra.mxu0 0.0
    %3183 = vmatpush.msra.mxu0 0.0
    %3184 = vmatpush.msra.mxu0 0.0
    %3185 = vmatpush.msra.mxu0 0.0
    %3186 = vmatpush.msra.mxu0 %v2858
    %3187 = vmatmul.f32.gmra.mxu0 %v3169
    %v3188 = vpop.f32.mrf.mxu0
    %v3189 = vadd.f32 0.0, %v3188
    %3190 = vdwg.mxu0
    %v3192 = vsel %vm553, %v3110, 0
    %3194 = vmatpush.msra.mxu0 0.0
    %3195 = vmatpush.msra.mxu0 0.0
    %3196 = vmatpush.msra.mxu0 0.0
    %3197 = vmatpush.msra.mxu0 0.0
    %3198 = vmatpush.msra.mxu0 0.0
    %3199 = vmatpush.msra.mxu0 0.0
    %3200 = vmatpush.msra.mxu0 0.0
    %3201 = vmatpush.msra.mxu0 0.0
    %3202 = vmatpush.msra.mxu0 0.0
    %3203 = vmatpush.msra.mxu0 0.0
    %3204 = vmatpush.msra.mxu0 0.0
    %3205 = vmatpush.msra.mxu0 0.0
    %3206 = vmatpush.msra.mxu0 0.0
    %3207 = vmatpush.msra.mxu0 0.0
    %3208 = vmatpush.msra.mxu0 0.0
    %3209 = vmatpush.msra.mxu0 %v2859
    %3210 = vmatmul.f32.gmra.mxu0 %v3192
    %v3211 = vpop.f32.mrf.mxu0
    %v3212 = vadd.f32 0.0, %v3211
    %3213 = vdwg.mxu0
    %v3215 = vsel %vm553, %v3112, 0
    %3217 = vmatpush.msra.mxu0 0.0
    %3218 = vmatpush.msra.mxu0 0.0
    %3219 = vmatpush.msra.mxu0 0.0
    %3220 = vmatpush.msra.mxu0 0.0
    %3221 = vmatpush.msra.mxu0 0.0
    %3222 = vmatpush.msra.mxu0 0.0
    %3223 = vmatpush.msra.mxu0 0.0
    %3224 = vmatpush.msra.mxu0 0.0
    %3225 = vmatpush.msra.mxu0 0.0
    %3226 = vmatpush.msra.mxu0 0.0
    %3227 = vmatpush.msra.mxu0 0.0
    %3228 = vmatpush.msra.mxu0 0.0
    %3229 = vmatpush.msra.mxu0 0.0
    %3230 = vmatpush.msra.mxu0 0.0
    %3231 = vmatpush.msra.mxu0 0.0
    %3232 = vmatpush.msra.mxu0 %v2860
    %3233 = vmatmul.f32.gmra.mxu0 %v3215
    %v3234 = vpop.f32.mrf.mxu0
    %v3235 = vadd.f32 0.0, %v3234
    %3236 = vdwg.mxu0
    %v3238 = vsel %vm553, %v3094, 0
    %3240 = vmatpush.msra.mxu0 0.0
    %3241 = vmatpush.msra.mxu0 0.0
    %3242 = vmatpush.msra.mxu0 0.0
    %3243 = vmatpush.msra.mxu0 0.0
    %3244 = vmatpush.msra.mxu0 0.0
    %3245 = vmatpush.msra.mxu0 0.0
    %3246 = vmatpush.msra.mxu0 0.0
    %3247 = vmatpush.msra.mxu0 0.0
    %3248 = vmatpush.msra.mxu0 0.0
    %3249 = vmatpush.msra.mxu0 0.0
    %3250 = vmatpush.msra.mxu0 0.0
    %3251 = vmatpush.msra.mxu0 0.0
    %3252 = vmatpush.msra.mxu0 0.0
    %3253 = vmatpush.msra.mxu0 0.0
    %3254 = vmatpush.msra.mxu0 0.0
    %3255 = vmatpush.msra.mxu0 %v2849
    %3256 = vmatmul.f32.gmra.mxu0 %v3238
    %v3257 = vpop.f32.mrf.mxu0
    %v3258 = vadd.f32 %v3166, %v3257
    %3259 = vdwg.mxu0
    %v3261 = vsel %vm553, %v3096, 0
    %3263 = vmatpush.msra.mxu0 0.0
    %3264 = vmatpush.msra.mxu0 0.0
    %3265 = vmatpush.msra.mxu0 0.0
    %3266 = vmatpush.msra.mxu0 0.0
    %3267 = vmatpush.msra.mxu0 0.0
    %3268 = vmatpush.msra.mxu0 0.0
    %3269 = vmatpush.msra.mxu0 0.0
    %3270 = vmatpush.msra.mxu0 0.0
    %3271 = vmatpush.msra.mxu0 0.0
    %3272 = vmatpush.msra.mxu0 0.0
    %3273 = vmatpush.msra.mxu0 0.0
    %3274 = vmatpush.msra.mxu0 0.0
    %3275 = vmatpush.msra.mxu0 0.0
    %3276 = vmatpush.msra.mxu0 0.0
    %3277 = vmatpush.msra.mxu0 0.0
    %3278 = vmatpush.msra.mxu0 %v2850
    %3279 = vmatmul.f32.gmra.mxu0 %v3261
    %v3280 = vpop.f32.mrf.mxu0
    %v3281 = vadd.f32 %v3189, %v3280
    %3282 = vdwg.mxu0
    %v3284 = vsel %vm553, %v3098, 0
    %3286 = vmatpush.msra.mxu0 0.0
    %3287 = vmatpush.msra.mxu0 0.0
    %3288 = vmatpush.msra.mxu0 0.0
    %3289 = vmatpush.msra.mxu0 0.0
    %3290 = vmatpush.msra.mxu0 0.0
    %3291 = vmatpush.msra.mxu0 0.0
    %3292 = vmatpush.msra.mxu0 0.0
    %3293 = vmatpush.msra.mxu0 0.0
    %3294 = vmatpush.msra.mxu0 0.0
    %3295 = vmatpush.msra.mxu0 0.0
    %3296 = vmatpush.msra.mxu0 0.0
    %3297 = vmatpush.msra.mxu0 0.0
    %3298 = vmatpush.msra.mxu0 0.0
    %3299 = vmatpush.msra.mxu0 0.0
    %3300 = vmatpush.msra.mxu0 0.0
    %3301 = vmatpush.msra.mxu0 %v2851
    %3302 = vmatmul.f32.gmra.mxu0 %v3284
    %v3303 = vpop.f32.mrf.mxu0
    %v3304 = vadd.f32 %v3212, %v3303
    %3305 = vdwg.mxu0
    %v3307 = vsel %vm553, %v3100, 0
    %3309 = vmatpush.msra.mxu0 0.0
    %3310 = vmatpush.msra.mxu0 0.0
    %3311 = vmatpush.msra.mxu0 0.0
    %3312 = vmatpush.msra.mxu0 0.0
    %3313 = vmatpush.msra.mxu0 0.0
    %3314 = vmatpush.msra.mxu0 0.0
    %3315 = vmatpush.msra.mxu0 0.0
    %3316 = vmatpush.msra.mxu0 0.0
    %3317 = vmatpush.msra.mxu0 0.0
    %3318 = vmatpush.msra.mxu0 0.0
    %3319 = vmatpush.msra.mxu0 0.0
    %3320 = vmatpush.msra.mxu0 0.0
    %3321 = vmatpush.msra.mxu0 0.0
    %3322 = vmatpush.msra.mxu0 0.0
    %3323 = vmatpush.msra.mxu0 0.0
    %3324 = vmatpush.msra.mxu0 %v2852
    %3325 = vmatmul.f32.gmra.mxu0 %v3307
    %v3326 = vpop.f32.mrf.mxu0
    %v3327 = vadd.f32 %v3235, %v3326
    %3328 = vdwg.mxu0
    %v3329 = vmul.f32 %v3258, %v3141
    %v3330 = vmul.f32 %v3281, %v3142
    %v3331 = vmul.f32 %v3304, %v3143
    %v3332 = vmul.f32 %v3327, %v3144
    %3333 = vrot.lane.b32.xlu0 %v204, 120
    %v3334 = vpop.permute.xlu0 %3333
    %3335 = vrot.lane.b32.xlu0 %v2845, 120
    %v3336 = vpop.permute.xlu0 %3335
    %v3337 = vsel %vm553, %v3334, 0
    %v3339 = vsel %vm553, %v3336, 0
    %3341 = vmatpush.xpose.msra.mxu0 0.0
    %3342 = vmatpush.xpose.msra.mxu0 0.0
    %3343 = vmatpush.xpose.msra.mxu0 0.0
    %3344 = vmatpush.xpose.msra.mxu0 0.0
    %3345 = vmatpush.xpose.msra.mxu0 0.0
    %3346 = vmatpush.xpose.msra.mxu0 0.0
    %3347 = vmatpush.xpose.msra.mxu0 0.0
    %3348 = vmatpush.xpose.msra.mxu0 0.0
    %3349 = vmatpush.xpose.msra.mxu0 0.0
    %3350 = vmatpush.xpose.msra.mxu0 0.0
    %3351 = vmatpush.xpose.msra.mxu0 0.0
    %3352 = vmatpush.xpose.msra.mxu0 0.0
    %3353 = vmatpush.xpose.msra.mxu0 0.0
    %3354 = vmatpush.xpose.msra.mxu0 0.0
    %3355 = vmatpush.xpose.msra.mxu0 0.0
    %3356 = vmatpush.xpose.msra.mxu0 %v3339
    %3357 = vmatmul.f32.gmra.mxu0 %v3337
    %v3358 = vpop.f32.mrf.mxu0
    %v3359 = vadd.f32 0.0, %v3358
    %3360 = vdwg.mxu0
    %3361 = vrot.lane.b32.xlu0 %v205, 120
    %v3362 = vpop.permute.xlu0 %3361
    %3363 = vrot.lane.b32.xlu0 %v2846, 120
    %v3364 = vpop.permute.xlu0 %3363
    %v3365 = vsel %vm553, %v3362, 0
    %v3367 = vsel %vm553, %v3364, 0
    %3369 = vmatpush.xpose.msra.mxu0 0.0
    %3370 = vmatpush.xpose.msra.mxu0 0.0
    %3371 = vmatpush.xpose.msra.mxu0 0.0
    %3372 = vmatpush.xpose.msra.mxu0 0.0
    %3373 = vmatpush.xpose.msra.mxu0 0.0
    %3374 = vmatpush.xpose.msra.mxu0 0.0
    %3375 = vmatpush.xpose.msra.mxu0 0.0
    %3376 = vmatpush.xpose.msra.mxu0 0.0
    %3377 = vmatpush.xpose.msra.mxu0 0.0
    %3378 = vmatpush.xpose.msra.mxu0 0.0
    %3379 = vmatpush.xpose.msra.mxu0 0.0
    %3380 = vmatpush.xpose.msra.mxu0 0.0
    %3381 = vmatpush.xpose.msra.mxu0 0.0
    %3382 = vmatpush.xpose.msra.mxu0 0.0
    %3383 = vmatpush.xpose.msra.mxu0 0.0
    %3384 = vmatpush.xpose.msra.mxu0 %v3367
    %3385 = vmatmul.f32.gmra.mxu0 %v3365
    %v3386 = vpop.f32.mrf.mxu0
    %v3387 = vadd.f32 0.0, %v3386
    %3388 = vdwg.mxu0
    %3389 = vrot.lane.b32.xlu0 %v206, 120
    %v3390 = vpop.permute.xlu0 %3389
    %3391 = vrot.lane.b32.xlu0 %v2847, 120
    %v3392 = vpop.permute.xlu0 %3391
    %v3393 = vsel %vm553, %v3390, 0
    %v3395 = vsel %vm553, %v3392, 0
    %3397 = vmatpush.xpose.msra.mxu0 0.0
    %3398 = vmatpush.xpose.msra.mxu0 0.0
    %3399 = vmatpush.xpose.msra.mxu0 0.0
    %3400 = vmatpush.xpose.msra.mxu0 0.0
    %3401 = vmatpush.xpose.msra.mxu0 0.0
    %3402 = vmatpush.xpose.msra.mxu0 0.0
    %3403 = vmatpush.xpose.msra.mxu0 0.0
    %3404 = vmatpush.xpose.msra.mxu0 0.0
    %3405 = vmatpush.xpose.msra.mxu0 0.0
    %3406 = vmatpush.xpose.msra.mxu0 0.0
    %3407 = vmatpush.xpose.msra.mxu0 0.0
    %3408 = vmatpush.xpose.msra.mxu0 0.0
    %3409 = vmatpush.xpose.msra.mxu0 0.0
    %3410 = vmatpush.xpose.msra.mxu0 0.0
    %3411 = vmatpush.xpose.msra.mxu0 0.0
    %3412 = vmatpush.xpose.msra.mxu0 %v3395
    %3413 = vmatmul.f32.gmra.mxu0 %v3393
    %v3414 = vpop.f32.mrf.mxu0
    %v3415 = vadd.f32 0.0, %v3414
    %3416 = vdwg.mxu0
    %3417 = vrot.lane.b32.xlu0 %v207, 120
    %v3418 = vpop.permute.xlu0 %3417
    %3419 = vrot.lane.b32.xlu0 %v2848, 120
    %v3420 = vpop.permute.xlu0 %3419
    %v3421 = vsel %vm553, %v3418, 0
    %v3423 = vsel %vm553, %v3420, 0
    %3425 = vmatpush.xpose.msra.mxu0 0.0
    %3426 = vmatpush.xpose.msra.mxu0 0.0
    %3427 = vmatpush.xpose.msra.mxu0 0.0
    %3428 = vmatpush.xpose.msra.mxu0 0.0
    %3429 = vmatpush.xpose.msra.mxu0 0.0
    %3430 = vmatpush.xpose.msra.mxu0 0.0
    %3431 = vmatpush.xpose.msra.mxu0 0.0
    %3432 = vmatpush.xpose.msra.mxu0 0.0
    %3433 = vmatpush.xpose.msra.mxu0 0.0
    %3434 = vmatpush.xpose.msra.mxu0 0.0
    %3435 = vmatpush.xpose.msra.mxu0 0.0
    %3436 = vmatpush.xpose.msra.mxu0 0.0
    %3437 = vmatpush.xpose.msra.mxu0 0.0
    %3438 = vmatpush.xpose.msra.mxu0 0.0
    %3439 = vmatpush.xpose.msra.mxu0 0.0
    %3440 = vmatpush.xpose.msra.mxu0 %v3423
    %3441 = vmatmul.f32.gmra.mxu0 %v3421
    %v3442 = vpop.f32.mrf.mxu0
    %v3443 = vadd.f32 0.0, %v3442
    %3444 = vdwg.mxu0
    %v3445 = vsel %vm117, -1e+09, %v3359
    %v3446 = vsel %vm117, -1e+09, %v3387
    %v3447 = vsel %vm117, -1e+09, %v3415
    %v3448 = vsel %vm117, -1e+09, %v3443
    %3449 = vrot.lane.b32.xlu0 %v2853, 120
    %v3450 = vpop.permute.xlu0 %3449
    %v3451 = vsel %vm553, %v3450, 0
    %3453 = vmatpush.xpose.msra.mxu0 0.0
    %3454 = vmatpush.xpose.msra.mxu0 0.0
    %3455 = vmatpush.xpose.msra.mxu0 0.0
    %3456 = vmatpush.xpose.msra.mxu0 0.0
    %3457 = vmatpush.xpose.msra.mxu0 0.0
    %3458 = vmatpush.xpose.msra.mxu0 0.0
    %3459 = vmatpush.xpose.msra.mxu0 0.0
    %3460 = vmatpush.xpose.msra.mxu0 0.0
    %3461 = vmatpush.xpose.msra.mxu0 0.0
    %3462 = vmatpush.xpose.msra.mxu0 0.0
    %3463 = vmatpush.xpose.msra.mxu0 0.0
    %3464 = vmatpush.xpose.msra.mxu0 0.0
    %3465 = vmatpush.xpose.msra.mxu0 0.0
    %3466 = vmatpush.xpose.msra.mxu0 0.0
    %3467 = vmatpush.xpose.msra.mxu0 0.0
    %3468 = vmatpush.xpose.msra.mxu0 %v3451
    %3469 = vmatmul.f32.gmra.mxu0 %v3337
    %v3470 = vpop.f32.mrf.mxu0
    %v3471 = vadd.f32 0.0, %v3470
    %3472 = vdwg.mxu0
    %3473 = vrot.lane.b32.xlu0 %v2854, 120
    %v3474 = vpop.permute.xlu0 %3473
    %v3475 = vsel %vm553, %v3474, 0
    %3477 = vmatpush.xpose.msra.mxu0 0.0
    %3478 = vmatpush.xpose.msra.mxu0 0.0
    %3479 = vmatpush.xpose.msra.mxu0 0.0
    %3480 = vmatpush.xpose.msra.mxu0 0.0
    %3481 = vmatpush.xpose.msra.mxu0 0.0
    %3482 = vmatpush.xpose.msra.mxu0 0.0
    %3483 = vmatpush.xpose.msra.mxu0 0.0
    %3484 = vmatpush.xpose.msra.mxu0 0.0
    %3485 = vmatpush.xpose.msra.mxu0 0.0
    %3486 = vmatpush.xpose.msra.mxu0 0.0
    %3487 = vmatpush.xpose.msra.mxu0 0.0
    %3488 = vmatpush.xpose.msra.mxu0 0.0
    %3489 = vmatpush.xpose.msra.mxu0 0.0
    %3490 = vmatpush.xpose.msra.mxu0 0.0
    %3491 = vmatpush.xpose.msra.mxu0 0.0
    %3492 = vmatpush.xpose.msra.mxu0 %v3475
    %3493 = vmatmul.f32.gmra.mxu0 %v3365
    %v3494 = vpop.f32.mrf.mxu0
    %v3495 = vadd.f32 0.0, %v3494
    %3496 = vdwg.mxu0
    %3497 = vrot.lane.b32.xlu0 %v2855, 120
    %v3498 = vpop.permute.xlu0 %3497
    %v3499 = vsel %vm553, %v3498, 0
    %3501 = vmatpush.xpose.msra.mxu0 0.0
    %3502 = vmatpush.xpose.msra.mxu0 0.0
    %3503 = vmatpush.xpose.msra.mxu0 0.0
    %3504 = vmatpush.xpose.msra.mxu0 0.0
    %3505 = vmatpush.xpose.msra.mxu0 0.0
    %3506 = vmatpush.xpose.msra.mxu0 0.0
    %3507 = vmatpush.xpose.msra.mxu0 0.0
    %3508 = vmatpush.xpose.msra.mxu0 0.0
    %3509 = vmatpush.xpose.msra.mxu0 0.0
    %3510 = vmatpush.xpose.msra.mxu0 0.0
    %3511 = vmatpush.xpose.msra.mxu0 0.0
    %3512 = vmatpush.xpose.msra.mxu0 0.0
    %3513 = vmatpush.xpose.msra.mxu0 0.0
    %3514 = vmatpush.xpose.msra.mxu0 0.0
    %3515 = vmatpush.xpose.msra.mxu0 0.0
    %3516 = vmatpush.xpose.msra.mxu0 %v3499
    %3517 = vmatmul.f32.gmra.mxu0 %v3393
    %v3518 = vpop.f32.mrf.mxu0
    %v3519 = vadd.f32 0.0, %v3518
    %3520 = vdwg.mxu0
    %3521 = vrot.lane.b32.xlu0 %v2856, 120
    %v3522 = vpop.permute.xlu0 %3521
    %v3523 = vsel %vm553, %v3522, 0
    %3525 = vmatpush.xpose.msra.mxu0 0.0
    %3526 = vmatpush.xpose.msra.mxu0 0.0
    %3527 = vmatpush.xpose.msra.mxu0 0.0
    %3528 = vmatpush.xpose.msra.mxu0 0.0
    %3529 = vmatpush.xpose.msra.mxu0 0.0
    %3530 = vmatpush.xpose.msra.mxu0 0.0
    %3531 = vmatpush.xpose.msra.mxu0 0.0
    %3532 = vmatpush.xpose.msra.mxu0 0.0
    %3533 = vmatpush.xpose.msra.mxu0 0.0
    %3534 = vmatpush.xpose.msra.mxu0 0.0
    %3535 = vmatpush.xpose.msra.mxu0 0.0
    %3536 = vmatpush.xpose.msra.mxu0 0.0
    %3537 = vmatpush.xpose.msra.mxu0 0.0
    %3538 = vmatpush.xpose.msra.mxu0 0.0
    %3539 = vmatpush.xpose.msra.mxu0 0.0
    %3540 = vmatpush.xpose.msra.mxu0 %v3523
    %3541 = vmatmul.f32.gmra.mxu0 %v3421
    %v3542 = vpop.f32.mrf.mxu0
    %v3543 = vadd.f32 0.0, %v3542
    %3544 = vdwg.mxu0
    %v3545 = vsel %vm553, %v3445, -inf
    %3546 = vmax.xlane.f32.xlu0 %v3545
    %v3547 = vpop.xlane.xlu0 %3546
    %v3548 = vsel %vm553, %v3446, -inf
    %3549 = vmax.xlane.f32.xlu0 %v3548
    %v3550 = vpop.xlane.xlu0 %3549
    %v3551 = vsel %vm553, %v3447, -inf
    %3552 = vmax.xlane.f32.xlu0 %v3551
    %v3553 = vpop.xlane.xlu0 %3552
    %v3554 = vsel %vm553, %v3448, -inf
    %3555 = vmax.xlane.f32.xlu0 %v3554
    %v3556 = vpop.xlane.xlu0 %3555
    %v3557 = vsel %vm553, %v3471, -inf
    %3558 = vmax.xlane.f32.xlu0 %v3557
    %v3559 = vpop.xlane.xlu0 %3558
    %v3560 = vsel %vm553, %v3495, -inf
    %3561 = vmax.xlane.f32.xlu0 %v3560
    %v3562 = vpop.xlane.xlu0 %3561
    %v3563 = vsel %vm553, %v3519, -inf
    %3564 = vmax.xlane.f32.xlu0 %v3563
    %v3565 = vpop.xlane.xlu0 %3564
    %v3566 = vsel %vm553, %v3543, -inf
    %3567 = vmax.xlane.f32.xlu0 %v3566
    %v3568 = vpop.xlane.xlu0 %3567
    %v3569 = vmax.f32 %v3547, %v3559
    %v3570 = vmax.f32 %v3550, %v3562
    %v3571 = vmax.f32 %v3553, %v3565
    %v3572 = vmax.f32 %v3556, %v3568
    %v3573 = vsub.f32 %v3445, %v3569
    %v3574 = vsub.f32 %v3446, %v3570
    %v3575 = vsub.f32 %v3447, %v3571
    %v3576 = vsub.f32 %v3448, %v3572
    %v3577 = vmul.f32 %v3573, 1.442695
    %v3578 = vpow.pop %v3577
    %v3579 = vmul.f32 %v3574, 1.442695
    %v3580 = vpow.pop %v3579
    %v3581 = vmul.f32 %v3575, 1.442695
    %v3582 = vpow.pop %v3581
    %v3583 = vmul.f32 %v3576, 1.442695
    %v3584 = vpow.pop %v3583
    %v3585 = vsub.f32 %v3471, %v3569
    %v3586 = vsub.f32 %v3495, %v3570
    %v3587 = vsub.f32 %v3519, %v3571
    %v3588 = vsub.f32 %v3543, %v3572
    %v3589 = vmul.f32 %v3585, 1.442695
    %v3590 = vpow.pop %v3589
    %v3591 = vmul.f32 %v3586, 1.442695
    %v3592 = vpow.pop %v3591
    %v3593 = vmul.f32 %v3587, 1.442695
    %v3594 = vpow.pop %v3593
    %v3595 = vmul.f32 %v3588, 1.442695
    %v3596 = vpow.pop %v3595
    %v3597 = vsel %vm553, %v3578, 0.0
    %3598 = vadd.xlane.f32.xlu0 %v3597
    %v3599 = vpop.xlane.xlu0 %3598
    %v3600 = vsel %vm553, %v3580, 0.0
    %3601 = vadd.xlane.f32.xlu0 %v3600
    %v3602 = vpop.xlane.xlu0 %3601
    %v3603 = vsel %vm553, %v3582, 0.0
    %3604 = vadd.xlane.f32.xlu0 %v3603
    %v3605 = vpop.xlane.xlu0 %3604
    %v3606 = vsel %vm553, %v3584, 0.0
    %3607 = vadd.xlane.f32.xlu0 %v3606
    %v3608 = vpop.xlane.xlu0 %3607
    %v3609 = vsel %vm553, %v3590, 0.0
    %3610 = vadd.xlane.f32.xlu0 %v3609
    %v3611 = vpop.xlane.xlu0 %3610
    %v3612 = vsel %vm553, %v3592, 0.0
    %3613 = vadd.xlane.f32.xlu0 %v3612
    %v3614 = vpop.xlane.xlu0 %3613
    %v3615 = vsel %vm553, %v3594, 0.0
    %3616 = vadd.xlane.f32.xlu0 %v3615
    %v3617 = vpop.xlane.xlu0 %3616
    %v3618 = vsel %vm553, %v3596, 0.0
    %3619 = vadd.xlane.f32.xlu0 %v3618
    %v3620 = vpop.xlane.xlu0 %3619
    %v3621 = vadd.f32 %v3599, %v3611
    %v3622 = vadd.f32 %v3602, %v3614
    %v3623 = vadd.f32 %v3605, %v3617
    %v3624 = vadd.f32 %v3608, %v3620
    %v3625 = vrcp.pop %v3621
    %v3626 = vrcp.pop %v3622
    %v3627 = vrcp.pop %v3623
    %v3628 = vrcp.pop %v3624
    %3630 = vrot.lane.b32.xlu0 %v2857, 120
    %v3631 = vpop.permute.xlu0 %3630
    %v3634 = vsel %vm553, %v3590, 0
    %3636 = vmatpush.msra.mxu0 0.0
    %3637 = vmatpush.msra.mxu0 0.0
    %3638 = vmatpush.msra.mxu0 0.0
    %3639 = vmatpush.msra.mxu0 0.0
    %3640 = vmatpush.msra.mxu0 0.0
    %3641 = vmatpush.msra.mxu0 0.0
    %3642 = vmatpush.msra.mxu0 0.0
    %3643 = vmatpush.msra.mxu0 0.0
    %3644 = vmatpush.msra.mxu0 0.0
    %3645 = vmatpush.msra.mxu0 0.0
    %3646 = vmatpush.msra.mxu0 0.0
    %3647 = vmatpush.msra.mxu0 0.0
    %3648 = vmatpush.msra.mxu0 0.0
    %3649 = vmatpush.msra.mxu0 0.0
    %3650 = vmatpush.msra.mxu0 0.0
    %3651 = vmatpush.msra.mxu0 %v3631
    %3652 = vmatmul.f32.gmra.mxu0 %v3634
    %v3653 = vpop.f32.mrf.mxu0
    %v3654 = vadd.f32 0.0, %v3653
    %3655 = vdwg.mxu0
    %3657 = vrot.lane.b32.xlu0 %v2858, 120
    %v3658 = vpop.permute.xlu0 %3657
    %v3661 = vsel %vm553, %v3592, 0
    %3663 = vmatpush.msra.mxu0 0.0
    %3664 = vmatpush.msra.mxu0 0.0
    %3665 = vmatpush.msra.mxu0 0.0
    %3666 = vmatpush.msra.mxu0 0.0
    %3667 = vmatpush.msra.mxu0 0.0
    %3668 = vmatpush.msra.mxu0 0.0
    %3669 = vmatpush.msra.mxu0 0.0
    %3670 = vmatpush.msra.mxu0 0.0
    %3671 = vmatpush.msra.mxu0 0.0
    %3672 = vmatpush.msra.mxu0 0.0
    %3673 = vmatpush.msra.mxu0 0.0
    %3674 = vmatpush.msra.mxu0 0.0
    %3675 = vmatpush.msra.mxu0 0.0
    %3676 = vmatpush.msra.mxu0 0.0
    %3677 = vmatpush.msra.mxu0 0.0
    %3678 = vmatpush.msra.mxu0 %v3658
    %3679 = vmatmul.f32.gmra.mxu0 %v3661
    %v3680 = vpop.f32.mrf.mxu0
    %v3681 = vadd.f32 0.0, %v3680
    %3682 = vdwg.mxu0
    %3684 = vrot.lane.b32.xlu0 %v2859, 120
    %v3685 = vpop.permute.xlu0 %3684
    %v3688 = vsel %vm553, %v3594, 0
    %3690 = vmatpush.msra.mxu0 0.0
    %3691 = vmatpush.msra.mxu0 0.0
    %3692 = vmatpush.msra.mxu0 0.0
    %3693 = vmatpush.msra.mxu0 0.0
    %3694 = vmatpush.msra.mxu0 0.0
    %3695 = vmatpush.msra.mxu0 0.0
    %3696 = vmatpush.msra.mxu0 0.0
    %3697 = vmatpush.msra.mxu0 0.0
    %3698 = vmatpush.msra.mxu0 0.0
    %3699 = vmatpush.msra.mxu0 0.0
    %3700 = vmatpush.msra.mxu0 0.0
    %3701 = vmatpush.msra.mxu0 0.0
    %3702 = vmatpush.msra.mxu0 0.0
    %3703 = vmatpush.msra.mxu0 0.0
    %3704 = vmatpush.msra.mxu0 0.0
    %3705 = vmatpush.msra.mxu0 %v3685
    %3706 = vmatmul.f32.gmra.mxu0 %v3688
    %v3707 = vpop.f32.mrf.mxu0
    %v3708 = vadd.f32 0.0, %v3707
    %3709 = vdwg.mxu0
    %3711 = vrot.lane.b32.xlu0 %v2860, 120
    %v3712 = vpop.permute.xlu0 %3711
    %v3715 = vsel %vm553, %v3596, 0
    %3717 = vmatpush.msra.mxu0 0.0
    %3718 = vmatpush.msra.mxu0 0.0
    %3719 = vmatpush.msra.mxu0 0.0
    %3720 = vmatpush.msra.mxu0 0.0
    %3721 = vmatpush.msra.mxu0 0.0
    %3722 = vmatpush.msra.mxu0 0.0
    %3723 = vmatpush.msra.mxu0 0.0
    %3724 = vmatpush.msra.mxu0 0.0
    %3725 = vmatpush.msra.mxu0 0.0
    %3726 = vmatpush.msra.mxu0 0.0
    %3727 = vmatpush.msra.mxu0 0.0
    %3728 = vmatpush.msra.mxu0 0.0
    %3729 = vmatpush.msra.mxu0 0.0
    %3730 = vmatpush.msra.mxu0 0.0
    %3731 = vmatpush.msra.mxu0 0.0
    %3732 = vmatpush.msra.mxu0 %v3712
    %3733 = vmatmul.f32.gmra.mxu0 %v3715
    %v3734 = vpop.f32.mrf.mxu0
    %v3735 = vadd.f32 0.0, %v3734
    %3736 = vdwg.mxu0
    %3738 = vrot.lane.b32.xlu0 %v2849, 120
    %v3739 = vpop.permute.xlu0 %3738
    %v3742 = vsel %vm553, %v3578, 0
    %3744 = vmatpush.msra.mxu0 0.0
    %3745 = vmatpush.msra.mxu0 0.0
    %3746 = vmatpush.msra.mxu0 0.0
    %3747 = vmatpush.msra.mxu0 0.0
    %3748 = vmatpush.msra.mxu0 0.0
    %3749 = vmatpush.msra.mxu0 0.0
    %3750 = vmatpush.msra.mxu0 0.0
    %3751 = vmatpush.msra.mxu0 0.0
    %3752 = vmatpush.msra.mxu0 0.0
    %3753 = vmatpush.msra.mxu0 0.0
    %3754 = vmatpush.msra.mxu0 0.0
    %3755 = vmatpush.msra.mxu0 0.0
    %3756 = vmatpush.msra.mxu0 0.0
    %3757 = vmatpush.msra.mxu0 0.0
    %3758 = vmatpush.msra.mxu0 0.0
    %3759 = vmatpush.msra.mxu0 %v3739
    %3760 = vmatmul.f32.gmra.mxu0 %v3742
    %v3761 = vpop.f32.mrf.mxu0
    %v3762 = vadd.f32 %v3654, %v3761
    %3763 = vdwg.mxu0
    %3765 = vrot.lane.b32.xlu0 %v2850, 120
    %v3766 = vpop.permute.xlu0 %3765
    %v3769 = vsel %vm553, %v3580, 0
    %3771 = vmatpush.msra.mxu0 0.0
    %3772 = vmatpush.msra.mxu0 0.0
    %3773 = vmatpush.msra.mxu0 0.0
    %3774 = vmatpush.msra.mxu0 0.0
    %3775 = vmatpush.msra.mxu0 0.0
    %3776 = vmatpush.msra.mxu0 0.0
    %3777 = vmatpush.msra.mxu0 0.0
    %3778 = vmatpush.msra.mxu0 0.0
    %3779 = vmatpush.msra.mxu0 0.0
    %3780 = vmatpush.msra.mxu0 0.0
    %3781 = vmatpush.msra.mxu0 0.0
    %3782 = vmatpush.msra.mxu0 0.0
    %3783 = vmatpush.msra.mxu0 0.0
    %3784 = vmatpush.msra.mxu0 0.0
    %3785 = vmatpush.msra.mxu0 0.0
    %3786 = vmatpush.msra.mxu0 %v3766
    %3787 = vmatmul.f32.gmra.mxu0 %v3769
    %v3788 = vpop.f32.mrf.mxu0
    %v3789 = vadd.f32 %v3681, %v3788
    %3790 = vdwg.mxu0
    %3792 = vrot.lane.b32.xlu0 %v2851, 120
    %v3793 = vpop.permute.xlu0 %3792
    %v3796 = vsel %vm553, %v3582, 0
    %3798 = vmatpush.msra.mxu0 0.0
    %3799 = vmatpush.msra.mxu0 0.0
    %3800 = vmatpush.msra.mxu0 0.0
    %3801 = vmatpush.msra.mxu0 0.0
    %3802 = vmatpush.msra.mxu0 0.0
    %3803 = vmatpush.msra.mxu0 0.0
    %3804 = vmatpush.msra.mxu0 0.0
    %3805 = vmatpush.msra.mxu0 0.0
    %3806 = vmatpush.msra.mxu0 0.0
    %3807 = vmatpush.msra.mxu0 0.0
    %3808 = vmatpush.msra.mxu0 0.0
    %3809 = vmatpush.msra.mxu0 0.0
    %3810 = vmatpush.msra.mxu0 0.0
    %3811 = vmatpush.msra.mxu0 0.0
    %3812 = vmatpush.msra.mxu0 0.0
    %3813 = vmatpush.msra.mxu0 %v3793
    %3814 = vmatmul.f32.gmra.mxu0 %v3796
    %v3815 = vpop.f32.mrf.mxu0
    %v3816 = vadd.f32 %v3708, %v3815
    %3817 = vdwg.mxu0
    %3819 = vrot.lane.b32.xlu0 %v2852, 120
    %v3820 = vpop.permute.xlu0 %3819
    %v3823 = vsel %vm553, %v3584, 0
    %3825 = vmatpush.msra.mxu0 0.0
    %3826 = vmatpush.msra.mxu0 0.0
    %3827 = vmatpush.msra.mxu0 0.0
    %3828 = vmatpush.msra.mxu0 0.0
    %3829 = vmatpush.msra.mxu0 0.0
    %3830 = vmatpush.msra.mxu0 0.0
    %3831 = vmatpush.msra.mxu0 0.0
    %3832 = vmatpush.msra.mxu0 0.0
    %3833 = vmatpush.msra.mxu0 0.0
    %3834 = vmatpush.msra.mxu0 0.0
    %3835 = vmatpush.msra.mxu0 0.0
    %3836 = vmatpush.msra.mxu0 0.0
    %3837 = vmatpush.msra.mxu0 0.0
    %3838 = vmatpush.msra.mxu0 0.0
    %3839 = vmatpush.msra.mxu0 0.0
    %3840 = vmatpush.msra.mxu0 %v3820
    %3841 = vmatmul.f32.gmra.mxu0 %v3823
    %v3842 = vpop.f32.mrf.mxu0
    %v3843 = vadd.f32 %v3735, %v3842
    %3844 = vdwg.mxu0
    %v3845 = vmul.f32 %v3762, %v3625
    %v3846 = vmul.f32 %v3789, %v3626
    %v3847 = vmul.f32 %v3816, %v3627
    %v3848 = vmul.f32 %v3843, %v3628
    %3849 = vrot.lane.b32.xlu0 %v204, 112
    %v3850 = vpop.permute.xlu0 %3849
    %3851 = vrot.lane.b32.xlu0 %v2845, 112
    %v3852 = vpop.permute.xlu0 %3851
    %v3853 = vsel %vm553, %v3850, 0
    %v3855 = vsel %vm553, %v3852, 0
    %3857 = vmatpush.xpose.msra.mxu0 0.0
    %3858 = vmatpush.xpose.msra.mxu0 0.0
    %3859 = vmatpush.xpose.msra.mxu0 0.0
    %3860 = vmatpush.xpose.msra.mxu0 0.0
    %3861 = vmatpush.xpose.msra.mxu0 0.0
    %3862 = vmatpush.xpose.msra.mxu0 0.0
    %3863 = vmatpush.xpose.msra.mxu0 0.0
    %3864 = vmatpush.xpose.msra.mxu0 0.0
    %3865 = vmatpush.xpose.msra.mxu0 0.0
    %3866 = vmatpush.xpose.msra.mxu0 0.0
    %3867 = vmatpush.xpose.msra.mxu0 0.0
    %3868 = vmatpush.xpose.msra.mxu0 0.0
    %3869 = vmatpush.xpose.msra.mxu0 0.0
    %3870 = vmatpush.xpose.msra.mxu0 0.0
    %3871 = vmatpush.xpose.msra.mxu0 0.0
    %3872 = vmatpush.xpose.msra.mxu0 %v3855
    %3873 = vmatmul.f32.gmra.mxu0 %v3853
    %v3874 = vpop.f32.mrf.mxu0
    %v3875 = vadd.f32 0.0, %v3874
    %3876 = vdwg.mxu0
    %3877 = vrot.lane.b32.xlu0 %v205, 112
    %v3878 = vpop.permute.xlu0 %3877
    %3879 = vrot.lane.b32.xlu0 %v2846, 112
    %v3880 = vpop.permute.xlu0 %3879
    %v3881 = vsel %vm553, %v3878, 0
    %v3883 = vsel %vm553, %v3880, 0
    %3885 = vmatpush.xpose.msra.mxu0 0.0
    %3886 = vmatpush.xpose.msra.mxu0 0.0
    %3887 = vmatpush.xpose.msra.mxu0 0.0
    %3888 = vmatpush.xpose.msra.mxu0 0.0
    %3889 = vmatpush.xpose.msra.mxu0 0.0
    %3890 = vmatpush.xpose.msra.mxu0 0.0
    %3891 = vmatpush.xpose.msra.mxu0 0.0
    %3892 = vmatpush.xpose.msra.mxu0 0.0
    %3893 = vmatpush.xpose.msra.mxu0 0.0
    %3894 = vmatpush.xpose.msra.mxu0 0.0
    %3895 = vmatpush.xpose.msra.mxu0 0.0
    %3896 = vmatpush.xpose.msra.mxu0 0.0
    %3897 = vmatpush.xpose.msra.mxu0 0.0
    %3898 = vmatpush.xpose.msra.mxu0 0.0
    %3899 = vmatpush.xpose.msra.mxu0 0.0
    %3900 = vmatpush.xpose.msra.mxu0 %v3883
    %3901 = vmatmul.f32.gmra.mxu0 %v3881
    %v3902 = vpop.f32.mrf.mxu0
    %v3903 = vadd.f32 0.0, %v3902
    %3904 = vdwg.mxu0
    %3905 = vrot.lane.b32.xlu0 %v206, 112
    %v3906 = vpop.permute.xlu0 %3905
    %3907 = vrot.lane.b32.xlu0 %v2847, 112
    %v3908 = vpop.permute.xlu0 %3907
    %v3909 = vsel %vm553, %v3906, 0
    %v3911 = vsel %vm553, %v3908, 0
    %3913 = vmatpush.xpose.msra.mxu0 0.0
    %3914 = vmatpush.xpose.msra.mxu0 0.0
    %3915 = vmatpush.xpose.msra.mxu0 0.0
    %3916 = vmatpush.xpose.msra.mxu0 0.0
    %3917 = vmatpush.xpose.msra.mxu0 0.0
    %3918 = vmatpush.xpose.msra.mxu0 0.0
    %3919 = vmatpush.xpose.msra.mxu0 0.0
    %3920 = vmatpush.xpose.msra.mxu0 0.0
    %3921 = vmatpush.xpose.msra.mxu0 0.0
    %3922 = vmatpush.xpose.msra.mxu0 0.0
    %3923 = vmatpush.xpose.msra.mxu0 0.0
    %3924 = vmatpush.xpose.msra.mxu0 0.0
    %3925 = vmatpush.xpose.msra.mxu0 0.0
    %3926 = vmatpush.xpose.msra.mxu0 0.0
    %3927 = vmatpush.xpose.msra.mxu0 0.0
    %3928 = vmatpush.xpose.msra.mxu0 %v3911
    %3929 = vmatmul.f32.gmra.mxu0 %v3909
    %v3930 = vpop.f32.mrf.mxu0
    %v3931 = vadd.f32 0.0, %v3930
    %3932 = vdwg.mxu0
    %3933 = vrot.lane.b32.xlu0 %v207, 112
    %v3934 = vpop.permute.xlu0 %3933
    %3935 = vrot.lane.b32.xlu0 %v2848, 112
    %v3936 = vpop.permute.xlu0 %3935
    %v3937 = vsel %vm553, %v3934, 0
    %v3939 = vsel %vm553, %v3936, 0
    %3941 = vmatpush.xpose.msra.mxu0 0.0
    %3942 = vmatpush.xpose.msra.mxu0 0.0
    %3943 = vmatpush.xpose.msra.mxu0 0.0
    %3944 = vmatpush.xpose.msra.mxu0 0.0
    %3945 = vmatpush.xpose.msra.mxu0 0.0
    %3946 = vmatpush.xpose.msra.mxu0 0.0
    %3947 = vmatpush.xpose.msra.mxu0 0.0
    %3948 = vmatpush.xpose.msra.mxu0 0.0
    %3949 = vmatpush.xpose.msra.mxu0 0.0
    %3950 = vmatpush.xpose.msra.mxu0 0.0
    %3951 = vmatpush.xpose.msra.mxu0 0.0
    %3952 = vmatpush.xpose.msra.mxu0 0.0
    %3953 = vmatpush.xpose.msra.mxu0 0.0
    %3954 = vmatpush.xpose.msra.mxu0 0.0
    %3955 = vmatpush.xpose.msra.mxu0 0.0
    %3956 = vmatpush.xpose.msra.mxu0 %v3939
    %3957 = vmatmul.f32.gmra.mxu0 %v3937
    %v3958 = vpop.f32.mrf.mxu0
    %v3959 = vadd.f32 0.0, %v3958
    %3960 = vdwg.mxu0
    %v3961 = vsel %vm117, -1e+09, %v3875
    %v3962 = vsel %vm117, -1e+09, %v3903
    %v3963 = vsel %vm117, -1e+09, %v3931
    %v3964 = vsel %vm117, -1e+09, %v3959
    %3965 = vrot.lane.b32.xlu0 %v2853, 112
    %v3966 = vpop.permute.xlu0 %3965
    %v3967 = vsel %vm553, %v3966, 0
    %3969 = vmatpush.xpose.msra.mxu0 0.0
    %3970 = vmatpush.xpose.msra.mxu0 0.0
    %3971 = vmatpush.xpose.msra.mxu0 0.0
    %3972 = vmatpush.xpose.msra.mxu0 0.0
    %3973 = vmatpush.xpose.msra.mxu0 0.0
    %3974 = vmatpush.xpose.msra.mxu0 0.0
    %3975 = vmatpush.xpose.msra.mxu0 0.0
    %3976 = vmatpush.xpose.msra.mxu0 0.0
    %3977 = vmatpush.xpose.msra.mxu0 0.0
    %3978 = vmatpush.xpose.msra.mxu0 0.0
    %3979 = vmatpush.xpose.msra.mxu0 0.0
    %3980 = vmatpush.xpose.msra.mxu0 0.0
    %3981 = vmatpush.xpose.msra.mxu0 0.0
    %3982 = vmatpush.xpose.msra.mxu0 0.0
    %3983 = vmatpush.xpose.msra.mxu0 0.0
    %3984 = vmatpush.xpose.msra.mxu0 %v3967
    %3985 = vmatmul.f32.gmra.mxu0 %v3853
    %v3986 = vpop.f32.mrf.mxu0
    %v3987 = vadd.f32 0.0, %v3986
    %3988 = vdwg.mxu0
    %3989 = vrot.lane.b32.xlu0 %v2854, 112
    %v3990 = vpop.permute.xlu0 %3989
    %v3991 = vsel %vm553, %v3990, 0
    %3993 = vmatpush.xpose.msra.mxu0 0.0
    %3994 = vmatpush.xpose.msra.mxu0 0.0
    %3995 = vmatpush.xpose.msra.mxu0 0.0
    %3996 = vmatpush.xpose.msra.mxu0 0.0
    %3997 = vmatpush.xpose.msra.mxu0 0.0
    %3998 = vmatpush.xpose.msra.mxu0 0.0
    %3999 = vmatpush.xpose.msra.mxu0 0.0
    %4000 = vmatpush.xpose.msra.mxu0 0.0
    %4001 = vmatpush.xpose.msra.mxu0 0.0
    %4002 = vmatpush.xpose.msra.mxu0 0.0
    %4003 = vmatpush.xpose.msra.mxu0 0.0
    %4004 = vmatpush.xpose.msra.mxu0 0.0
    %4005 = vmatpush.xpose.msra.mxu0 0.0
    %4006 = vmatpush.xpose.msra.mxu0 0.0
    %4007 = vmatpush.xpose.msra.mxu0 0.0
    %4008 = vmatpush.xpose.msra.mxu0 %v3991
    %4009 = vmatmul.f32.gmra.mxu0 %v3881
    %v4010 = vpop.f32.mrf.mxu0
    %v4011 = vadd.f32 0.0, %v4010
    %4012 = vdwg.mxu0
    %4013 = vrot.lane.b32.xlu0 %v2855, 112
    %v4014 = vpop.permute.xlu0 %4013
    %v4015 = vsel %vm553, %v4014, 0
    %4017 = vmatpush.xpose.msra.mxu0 0.0
    %4018 = vmatpush.xpose.msra.mxu0 0.0
    %4019 = vmatpush.xpose.msra.mxu0 0.0
    %4020 = vmatpush.xpose.msra.mxu0 0.0
    %4021 = vmatpush.xpose.msra.mxu0 0.0
    %4022 = vmatpush.xpose.msra.mxu0 0.0
    %4023 = vmatpush.xpose.msra.mxu0 0.0
    %4024 = vmatpush.xpose.msra.mxu0 0.0
    %4025 = vmatpush.xpose.msra.mxu0 0.0
    %4026 = vmatpush.xpose.msra.mxu0 0.0
    %4027 = vmatpush.xpose.msra.mxu0 0.0
    %4028 = vmatpush.xpose.msra.mxu0 0.0
    %4029 = vmatpush.xpose.msra.mxu0 0.0
    %4030 = vmatpush.xpose.msra.mxu0 0.0
    %4031 = vmatpush.xpose.msra.mxu0 0.0
    %4032 = vmatpush.xpose.msra.mxu0 %v4015
    %4033 = vmatmul.f32.gmra.mxu0 %v3909
    %v4034 = vpop.f32.mrf.mxu0
    %v4035 = vadd.f32 0.0, %v4034
    %4036 = vdwg.mxu0
    %4037 = vrot.lane.b32.xlu0 %v2856, 112
    %v4038 = vpop.permute.xlu0 %4037
    %v4039 = vsel %vm553, %v4038, 0
    %4041 = vmatpush.xpose.msra.mxu0 0.0
    %4042 = vmatpush.xpose.msra.mxu0 0.0
    %4043 = vmatpush.xpose.msra.mxu0 0.0
    %4044 = vmatpush.xpose.msra.mxu0 0.0
    %4045 = vmatpush.xpose.msra.mxu0 0.0
    %4046 = vmatpush.xpose.msra.mxu0 0.0
    %4047 = vmatpush.xpose.msra.mxu0 0.0
    %4048 = vmatpush.xpose.msra.mxu0 0.0
    %4049 = vmatpush.xpose.msra.mxu0 0.0
    %4050 = vmatpush.xpose.msra.mxu0 0.0
    %4051 = vmatpush.xpose.msra.mxu0 0.0
    %4052 = vmatpush.xpose.msra.mxu0 0.0
    %4053 = vmatpush.xpose.msra.mxu0 0.0
    %4054 = vmatpush.xpose.msra.mxu0 0.0
    %4055 = vmatpush.xpose.msra.mxu0 0.0
    %4056 = vmatpush.xpose.msra.mxu0 %v4039
    %4057 = vmatmul.f32.gmra.mxu0 %v3937
    %v4058 = vpop.f32.mrf.mxu0
    %v4059 = vadd.f32 0.0, %v4058
    %4060 = vdwg.mxu0
    %v4061 = vsel %vm553, %v3961, -inf
    %4062 = vmax.xlane.f32.xlu0 %v4061
    %v4063 = vpop.xlane.xlu0 %4062
    %v4064 = vsel %vm553, %v3962, -inf
    %4065 = vmax.xlane.f32.xlu0 %v4064
    %v4066 = vpop.xlane.xlu0 %4065
    %v4067 = vsel %vm553, %v3963, -inf
    %4068 = vmax.xlane.f32.xlu0 %v4067
    %v4069 = vpop.xlane.xlu0 %4068
    %v4070 = vsel %vm553, %v3964, -inf
    %4071 = vmax.xlane.f32.xlu0 %v4070
    %v4072 = vpop.xlane.xlu0 %4071
    %v4073 = vsel %vm553, %v3987, -inf
    %4074 = vmax.xlane.f32.xlu0 %v4073
    %v4075 = vpop.xlane.xlu0 %4074
    %v4076 = vsel %vm553, %v4011, -inf
    %4077 = vmax.xlane.f32.xlu0 %v4076
    %v4078 = vpop.xlane.xlu0 %4077
    %v4079 = vsel %vm553, %v4035, -inf
    %4080 = vmax.xlane.f32.xlu0 %v4079
    %v4081 = vpop.xlane.xlu0 %4080
    %v4082 = vsel %vm553, %v4059, -inf
    %4083 = vmax.xlane.f32.xlu0 %v4082
    %v4084 = vpop.xlane.xlu0 %4083
    %v4085 = vmax.f32 %v4063, %v4075
    %v4086 = vmax.f32 %v4066, %v4078
    %v4087 = vmax.f32 %v4069, %v4081
    %v4088 = vmax.f32 %v4072, %v4084
    %v4089 = vsub.f32 %v3961, %v4085
    %v4090 = vsub.f32 %v3962, %v4086
    %v4091 = vsub.f32 %v3963, %v4087
    %v4092 = vsub.f32 %v3964, %v4088
    %v4093 = vmul.f32 %v4089, 1.442695
    %v4094 = vpow.pop %v4093
    %v4095 = vmul.f32 %v4090, 1.442695
    %v4096 = vpow.pop %v4095
    %v4097 = vmul.f32 %v4091, 1.442695
    %v4098 = vpow.pop %v4097
    %v4099 = vmul.f32 %v4092, 1.442695
    %v4100 = vpow.pop %v4099
    %v4101 = vsub.f32 %v3987, %v4085
    %v4102 = vsub.f32 %v4011, %v4086
    %v4103 = vsub.f32 %v4035, %v4087
    %v4104 = vsub.f32 %v4059, %v4088
    %v4105 = vmul.f32 %v4101, 1.442695
    %v4106 = vpow.pop %v4105
    %v4107 = vmul.f32 %v4102, 1.442695
    %v4108 = vpow.pop %v4107
    %v4109 = vmul.f32 %v4103, 1.442695
    %v4110 = vpow.pop %v4109
    %v4111 = vmul.f32 %v4104, 1.442695
    %v4112 = vpow.pop %v4111
    %v4113 = vsel %vm553, %v4094, 0.0
    %4114 = vadd.xlane.f32.xlu0 %v4113
    %v4115 = vpop.xlane.xlu0 %4114
    %v4116 = vsel %vm553, %v4096, 0.0
    %4117 = vadd.xlane.f32.xlu0 %v4116
    %v4118 = vpop.xlane.xlu0 %4117
    %v4119 = vsel %vm553, %v4098, 0.0
    %4120 = vadd.xlane.f32.xlu0 %v4119
    %v4121 = vpop.xlane.xlu0 %4120
    %v4122 = vsel %vm553, %v4100, 0.0
    %4123 = vadd.xlane.f32.xlu0 %v4122
    %v4124 = vpop.xlane.xlu0 %4123
    %v4125 = vsel %vm553, %v4106, 0.0
    %4126 = vadd.xlane.f32.xlu0 %v4125
    %v4127 = vpop.xlane.xlu0 %4126
    %v4128 = vsel %vm553, %v4108, 0.0
    %4129 = vadd.xlane.f32.xlu0 %v4128
    %v4130 = vpop.xlane.xlu0 %4129
    %v4131 = vsel %vm553, %v4110, 0.0
    %4132 = vadd.xlane.f32.xlu0 %v4131
    %v4133 = vpop.xlane.xlu0 %4132
    %v4134 = vsel %vm553, %v4112, 0.0
    %4135 = vadd.xlane.f32.xlu0 %v4134
    %v4136 = vpop.xlane.xlu0 %4135
    %v4137 = vadd.f32 %v4115, %v4127
    %v4138 = vadd.f32 %v4118, %v4130
    %v4139 = vadd.f32 %v4121, %v4133
    %v4140 = vadd.f32 %v4124, %v4136
    %v4141 = vrcp.pop %v4137
    %v4142 = vrcp.pop %v4138
    %v4143 = vrcp.pop %v4139
    %v4144 = vrcp.pop %v4140
    %4145 = vrot.lane.b32.xlu0 %v2857, 112
    %v4146 = vpop.permute.xlu0 %4145
    %v4149 = vsel %vm553, %v4106, 0
    %4151 = vmatpush.msra.mxu0 0.0
    %4152 = vmatpush.msra.mxu0 0.0
    %4153 = vmatpush.msra.mxu0 0.0
    %4154 = vmatpush.msra.mxu0 0.0
    %4155 = vmatpush.msra.mxu0 0.0
    %4156 = vmatpush.msra.mxu0 0.0
    %4157 = vmatpush.msra.mxu0 0.0
    %4158 = vmatpush.msra.mxu0 0.0
    %4159 = vmatpush.msra.mxu0 0.0
    %4160 = vmatpush.msra.mxu0 0.0
    %4161 = vmatpush.msra.mxu0 0.0
    %4162 = vmatpush.msra.mxu0 0.0
    %4163 = vmatpush.msra.mxu0 0.0
    %4164 = vmatpush.msra.mxu0 0.0
    %4165 = vmatpush.msra.mxu0 0.0
    %4166 = vmatpush.msra.mxu0 %v4146
    %4167 = vmatmul.f32.gmra.mxu0 %v4149
    %v4168 = vpop.f32.mrf.mxu0
    %v4169 = vadd.f32 0.0, %v4168
    %4170 = vdwg.mxu0
    %4171 = vrot.lane.b32.xlu0 %v2858, 112
    %v4172 = vpop.permute.xlu0 %4171
    %v4175 = vsel %vm553, %v4108, 0
    %4177 = vmatpush.msra.mxu0 0.0
    %4178 = vmatpush.msra.mxu0 0.0
    %4179 = vmatpush.msra.mxu0 0.0
    %4180 = vmatpush.msra.mxu0 0.0
    %4181 = vmatpush.msra.mxu0 0.0
    %4182 = vmatpush.msra.mxu0 0.0
    %4183 = vmatpush.msra.mxu0 0.0
    %4184 = vmatpush.msra.mxu0 0.0
    %4185 = vmatpush.msra.mxu0 0.0
    %4186 = vmatpush.msra.mxu0 0.0
    %4187 = vmatpush.msra.mxu0 0.0
    %4188 = vmatpush.msra.mxu0 0.0
    %4189 = vmatpush.msra.mxu0 0.0
    %4190 = vmatpush.msra.mxu0 0.0
    %4191 = vmatpush.msra.mxu0 0.0
    %4192 = vmatpush.msra.mxu0 %v4172
    %4193 = vmatmul.f32.gmra.mxu0 %v4175
    %v4194 = vpop.f32.mrf.mxu0
    %v4195 = vadd.f32 0.0, %v4194
    %4196 = vdwg.mxu0
    %4197 = vrot.lane.b32.xlu0 %v2859, 112
    %v4198 = vpop.permute.xlu0 %4197
    %v4201 = vsel %vm553, %v4110, 0
    %4203 = vmatpush.msra.mxu0 0.0
    %4204 = vmatpush.msra.mxu0 0.0
    %4205 = vmatpush.msra.mxu0 0.0
    %4206 = vmatpush.msra.mxu0 0.0
    %4207 = vmatpush.msra.mxu0 0.0
    %4208 = vmatpush.msra.mxu0 0.0
    %4209 = vmatpush.msra.mxu0 0.0
    %4210 = vmatpush.msra.mxu0 0.0
    %4211 = vmatpush.msra.mxu0 0.0
    %4212 = vmatpush.msra.mxu0 0.0
    %4213 = vmatpush.msra.mxu0 0.0
    %4214 = vmatpush.msra.mxu0 0.0
    %4215 = vmatpush.msra.mxu0 0.0
    %4216 = vmatpush.msra.mxu0 0.0
    %4217 = vmatpush.msra.mxu0 0.0
    %4218 = vmatpush.msra.mxu0 %v4198
    %4219 = vmatmul.f32.gmra.mxu0 %v4201
    %v4220 = vpop.f32.mrf.mxu0
    %v4221 = vadd.f32 0.0, %v4220
    %4222 = vdwg.mxu0
    %4223 = vrot.lane.b32.xlu0 %v2860, 112
    %v4224 = vpop.permute.xlu0 %4223
    %v4227 = vsel %vm553, %v4112, 0
    %4229 = vmatpush.msra.mxu0 0.0
    %4230 = vmatpush.msra.mxu0 0.0
    %4231 = vmatpush.msra.mxu0 0.0
    %4232 = vmatpush.msra.mxu0 0.0
    %4233 = vmatpush.msra.mxu0 0.0
    %4234 = vmatpush.msra.mxu0 0.0
    %4235 = vmatpush.msra.mxu0 0.0
    %4236 = vmatpush.msra.mxu0 0.0
    %4237 = vmatpush.msra.mxu0 0.0
    %4238 = vmatpush.msra.mxu0 0.0
    %4239 = vmatpush.msra.mxu0 0.0
    %4240 = vmatpush.msra.mxu0 0.0
    %4241 = vmatpush.msra.mxu0 0.0
    %4242 = vmatpush.msra.mxu0 0.0
    %4243 = vmatpush.msra.mxu0 0.0
    %4244 = vmatpush.msra.mxu0 %v4224
    %4245 = vmatmul.f32.gmra.mxu0 %v4227
    %v4246 = vpop.f32.mrf.mxu0
    %v4247 = vadd.f32 0.0, %v4246
    %4248 = vdwg.mxu0
    %4249 = vrot.lane.b32.xlu0 %v2849, 112
    %v4250 = vpop.permute.xlu0 %4249
    %v4253 = vsel %vm553, %v4094, 0
    %4255 = vmatpush.msra.mxu0 0.0
    %4256 = vmatpush.msra.mxu0 0.0
    %4257 = vmatpush.msra.mxu0 0.0
    %4258 = vmatpush.msra.mxu0 0.0
    %4259 = vmatpush.msra.mxu0 0.0
    %4260 = vmatpush.msra.mxu0 0.0
    %4261 = vmatpush.msra.mxu0 0.0
    %4262 = vmatpush.msra.mxu0 0.0
    %4263 = vmatpush.msra.mxu0 0.0
    %4264 = vmatpush.msra.mxu0 0.0
    %4265 = vmatpush.msra.mxu0 0.0
    %4266 = vmatpush.msra.mxu0 0.0
    %4267 = vmatpush.msra.mxu0 0.0
    %4268 = vmatpush.msra.mxu0 0.0
    %4269 = vmatpush.msra.mxu0 0.0
    %4270 = vmatpush.msra.mxu0 %v4250
    %4271 = vmatmul.f32.gmra.mxu0 %v4253
    %v4272 = vpop.f32.mrf.mxu0
    %v4273 = vadd.f32 %v4169, %v4272
    %4274 = vdwg.mxu0
    %4275 = vrot.lane.b32.xlu0 %v2850, 112
    %v4276 = vpop.permute.xlu0 %4275
    %v4279 = vsel %vm553, %v4096, 0
    %4281 = vmatpush.msra.mxu0 0.0
    %4282 = vmatpush.msra.mxu0 0.0
    %4283 = vmatpush.msra.mxu0 0.0
    %4284 = vmatpush.msra.mxu0 0.0
    %4285 = vmatpush.msra.mxu0 0.0
    %4286 = vmatpush.msra.mxu0 0.0
    %4287 = vmatpush.msra.mxu0 0.0
    %4288 = vmatpush.msra.mxu0 0.0
    %4289 = vmatpush.msra.mxu0 0.0
    %4290 = vmatpush.msra.mxu0 0.0
    %4291 = vmatpush.msra.mxu0 0.0
    %4292 = vmatpush.msra.mxu0 0.0
    %4293 = vmatpush.msra.mxu0 0.0
    %4294 = vmatpush.msra.mxu0 0.0
    %4295 = vmatpush.msra.mxu0 0.0
    %4296 = vmatpush.msra.mxu0 %v4276
    %4297 = vmatmul.f32.gmra.mxu0 %v4279
    %v4298 = vpop.f32.mrf.mxu0
    %v4299 = vadd.f32 %v4195, %v4298
    %4300 = vdwg.mxu0
    %4301 = vrot.lane.b32.xlu0 %v2851, 112
    %v4302 = vpop.permute.xlu0 %4301
    %v4305 = vsel %vm553, %v4098, 0
    %4307 = vmatpush.msra.mxu0 0.0
    %4308 = vmatpush.msra.mxu0 0.0
    %4309 = vmatpush.msra.mxu0 0.0
    %4310 = vmatpush.msra.mxu0 0.0
    %4311 = vmatpush.msra.mxu0 0.0
    %4312 = vmatpush.msra.mxu0 0.0
    %4313 = vmatpush.msra.mxu0 0.0
    %4314 = vmatpush.msra.mxu0 0.0
    %4315 = vmatpush.msra.mxu0 0.0
    %4316 = vmatpush.msra.mxu0 0.0
    %4317 = vmatpush.msra.mxu0 0.0
    %4318 = vmatpush.msra.mxu0 0.0
    %4319 = vmatpush.msra.mxu0 0.0
    %4320 = vmatpush.msra.mxu0 0.0
    %4321 = vmatpush.msra.mxu0 0.0
    %4322 = vmatpush.msra.mxu0 %v4302
    %4323 = vmatmul.f32.gmra.mxu0 %v4305
    %v4324 = vpop.f32.mrf.mxu0
    %v4325 = vadd.f32 %v4221, %v4324
    %4326 = vdwg.mxu0
    %4327 = vrot.lane.b32.xlu0 %v2852, 112
    %v4328 = vpop.permute.xlu0 %4327
    %v4331 = vsel %vm553, %v4100, 0
    %4333 = vmatpush.msra.mxu0 0.0
    %4334 = vmatpush.msra.mxu0 0.0
    %4335 = vmatpush.msra.mxu0 0.0
    %4336 = vmatpush.msra.mxu0 0.0
    %4337 = vmatpush.msra.mxu0 0.0
    %4338 = vmatpush.msra.mxu0 0.0
    %4339 = vmatpush.msra.mxu0 0.0
    %4340 = vmatpush.msra.mxu0 0.0
    %4341 = vmatpush.msra.mxu0 0.0
    %4342 = vmatpush.msra.mxu0 0.0
    %4343 = vmatpush.msra.mxu0 0.0
    %4344 = vmatpush.msra.mxu0 0.0
    %4345 = vmatpush.msra.mxu0 0.0
    %4346 = vmatpush.msra.mxu0 0.0
    %4347 = vmatpush.msra.mxu0 0.0
    %4348 = vmatpush.msra.mxu0 %v4328
    %4349 = vmatmul.f32.gmra.mxu0 %v4331
    %v4350 = vpop.f32.mrf.mxu0
    %v4351 = vadd.f32 %v4247, %v4350
    %4352 = vdwg.mxu0
    %v4353 = vmul.f32 %v4273, %v4141
    %v4354 = vmul.f32 %v4299, %v4142
    %v4355 = vmul.f32 %v4325, %v4143
    %v4356 = vmul.f32 %v4351, %v4144
    %4357 = vrot.lane.b32.xlu0 %v204, 104
    %v4358 = vpop.permute.xlu0 %4357
    %4359 = vrot.lane.b32.xlu0 %v2845, 104
    %v4360 = vpop.permute.xlu0 %4359
    %v4361 = vsel %vm553, %v4358, 0
    %v4363 = vsel %vm553, %v4360, 0
    %4365 = vmatpush.xpose.msra.mxu0 0.0
    %4366 = vmatpush.xpose.msra.mxu0 0.0
    %4367 = vmatpush.xpose.msra.mxu0 0.0
    %4368 = vmatpush.xpose.msra.mxu0 0.0
    %4369 = vmatpush.xpose.msra.mxu0 0.0
    %4370 = vmatpush.xpose.msra.mxu0 0.0
    %4371 = vmatpush.xpose.msra.mxu0 0.0
    %4372 = vmatpush.xpose.msra.mxu0 0.0
    %4373 = vmatpush.xpose.msra.mxu0 0.0
    %4374 = vmatpush.xpose.msra.mxu0 0.0
    %4375 = vmatpush.xpose.msra.mxu0 0.0
    %4376 = vmatpush.xpose.msra.mxu0 0.0
    %4377 = vmatpush.xpose.msra.mxu0 0.0
    %4378 = vmatpush.xpose.msra.mxu0 0.0
    %4379 = vmatpush.xpose.msra.mxu0 0.0
    %4380 = vmatpush.xpose.msra.mxu0 %v4363
    %4381 = vmatmul.f32.gmra.mxu0 %v4361
    %v4382 = vpop.f32.mrf.mxu0
    %v4383 = vadd.f32 0.0, %v4382
    %4384 = vdwg.mxu0
    %4385 = vrot.lane.b32.xlu0 %v205, 104
    %v4386 = vpop.permute.xlu0 %4385
    %4387 = vrot.lane.b32.xlu0 %v2846, 104
    %v4388 = vpop.permute.xlu0 %4387
    %v4389 = vsel %vm553, %v4386, 0
    %v4391 = vsel %vm553, %v4388, 0
    %4393 = vmatpush.xpose.msra.mxu0 0.0
    %4394 = vmatpush.xpose.msra.mxu0 0.0
    %4395 = vmatpush.xpose.msra.mxu0 0.0
    %4396 = vmatpush.xpose.msra.mxu0 0.0
    %4397 = vmatpush.xpose.msra.mxu0 0.0
    %4398 = vmatpush.xpose.msra.mxu0 0.0
    %4399 = vmatpush.xpose.msra.mxu0 0.0
    %4400 = vmatpush.xpose.msra.mxu0 0.0
    %4401 = vmatpush.xpose.msra.mxu0 0.0
    %4402 = vmatpush.xpose.msra.mxu0 0.0
    %4403 = vmatpush.xpose.msra.mxu0 0.0
    %4404 = vmatpush.xpose.msra.mxu0 0.0
    %4405 = vmatpush.xpose.msra.mxu0 0.0
    %4406 = vmatpush.xpose.msra.mxu0 0.0
    %4407 = vmatpush.xpose.msra.mxu0 0.0
    %4408 = vmatpush.xpose.msra.mxu0 %v4391
    %4409 = vmatmul.f32.gmra.mxu0 %v4389
    %v4410 = vpop.f32.mrf.mxu0
    %v4411 = vadd.f32 0.0, %v4410
    %4412 = vdwg.mxu0
    %4413 = vrot.lane.b32.xlu0 %v206, 104
    %v4414 = vpop.permute.xlu0 %4413
    %4415 = vrot.lane.b32.xlu0 %v2847, 104
    %v4416 = vpop.permute.xlu0 %4415
    %v4417 = vsel %vm553, %v4414, 0
    %v4419 = vsel %vm553, %v4416, 0
    %4421 = vmatpush.xpose.msra.mxu0 0.0
    %4422 = vmatpush.xpose.msra.mxu0 0.0
    %4423 = vmatpush.xpose.msra.mxu0 0.0
    %4424 = vmatpush.xpose.msra.mxu0 0.0
    %4425 = vmatpush.xpose.msra.mxu0 0.0
    %4426 = vmatpush.xpose.msra.mxu0 0.0
    %4427 = vmatpush.xpose.msra.mxu0 0.0
    %4428 = vmatpush.xpose.msra.mxu0 0.0
    %4429 = vmatpush.xpose.msra.mxu0 0.0
    %4430 = vmatpush.xpose.msra.mxu0 0.0
    %4431 = vmatpush.xpose.msra.mxu0 0.0
    %4432 = vmatpush.xpose.msra.mxu0 0.0
    %4433 = vmatpush.xpose.msra.mxu0 0.0
    %4434 = vmatpush.xpose.msra.mxu0 0.0
    %4435 = vmatpush.xpose.msra.mxu0 0.0
    %4436 = vmatpush.xpose.msra.mxu0 %v4419
    %4437 = vmatmul.f32.gmra.mxu0 %v4417
    %v4438 = vpop.f32.mrf.mxu0
    %v4439 = vadd.f32 0.0, %v4438
    %4440 = vdwg.mxu0
    %4441 = vrot.lane.b32.xlu0 %v207, 104
    %v4442 = vpop.permute.xlu0 %4441
    %4443 = vrot.lane.b32.xlu0 %v2848, 104
    %v4444 = vpop.permute.xlu0 %4443
    %v4445 = vsel %vm553, %v4442, 0
    %v4447 = vsel %vm553, %v4444, 0
    %4449 = vmatpush.xpose.msra.mxu0 0.0
    %4450 = vmatpush.xpose.msra.mxu0 0.0
    %4451 = vmatpush.xpose.msra.mxu0 0.0
    %4452 = vmatpush.xpose.msra.mxu0 0.0
    %4453 = vmatpush.xpose.msra.mxu0 0.0
    %4454 = vmatpush.xpose.msra.mxu0 0.0
    %4455 = vmatpush.xpose.msra.mxu0 0.0
    %4456 = vmatpush.xpose.msra.mxu0 0.0
    %4457 = vmatpush.xpose.msra.mxu0 0.0
    %4458 = vmatpush.xpose.msra.mxu0 0.0
    %4459 = vmatpush.xpose.msra.mxu0 0.0
    %4460 = vmatpush.xpose.msra.mxu0 0.0
    %4461 = vmatpush.xpose.msra.mxu0 0.0
    %4462 = vmatpush.xpose.msra.mxu0 0.0
    %4463 = vmatpush.xpose.msra.mxu0 0.0
    %4464 = vmatpush.xpose.msra.mxu0 %v4447
    %4465 = vmatmul.f32.gmra.mxu0 %v4445
    %v4466 = vpop.f32.mrf.mxu0
    %v4467 = vadd.f32 0.0, %v4466
    %4468 = vdwg.mxu0
    %v4469 = vsel %vm117, -1e+09, %v4383
    %v4470 = vsel %vm117, -1e+09, %v4411
    %v4471 = vsel %vm117, -1e+09, %v4439
    %v4472 = vsel %vm117, -1e+09, %v4467
    %4473 = vrot.lane.b32.xlu0 %v2853, 104
    %v4474 = vpop.permute.xlu0 %4473
    %v4475 = vsel %vm553, %v4474, 0
    %4477 = vmatpush.xpose.msra.mxu0 0.0
    %4478 = vmatpush.xpose.msra.mxu0 0.0
    %4479 = vmatpush.xpose.msra.mxu0 0.0
    %4480 = vmatpush.xpose.msra.mxu0 0.0
    %4481 = vmatpush.xpose.msra.mxu0 0.0
    %4482 = vmatpush.xpose.msra.mxu0 0.0
    %4483 = vmatpush.xpose.msra.mxu0 0.0
    %4484 = vmatpush.xpose.msra.mxu0 0.0
    %4485 = vmatpush.xpose.msra.mxu0 0.0
    %4486 = vmatpush.xpose.msra.mxu0 0.0
    %4487 = vmatpush.xpose.msra.mxu0 0.0
    %4488 = vmatpush.xpose.msra.mxu0 0.0
    %4489 = vmatpush.xpose.msra.mxu0 0.0
    %4490 = vmatpush.xpose.msra.mxu0 0.0
    %4491 = vmatpush.xpose.msra.mxu0 0.0
    %4492 = vmatpush.xpose.msra.mxu0 %v4475
    %4493 = vmatmul.f32.gmra.mxu0 %v4361
    %v4494 = vpop.f32.mrf.mxu0
    %v4495 = vadd.f32 0.0, %v4494
    %4496 = vdwg.mxu0
    %4497 = vrot.lane.b32.xlu0 %v2854, 104
    %v4498 = vpop.permute.xlu0 %4497
    %v4499 = vsel %vm553, %v4498, 0
    %4501 = vmatpush.xpose.msra.mxu0 0.0
    %4502 = vmatpush.xpose.msra.mxu0 0.0
    %4503 = vmatpush.xpose.msra.mxu0 0.0
    %4504 = vmatpush.xpose.msra.mxu0 0.0
    %4505 = vmatpush.xpose.msra.mxu0 0.0
    %4506 = vmatpush.xpose.msra.mxu0 0.0
    %4507 = vmatpush.xpose.msra.mxu0 0.0
    %4508 = vmatpush.xpose.msra.mxu0 0.0
    %4509 = vmatpush.xpose.msra.mxu0 0.0
    %4510 = vmatpush.xpose.msra.mxu0 0.0
    %4511 = vmatpush.xpose.msra.mxu0 0.0
    %4512 = vmatpush.xpose.msra.mxu0 0.0
    %4513 = vmatpush.xpose.msra.mxu0 0.0
    %4514 = vmatpush.xpose.msra.mxu0 0.0
    %4515 = vmatpush.xpose.msra.mxu0 0.0
    %4516 = vmatpush.xpose.msra.mxu0 %v4499
    %4517 = vmatmul.f32.gmra.mxu0 %v4389
    %v4518 = vpop.f32.mrf.mxu0
    %v4519 = vadd.f32 0.0, %v4518
    %4520 = vdwg.mxu0
    %4521 = vrot.lane.b32.xlu0 %v2855, 104
    %v4522 = vpop.permute.xlu0 %4521
    %v4523 = vsel %vm553, %v4522, 0
    %4525 = vmatpush.xpose.msra.mxu0 0.0
    %4526 = vmatpush.xpose.msra.mxu0 0.0
    %4527 = vmatpush.xpose.msra.mxu0 0.0
    %4528 = vmatpush.xpose.msra.mxu0 0.0
    %4529 = vmatpush.xpose.msra.mxu0 0.0
    %4530 = vmatpush.xpose.msra.mxu0 0.0
    %4531 = vmatpush.xpose.msra.mxu0 0.0
    %4532 = vmatpush.xpose.msra.mxu0 0.0
    %4533 = vmatpush.xpose.msra.mxu0 0.0
    %4534 = vmatpush.xpose.msra.mxu0 0.0
    %4535 = vmatpush.xpose.msra.mxu0 0.0
    %4536 = vmatpush.xpose.msra.mxu0 0.0
    %4537 = vmatpush.xpose.msra.mxu0 0.0
    %4538 = vmatpush.xpose.msra.mxu0 0.0
    %4539 = vmatpush.xpose.msra.mxu0 0.0
    %4540 = vmatpush.xpose.msra.mxu0 %v4523
    %4541 = vmatmul.f32.gmra.mxu0 %v4417
    %v4542 = vpop.f32.mrf.mxu0
    %v4543 = vadd.f32 0.0, %v4542
    %4544 = vdwg.mxu0
    %4545 = vrot.lane.b32.xlu0 %v2856, 104
    %v4546 = vpop.permute.xlu0 %4545
    %v4547 = vsel %vm553, %v4546, 0
    %4549 = vmatpush.xpose.msra.mxu0 0.0
    %4550 = vmatpush.xpose.msra.mxu0 0.0
    %4551 = vmatpush.xpose.msra.mxu0 0.0
    %4552 = vmatpush.xpose.msra.mxu0 0.0
    %4553 = vmatpush.xpose.msra.mxu0 0.0
    %4554 = vmatpush.xpose.msra.mxu0 0.0
    %4555 = vmatpush.xpose.msra.mxu0 0.0
    %4556 = vmatpush.xpose.msra.mxu0 0.0
    %4557 = vmatpush.xpose.msra.mxu0 0.0
    %4558 = vmatpush.xpose.msra.mxu0 0.0
    %4559 = vmatpush.xpose.msra.mxu0 0.0
    %4560 = vmatpush.xpose.msra.mxu0 0.0
    %4561 = vmatpush.xpose.msra.mxu0 0.0
    %4562 = vmatpush.xpose.msra.mxu0 0.0
    %4563 = vmatpush.xpose.msra.mxu0 0.0
    %4564 = vmatpush.xpose.msra.mxu0 %v4547
    %4565 = vmatmul.f32.gmra.mxu0 %v4445
    %v4566 = vpop.f32.mrf.mxu0
    %v4567 = vadd.f32 0.0, %v4566
    %4568 = vdwg.mxu0
    %v4569 = vsel %vm553, %v4469, -inf
    %4570 = vmax.xlane.f32.xlu0 %v4569
    %v4571 = vpop.xlane.xlu0 %4570
    %v4572 = vsel %vm553, %v4470, -inf
    %4573 = vmax.xlane.f32.xlu0 %v4572
    %v4574 = vpop.xlane.xlu0 %4573
    %v4575 = vsel %vm553, %v4471, -inf
    %4576 = vmax.xlane.f32.xlu0 %v4575
    %v4577 = vpop.xlane.xlu0 %4576
    %v4578 = vsel %vm553, %v4472, -inf
    %4579 = vmax.xlane.f32.xlu0 %v4578
    %v4580 = vpop.xlane.xlu0 %4579
    %v4581 = vsel %vm553, %v4495, -inf
    %4582 = vmax.xlane.f32.xlu0 %v4581
    %v4583 = vpop.xlane.xlu0 %4582
    %v4584 = vsel %vm553, %v4519, -inf
    %4585 = vmax.xlane.f32.xlu0 %v4584
    %v4586 = vpop.xlane.xlu0 %4585
    %v4587 = vsel %vm553, %v4543, -inf
    %4588 = vmax.xlane.f32.xlu0 %v4587
    %v4589 = vpop.xlane.xlu0 %4588
    %v4590 = vsel %vm553, %v4567, -inf
    %4591 = vmax.xlane.f32.xlu0 %v4590
    %v4592 = vpop.xlane.xlu0 %4591
    %v4593 = vmax.f32 %v4571, %v4583
    %v4594 = vmax.f32 %v4574, %v4586
    %v4595 = vmax.f32 %v4577, %v4589
    %v4596 = vmax.f32 %v4580, %v4592
    %v4597 = vsub.f32 %v4469, %v4593
    %v4598 = vsub.f32 %v4470, %v4594
    %v4599 = vsub.f32 %v4471, %v4595
    %v4600 = vsub.f32 %v4472, %v4596
    %v4601 = vmul.f32 %v4597, 1.442695
    %v4602 = vpow.pop %v4601
    %v4603 = vmul.f32 %v4598, 1.442695
    %v4604 = vpow.pop %v4603
    %v4605 = vmul.f32 %v4599, 1.442695
    %v4606 = vpow.pop %v4605
    %v4607 = vmul.f32 %v4600, 1.442695
    %v4608 = vpow.pop %v4607
    %v4609 = vsub.f32 %v4495, %v4593
    %v4610 = vsub.f32 %v4519, %v4594
    %v4611 = vsub.f32 %v4543, %v4595
    %v4612 = vsub.f32 %v4567, %v4596
    %v4613 = vmul.f32 %v4609, 1.442695
    %v4614 = vpow.pop %v4613
    %v4615 = vmul.f32 %v4610, 1.442695
    %v4616 = vpow.pop %v4615
    %v4617 = vmul.f32 %v4611, 1.442695
    %v4618 = vpow.pop %v4617
    %v4619 = vmul.f32 %v4612, 1.442695
    %v4620 = vpow.pop %v4619
    %v4621 = vsel %vm553, %v4602, 0.0
    %4622 = vadd.xlane.f32.xlu0 %v4621
    %v4623 = vpop.xlane.xlu0 %4622
    %v4624 = vsel %vm553, %v4604, 0.0
    %4625 = vadd.xlane.f32.xlu0 %v4624
    %v4626 = vpop.xlane.xlu0 %4625
    %v4627 = vsel %vm553, %v4606, 0.0
    %4628 = vadd.xlane.f32.xlu0 %v4627
    %v4629 = vpop.xlane.xlu0 %4628
    %v4630 = vsel %vm553, %v4608, 0.0
    %4631 = vadd.xlane.f32.xlu0 %v4630
    %v4632 = vpop.xlane.xlu0 %4631
    %v4633 = vsel %vm553, %v4614, 0.0
    %4634 = vadd.xlane.f32.xlu0 %v4633
    %v4635 = vpop.xlane.xlu0 %4634
    %v4636 = vsel %vm553, %v4616, 0.0
    %4637 = vadd.xlane.f32.xlu0 %v4636
    %v4638 = vpop.xlane.xlu0 %4637
    %v4639 = vsel %vm553, %v4618, 0.0
    %4640 = vadd.xlane.f32.xlu0 %v4639
    %v4641 = vpop.xlane.xlu0 %4640
    %v4642 = vsel %vm553, %v4620, 0.0
    %4643 = vadd.xlane.f32.xlu0 %v4642
    %v4644 = vpop.xlane.xlu0 %4643
    %v4645 = vadd.f32 %v4623, %v4635
    %v4646 = vadd.f32 %v4626, %v4638
    %v4647 = vadd.f32 %v4629, %v4641
    %v4648 = vadd.f32 %v4632, %v4644
    %v4649 = vrcp.pop %v4645
    %v4650 = vrcp.pop %v4646
    %v4651 = vrcp.pop %v4647
    %v4652 = vrcp.pop %v4648
    %4653 = vrot.lane.b32.xlu0 %v2857, 104
    %v4654 = vpop.permute.xlu0 %4653
    %v4657 = vsel %vm553, %v4614, 0
    %4659 = vmatpush.msra.mxu0 0.0
    %4660 = vmatpush.msra.mxu0 0.0
    %4661 = vmatpush.msra.mxu0 0.0
    %4662 = vmatpush.msra.mxu0 0.0
    %4663 = vmatpush.msra.mxu0 0.0
    %4664 = vmatpush.msra.mxu0 0.0
    %4665 = vmatpush.msra.mxu0 0.0
    %4666 = vmatpush.msra.mxu0 0.0
    %4667 = vmatpush.msra.mxu0 0.0
    %4668 = vmatpush.msra.mxu0 0.0
    %4669 = vmatpush.msra.mxu0 0.0
    %4670 = vmatpush.msra.mxu0 0.0
    %4671 = vmatpush.msra.mxu0 0.0
    %4672 = vmatpush.msra.mxu0 0.0
    %4673 = vmatpush.msra.mxu0 0.0
    %4674 = vmatpush.msra.mxu0 %v4654
    %4675 = vmatmul.f32.gmra.mxu0 %v4657
    %v4676 = vpop.f32.mrf.mxu0
    %v4677 = vadd.f32 0.0, %v4676
    %4678 = vdwg.mxu0
    %4679 = vrot.lane.b32.xlu0 %v2858, 104
    %v4680 = vpop.permute.xlu0 %4679
    %v4683 = vsel %vm553, %v4616, 0
    %4685 = vmatpush.msra.mxu0 0.0
    %4686 = vmatpush.msra.mxu0 0.0
    %4687 = vmatpush.msra.mxu0 0.0
    %4688 = vmatpush.msra.mxu0 0.0
    %4689 = vmatpush.msra.mxu0 0.0
    %4690 = vmatpush.msra.mxu0 0.0
    %4691 = vmatpush.msra.mxu0 0.0
    %4692 = vmatpush.msra.mxu0 0.0
    %4693 = vmatpush.msra.mxu0 0.0
    %4694 = vmatpush.msra.mxu0 0.0
    %4695 = vmatpush.msra.mxu0 0.0
    %4696 = vmatpush.msra.mxu0 0.0
    %4697 = vmatpush.msra.mxu0 0.0
    %4698 = vmatpush.msra.mxu0 0.0
    %4699 = vmatpush.msra.mxu0 0.0
    %4700 = vmatpush.msra.mxu0 %v4680
    %4701 = vmatmul.f32.gmra.mxu0 %v4683
    %v4702 = vpop.f32.mrf.mxu0
    %v4703 = vadd.f32 0.0, %v4702
    %4704 = vdwg.mxu0
    %4705 = vrot.lane.b32.xlu0 %v2859, 104
    %v4706 = vpop.permute.xlu0 %4705
    %v4709 = vsel %vm553, %v4618, 0
    %4711 = vmatpush.msra.mxu0 0.0
    %4712 = vmatpush.msra.mxu0 0.0
    %4713 = vmatpush.msra.mxu0 0.0
    %4714 = vmatpush.msra.mxu0 0.0
    %4715 = vmatpush.msra.mxu0 0.0
    %4716 = vmatpush.msra.mxu0 0.0
    %4717 = vmatpush.msra.mxu0 0.0
    %4718 = vmatpush.msra.mxu0 0.0
    %4719 = vmatpush.msra.mxu0 0.0
    %4720 = vmatpush.msra.mxu0 0.0
    %4721 = vmatpush.msra.mxu0 0.0
    %4722 = vmatpush.msra.mxu0 0.0
    %4723 = vmatpush.msra.mxu0 0.0
    %4724 = vmatpush.msra.mxu0 0.0
    %4725 = vmatpush.msra.mxu0 0.0
    %4726 = vmatpush.msra.mxu0 %v4706
    %4727 = vmatmul.f32.gmra.mxu0 %v4709
    %v4728 = vpop.f32.mrf.mxu0
    %v4729 = vadd.f32 0.0, %v4728
    %4730 = vdwg.mxu0
    %4731 = vrot.lane.b32.xlu0 %v2860, 104
    %v4732 = vpop.permute.xlu0 %4731
    %v4735 = vsel %vm553, %v4620, 0
    %4737 = vmatpush.msra.mxu0 0.0
    %4738 = vmatpush.msra.mxu0 0.0
    %4739 = vmatpush.msra.mxu0 0.0
    %4740 = vmatpush.msra.mxu0 0.0
    %4741 = vmatpush.msra.mxu0 0.0
    %4742 = vmatpush.msra.mxu0 0.0
    %4743 = vmatpush.msra.mxu0 0.0
    %4744 = vmatpush.msra.mxu0 0.0
    %4745 = vmatpush.msra.mxu0 0.0
    %4746 = vmatpush.msra.mxu0 0.0
    %4747 = vmatpush.msra.mxu0 0.0
    %4748 = vmatpush.msra.mxu0 0.0
    %4749 = vmatpush.msra.mxu0 0.0
    %4750 = vmatpush.msra.mxu0 0.0
    %4751 = vmatpush.msra.mxu0 0.0
    %4752 = vmatpush.msra.mxu0 %v4732
    %4753 = vmatmul.f32.gmra.mxu0 %v4735
    %v4754 = vpop.f32.mrf.mxu0
    %v4755 = vadd.f32 0.0, %v4754
    %4756 = vdwg.mxu0
    %4757 = vrot.lane.b32.xlu0 %v2849, 104
    %v4758 = vpop.permute.xlu0 %4757
    %v4761 = vsel %vm553, %v4602, 0
    %4763 = vmatpush.msra.mxu0 0.0
    %4764 = vmatpush.msra.mxu0 0.0
    %4765 = vmatpush.msra.mxu0 0.0
    %4766 = vmatpush.msra.mxu0 0.0
    %4767 = vmatpush.msra.mxu0 0.0
    %4768 = vmatpush.msra.mxu0 0.0
    %4769 = vmatpush.msra.mxu0 0.0
    %4770 = vmatpush.msra.mxu0 0.0
    %4771 = vmatpush.msra.mxu0 0.0
    %4772 = vmatpush.msra.mxu0 0.0
    %4773 = vmatpush.msra.mxu0 0.0
    %4774 = vmatpush.msra.mxu0 0.0
    %4775 = vmatpush.msra.mxu0 0.0
    %4776 = vmatpush.msra.mxu0 0.0
    %4777 = vmatpush.msra.mxu0 0.0
    %4778 = vmatpush.msra.mxu0 %v4758
    %4779 = vmatmul.f32.gmra.mxu0 %v4761
    %v4780 = vpop.f32.mrf.mxu0
    %v4781 = vadd.f32 %v4677, %v4780
    %4782 = vdwg.mxu0
    %4783 = vrot.lane.b32.xlu0 %v2850, 104
    %v4784 = vpop.permute.xlu0 %4783
    %v4787 = vsel %vm553, %v4604, 0
    %4789 = vmatpush.msra.mxu0 0.0
    %4790 = vmatpush.msra.mxu0 0.0
    %4791 = vmatpush.msra.mxu0 0.0
    %4792 = vmatpush.msra.mxu0 0.0
    %4793 = vmatpush.msra.mxu0 0.0
    %4794 = vmatpush.msra.mxu0 0.0
    %4795 = vmatpush.msra.mxu0 0.0
    %4796 = vmatpush.msra.mxu0 0.0
    %4797 = vmatpush.msra.mxu0 0.0
    %4798 = vmatpush.msra.mxu0 0.0
    %4799 = vmatpush.msra.mxu0 0.0
    %4800 = vmatpush.msra.mxu0 0.0
    %4801 = vmatpush.msra.mxu0 0.0
    %4802 = vmatpush.msra.mxu0 0.0
    %4803 = vmatpush.msra.mxu0 0.0
    %4804 = vmatpush.msra.mxu0 %v4784
    %4805 = vmatmul.f32.gmra.mxu0 %v4787
    %v4806 = vpop.f32.mrf.mxu0
    %v4807 = vadd.f32 %v4703, %v4806
    %4808 = vdwg.mxu0
    %4809 = vrot.lane.b32.xlu0 %v2851, 104
    %v4810 = vpop.permute.xlu0 %4809
    %v4813 = vsel %vm553, %v4606, 0
    %4815 = vmatpush.msra.mxu0 0.0
    %4816 = vmatpush.msra.mxu0 0.0
    %4817 = vmatpush.msra.mxu0 0.0
    %4818 = vmatpush.msra.mxu0 0.0
    %4819 = vmatpush.msra.mxu0 0.0
    %4820 = vmatpush.msra.mxu0 0.0
    %4821 = vmatpush.msra.mxu0 0.0
    %4822 = vmatpush.msra.mxu0 0.0
    %4823 = vmatpush.msra.mxu0 0.0
    %4824 = vmatpush.msra.mxu0 0.0
    %4825 = vmatpush.msra.mxu0 0.0
    %4826 = vmatpush.msra.mxu0 0.0
    %4827 = vmatpush.msra.mxu0 0.0
    %4828 = vmatpush.msra.mxu0 0.0
    %4829 = vmatpush.msra.mxu0 0.0
    %4830 = vmatpush.msra.mxu0 %v4810
    %4831 = vmatmul.f32.gmra.mxu0 %v4813
    %v4832 = vpop.f32.mrf.mxu0
    %v4833 = vadd.f32 %v4729, %v4832
    %4834 = vdwg.mxu0
    %4835 = vrot.lane.b32.xlu0 %v2852, 104
    %v4836 = vpop.permute.xlu0 %4835
    %v4839 = vsel %vm553, %v4608, 0
    %4841 = vmatpush.msra.mxu0 0.0
    %4842 = vmatpush.msra.mxu0 0.0
    %4843 = vmatpush.msra.mxu0 0.0
    %4844 = vmatpush.msra.mxu0 0.0
    %4845 = vmatpush.msra.mxu0 0.0
    %4846 = vmatpush.msra.mxu0 0.0
    %4847 = vmatpush.msra.mxu0 0.0
    %4848 = vmatpush.msra.mxu0 0.0
    %4849 = vmatpush.msra.mxu0 0.0
    %4850 = vmatpush.msra.mxu0 0.0
    %4851 = vmatpush.msra.mxu0 0.0
    %4852 = vmatpush.msra.mxu0 0.0
    %4853 = vmatpush.msra.mxu0 0.0
    %4854 = vmatpush.msra.mxu0 0.0
    %4855 = vmatpush.msra.mxu0 0.0
    %4856 = vmatpush.msra.mxu0 %v4836
    %4857 = vmatmul.f32.gmra.mxu0 %v4839
    %v4858 = vpop.f32.mrf.mxu0
    %v4859 = vadd.f32 %v4755, %v4858
    %4860 = vdwg.mxu0
    %v4861 = vmul.f32 %v4781, %v4649
    %v4862 = vmul.f32 %v4807, %v4650
    %v4863 = vmul.f32 %v4833, %v4651
    %v4864 = vmul.f32 %v4859, %v4652
    %4869 = vrot.lane.b32.xlu0 %v3845, 8
    %v4870 = vpop.permute.xlu0 %4869
    %4871 = vrot.lane.b32.xlu0 %v3846, 8
    %v4872 = vpop.permute.xlu0 %4871
    %4873 = vrot.lane.b32.xlu0 %v3847, 8
    %v4874 = vpop.permute.xlu0 %4873
    %4875 = vrot.lane.b32.xlu0 %v3848, 8
    %v4876 = vpop.permute.xlu0 %4875
    %4885 = vrot.lane.b32.xlu0 %v4353, 16
    %v4886 = vpop.permute.xlu0 %4885
    %4887 = vrot.lane.b32.xlu0 %v4354, 16
    %v4888 = vpop.permute.xlu0 %4887
    %4889 = vrot.lane.b32.xlu0 %v4355, 16
    %v4890 = vpop.permute.xlu0 %4889
    %4891 = vrot.lane.b32.xlu0 %v4356, 16
    %v4892 = vpop.permute.xlu0 %4891
    %4901 = vrot.lane.b32.xlu0 %v4861, 24
    %v4902 = vpop.permute.xlu0 %4901
    %4903 = vrot.lane.b32.xlu0 %v4862, 24
    %v4904 = vpop.permute.xlu0 %4903
    %4905 = vrot.lane.b32.xlu0 %v4863, 24
    %v4906 = vpop.permute.xlu0 %4905
    %4907 = vrot.lane.b32.xlu0 %v4864, 24
    %v4908 = vpop.permute.xlu0 %4907
    %v4913 = vsel %vm553, %v3329, %v4870
    %v4914 = vsel %vm553, %v3330, %v4872
    %v4915 = vsel %vm553, %v3331, %v4874
    %v4916 = vsel %vm553, %v3332, %v4876
    %v4917 = vsel %vm2610, %v4913, %v4886
    %v4918 = vsel %vm2610, %v4914, %v4888
    %v4919 = vsel %vm2610, %v4915, %v4890
    %v4920 = vsel %vm2610, %v4916, %v4892
    %v4921 = vsel %vm2615, %v4917, %v4902
    %v4922 = vsel %vm2615, %v4918, %v4904
    %v4923 = vsel %vm2615, %v4919, %v4906
    %v4924 = vsel %vm2615, %v4920, %v4908
    %v4925 = vld [vmem:[#allocation10] sm:$0xff]
    %v4926 = vld [vmem:[#allocation10 + $0x8] sm:$0xff]
    %v4927 = vld [vmem:[#allocation10 + $0x10] sm:$0xff]
    %v4928 = vld [vmem:[#allocation10 + $0x18] sm:$0xff]
    %v4929 = vld [vmem:[%s8] sm:$0x1]
    %v4931 = vperm.slane %v4929, 0
    %v4934 = vsel %vm134, %v2616, 0
    %v4937 = vsel %vm134, %v2617, 0
    %v4940 = vsel %vm134, %v2618, 0
    %v4943 = vsel %vm134, %v2619, 0
    %v4946 = vsel %vm134, %v4921, 0
    %v4949 = vsel %vm134, %v4922, 0
    %v4952 = vsel %vm134, %v4923, 0
    %v4955 = vsel %vm134, %v4924, 0
    %4957 = vmatpush.msra.mxu0 0.0
    %4958 = vmatpush.msra.mxu0 0.0
    %4959 = vmatpush.msra.mxu0 0.0
    %4960 = vmatpush.msra.mxu0 0.0
    %4961 = vmatpush.msra.mxu0 0.0
    %4962 = vmatpush.msra.mxu0 0.0
    %4963 = vmatpush.msra.mxu0 0.0
    %4964 = vmatpush.msra.mxu0 0.0
    %4965 = vmatpush.msra.mxu0 0.0
    %4966 = vmatpush.msra.mxu0 0.0
    %4967 = vmatpush.msra.mxu0 0.0
    %4968 = vmatpush.msra.mxu0 0.0
    %4969 = vmatpush.msra.mxu0 %v4928
    %4970 = vmatpush.msra.mxu0 %v4927
    %4971 = vmatpush.msra.mxu0 %v4926
    %4972 = vmatpush.msra.mxu0 %v4925
    %4973 = vmatmul.f32.gmra.mxu0 %v4934
    %v4974 = vpop.f32.mrf.mxu0
    %v4975 = vadd.f32 %v4931, %v4974
    %4976 = vmatmul.f32.gmra.mxu0 %v4937
    %v4977 = vpop.f32.mrf.mxu0
    %v4978 = vadd.f32 %v4931, %v4977
    %4979 = vmatmul.f32.gmra.mxu0 %v4940
    %v4980 = vpop.f32.mrf.mxu0
    %v4981 = vadd.f32 %v4931, %v4980
    %4982 = vmatmul.f32.gmra.mxu0 %v4943
    %v4983 = vpop.f32.mrf.mxu0
    %v4984 = vadd.f32 %v4931, %v4983
    %4985 = vmatmul.f32.gmra.mxu0 %v4946
    %v4986 = vpop.f32.mrf.mxu0
    %v4987 = vadd.f32 %v4931, %v4986
    %4988 = vmatmul.f32.gmra.mxu0 %v4949
    %v4989 = vpop.f32.mrf.mxu0
    %v4990 = vadd.f32 %v4931, %v4989
    %4991 = vmatmul.f32.gmra.mxu0 %v4952
    %v4992 = vpop.f32.mrf.mxu0
    %v4993 = vadd.f32 %v4931, %v4992
    %4994 = vmatmul.f32.gmra.mxu0 %v4955
    %v4995 = vpop.f32.mrf.mxu0
    %v4996 = vadd.f32 %v4931, %v4995
    %4997 = vdwg.mxu0
    %4998 = vst.msk [vmem:[#allocation11] sm:$0xff] %vm134, %v4975
    %4999 = vst.msk [vmem:[#allocation11 + $0x8] sm:$0xff] %vm134, %v4978
    %5000 = vst.msk [vmem:[#allocation11 + $0x10] sm:$0xff] %vm134, %v4981
    %5001 = vst.msk [vmem:[#allocation11 + $0x18] sm:$0xff] %vm134, %v4984
    %5002 = vst.msk [vmem:[#allocation11 + $0x20] sm:$0xff] %vm134, %v4987
    %5003 = vst.msk [vmem:[#allocation11 + $0x28] sm:$0xff] %vm134, %v4990
    %5004 = vst.msk [vmem:[#allocation11 + $0x30] sm:$0xff] %vm134, %v4993
    %5005 = vst.msk [vmem:[#allocation11 + $0x38] sm:$0xff] %vm134, %v4996
    // Predicated region
    $region58: #{tpu_custom_call.1} parent=1 // pred_check
      _
    $region59: #{tpu_custom_call.1} parent=1 // pred_check_branch
      %5007 = sbr.rel (0) target = $region61
    $region60: #{tpu_custom_call.1} parent=1 // pred_region
      %5009 = vsyncadd [#allocation4], 0
      %s5010 = sshll.u32 [#allocation11], 4
      %s5011 = int_to_ptr.vmem [resolvable:$true] %s5010
      %s5012 = sshll.u32 %s9, 4
      %s5013 = int_to_ptr.hbm [resolvable:$true] %s5012
      %5018 = dma.vmem_to_hbm [thread:$0]  %s5011, 1024, %s5013, [#allocation4], 128, 128, 8
    $region61: #{tpu_custom_call.1} parent=1 // pred_fallthru
      _
    // Predicated region
    $region62: #{tpu_custom_call.1} parent=1 // pred_check
      _
    $region63: #{tpu_custom_call.1} parent=1 // pred_check_branch
      %5020 = sbr.rel (0) target = $region65
    $region64: #{tpu_custom_call.1} parent=1 // pred_region
      %5022 = dma.done [#allocation4], 1024
    $region65: #{tpu_custom_call.1} parent=1 // pred_fallthru
      _
    %5023 = vsyncpa [#allocation3], 1
    %5024 = vsyncpa [#allocation6], 1
    %5025 = vsyncpa [#allocation9], 1
    %5026 = vsyncpa [#allocation4], 1

</llo_original>
